<compile_context>
chip_gen: v7x
topology: tpu7x:2x2x1
jax: 0.10.0
libtpu: 0.0.40
codegen_flags: <defaults>
</compile_context>

<pallas_src>
import jax
import jax.numpy as jnp
from jax.experimental import pallas as pl
from jax.experimental.pallas import tpu as pltpu

# Keep the pure-JAX reference matmuls in full f32 so they match the in-kernel MXU math.
jax.config.update("jax_default_matmul_precision", "highest")

# ---------------------------------------------------------------------------
# Static model / graph configuration
# ---------------------------------------------------------------------------
NODE_TYPES = ["user", "item"]
TYPE_ROW = {"user": 0, "item": 1}          # row-block index in the stacked [2N, D] slab
# (src_type, rel_name, dst_type)
RELATIONS = [
    ("user", "follows", "user"),
    ("item", "bought_by", "user"),
    ("user", "buys", "item"),
]
NUM_RELS = len(RELATIONS)
NUM_DST = len(NODE_TYPES)
DST_RELS = {d: [i for i, (_, _, dd) in enumerate(RELATIONS) if dd == d] for d in NODE_TYPES}

N_NODES = 16          # nodes per node type
DIM_IN = 32           # skipsum requires dim_in == dim_out
DIM_OUT = 32
NUM_LAYERS = 4        # stage layers
SKIP_EVERY = 2        # -> 2 skip blocks of 2 layers each
NUM_BLOCKS = NUM_LAYERS // SKIP_EVERY

# bf16 MXU inputs (f32 accumulate) — gated OFF so the strict f32 reference check passes.
USE_BF16_MXU = False
MXU_DTYPE = jnp.bfloat16 if USE_BF16_MXU else jnp.float32


# ---------------------------------------------------------------------------
# Fused Pallas kernel: whole HGNNSkipStage forward in one VMEM-resident call
# ---------------------------------------------------------------------------
def _l2norm(x):
    # x / max(||x||, 1e-12)  (== F.normalize eps clamp), via rsqrt (EUP slot).
    ssq = jnp.sum(x * x, axis=-1, keepdims=True)
    return x * jax.lax.rsqrt(jnp.maximum(ssq, 1e-24))


def _stage_kernel(a_ref, x_ref, w_ref, b_ref, o_ref):
    # a_ref: [2N, R*N]  block aggregation matrix (both destination types)
    # x_ref: [2N, Din]  stacked input features (user rows 0:N, item rows N:2N)
    # w_ref: [L, Din, R*Dout]   per-layer host-concatenated relation weights
    # b_ref: [L, 2N, Dout]      per-layer pre-summed, pre-broadcast biases
    # o_ref: [2N, Dout]         single lane-denser output slab
    A = a_ref[...].astype(MXU_DTYPE)          # loaded & (optionally) cast once
    h = x_ref[...]                            # f32 activations throughout

    for blk in range(NUM_BLOCKS):             # HGNNSkipBlock (skipsum), unrolled
        h0 = h
        for lyr in range(SKIP_EVERY):         # HGNN layers in the block, unrolled
            li = blk * SKIP_EVERY + lyr
            # (1) all per-relation transforms in ONE MXU op: [2N,Din]@[Din,R*Dout]
            y = jnp.dot(h.astype(MXU_DTYPE), w_ref[li].astype(MXU_DTYPE),
                        preferred_element_type=jnp.float32)
            # static (source-row-block, relation-col-block) slices -> [R*N, Dout]
            xw_cat = jnp.concatenate(
                [y[TYPE_ROW[src] * N_NODES:(TYPE_ROW[src] + 1) * N_NODES,
                   r * DIM_OUT:(r + 1) * DIM_OUT]
                 for r, (src, _, _) in enumerate(RELATIONS)],
                axis=0)
            # (2) both destination types aggregated in ONE MXU op:
            #     sum_r A_r @ (X_src(r) W_r)  ==  A_full @ XW_cat
            z = jnp.dot(A, xw_cat.astype(MXU_DTYPE),
                        preferred_element_type=jnp.float32)
            z = z + b_ref[li]                  # pre-broadcast bias: plain aligned add
            z = jnp.maximum(z, 0.0)            # layer act (ReLU)
            h = _l2norm(z)                     # layer has_l2norm
        h = jnp.maximum(h + h0, 0.0)           # skipsum: act(h + h_0)

    # Stage-level has_l2norm, fused into the epilogue; single wide store.
    o_ref[...] = _l2norm(h).astype(o_ref.dtype)


@jax.jit
def hgnn_skip_stage(a_full, x_all, w_packed, b_packed):
    vmem = pl.BlockSpec(memory_space=pltpu.MemorySpace.VMEM)
    out = pl.pallas_call(
        _stage_kernel,
        out_shape=jax.ShapeDtypeStruct((NUM_DST * N_NODES, DIM_OUT), jnp.float32),
        in_specs=[vmem, vmem, vmem, vmem],
        out_specs=vmem,
    )(a_full, x_all, w_packed, b_packed)
    # split the single output slab back into per-node-type features
    return out[:N_NODES], out[N_NODES:]


# ---------------------------------------------------------------------------
# Host-side setup: graph, parameters, one-time packing
# ---------------------------------------------------------------------------
def build_graph(key):
    """Deterministic dense row-normalized adjacency per relation."""
    adjs = []
    for _ in RELATIONS:
        key, sub = jax.random.split(key)
        a = (jax.random.uniform(sub, (N_NODES, N_NODES)) < 0.3).astype(jnp.float32)
        a = a + jnp.eye(N_NODES, dtype=jnp.float32)           # avoid empty rows
        a = a / jnp.sum(a, axis=-1, keepdims=True)            # mean-style normalization
        adjs.append(a)
    return adjs                                                # list of [Nd, Ns]


def init_params(key):
    """Per block, per layer, per relation: weight [Din, Dout] and bias [1, Dout]."""
    params = []
    for _ in range(NUM_BLOCKS):
        block = []
        for _ in range(SKIP_EVERY):
            ws, bs = [], []
            for _ in range(NUM_RELS):
                key, kw, kb = jax.random.split(key, 3)
                ws.append(jax.random.normal(kw, (DIM_IN, DIM_OUT), dtype=jnp.float32)
                          * (1.0 / jnp.sqrt(DIM_IN)))
                bs.append(jax.random.normal(kb, (1, DIM_OUT), dtype=jnp.float32) * 0.01)
            block.append({"W": ws, "b": bs})
        params.append(block)
    return params


def pack_inputs(adjs, params):
    """One-time host packing:
       * A_full [2N, R*N]: block aggregation matrix (relation r's adjacency sits in
         the dst(r) row-block and relation-r column-block; zeros elsewhere).
       * W_cat per layer [Din, R*Dout] (relations concatenated along lanes).
       * Bias per layer pre-summed per destination and pre-broadcast to [2N, Dout].
    """
    N, R = N_NODES, NUM_RELS
    a_full = jnp.zeros((NUM_DST * N, R * N), jnp.float32)
    for r, (_, _, dst) in enumerate(RELATIONS):
        d = TYPE_ROW[dst]
        a_full = a_full.at[d * N:(d + 1) * N, r * N:(r + 1) * N].set(adjs[r])

    w_list, b_list = [], []
    for block in params:
        for layer in block:
            w_list.append(jnp.concatenate(layer["W"], axis=1))      # [Din, R*Dout]
            b_rows = []
            for t in NODE_TYPES:
                bsum = jnp.zeros((DIM_OUT,), jnp.float32)
                for r in DST_RELS[t]:
                    bsum = bsum + layer["b"][r][0]
                b_rows.append(jnp.broadcast_to(bsum, (N, DIM_OUT)))
            b_list.append(jnp.concatenate(b_rows, axis=0))           # [2N, Dout]
    w_packed = jnp.stack(w_list)     # [L, Din, R*Dout]
    b_packed = jnp.stack(b_list)     # [L, 2N, Dout]
    return a_full, w_packed, b_packed


# ---------------------------------------------------------------------------
# Pure-JAX reference (for correctness verification of the fused kernel)
# ---------------------------------------------------------------------------
def reference_stage(feats, adjs, params):
    def l2n(x):
        n = jnp.linalg.norm(x, axis=-1, keepdims=True)
        return x / jnp.maximum(n, 1e-12)

    h = dict(feats)
    for block in params:
        h0 = dict(h)
        for layer in block:
            new_h = {}
            for dst in NODE_TYPES:
                acc = jnp.zeros((N_NODES, DIM_OUT), jnp.float32)
                for r in DST_RELS[dst]:
                    src = RELATIONS[r][0]
                    acc = acc + adjs[r] @ (h[src] @ layer["W"][r]) + layer["b"][r]
                new_h[dst] = l2n(jnp.maximum(acc, 0.0))
            h = new_h
        h = {t: jnp.maximum(h[t] + h0[t], 0.0) for t in NODE_TYPES}
    return {t: l2n(v) for t, v in h.items()}


if __name__ == "__main__":
    root = jax.random.PRNGKey(0)
    k_graph, k_param, k_feat = jax.random.split(root, 3)

    adjs = build_graph(k_graph)
    params = init_params(k_param)
    a_full, w_packed, b_packed = pack_inputs(adjs, params)

    feats = {}
    for t in NODE_TYPES:
        k_feat, sub = jax.random.split(k_feat)
        feats[t] = jax.random.normal(sub, (N_NODES, DIM_IN), dtype=jnp.float32)
    x_all = jnp.concatenate([feats[t] for t in NODE_TYPES], axis=0)   # [2N, Din]

    out_user, out_item = hgnn_skip_stage(a_full, x_all, w_packed, b_packed)
    out = {"user": out_user, "item": out_item}
    out = jax.block_until_ready(out)

    ref = reference_stage(feats, adjs, params)
    atol = 2e-2 if USE_BF16_MXU else 1e-3
    for t in NODE_TYPES:
        assert out[t].shape == (N_NODES, DIM_OUT)
        assert bool(jnp.all(jnp.isfinite(out[t])))
        # final stage-level l2norm => unit rows
        norms = jnp.linalg.norm(out[t], axis=-1)
        assert bool(jnp.allclose(norms, 1.0, atol=1e-4))
        # match the pure-JAX reference
        assert bool(jnp.allclose(out[t], ref[t], atol=atol, rtol=atol))

    print("KERNEL_OK")
</pallas_src>

<mosaic_0001>
module attributes {stable_mosaic.version = 11 : i64} {
  func.func @_stage_kernel(%arg0: memref<32x48xf32, #tpu.memory_space<vmem>>, %arg1: memref<32x32xf32, #tpu.memory_space<vmem>>, %arg2: memref<4x32x96xf32, #tpu.memory_space<vmem>>, %arg3: memref<4x32x32xf32, #tpu.memory_space<vmem>>, %arg4: memref<32x32xf32, #tpu.memory_space<vmem>>) attributes {dimension_semantics = [], scalar_prefetch = 0 : i64, scratch_operands = 0 : i64, tpu.core_type = #tpu.core_type<tc>} {
    %c0 = arith.constant 0 : index
    %c0_0 = arith.constant 0 : index
    %0 = vector.load %arg0[%c0, %c0_0] : memref<32x48xf32, #tpu.memory_space<vmem>>, vector<32x48xf32>
    %c0_1 = arith.constant 0 : index
    %c0_2 = arith.constant 0 : index
    %1 = vector.load %arg1[%c0_1, %c0_2] : memref<32x32xf32, #tpu.memory_space<vmem>>, vector<32x32xf32>
    %c0_3 = arith.constant 0 : index
    %c0_4 = arith.constant 0 : index
    %c0_5 = arith.constant 0 : index
    %2 = vector.load %arg2[%c0_3, %c0_4, %c0_5] : memref<4x32x96xf32, #tpu.memory_space<vmem>>, vector<1x32x96xf32>
    %3 = vector.shape_cast %2 : vector<1x32x96xf32> to vector<32x96xf32>
    %cst = arith.constant dense<0.000000e+00> : vector<32x96xf32>
    %4 = tpu.matmul %1, %3, %cst {dimension_numbers = #tpu.dot_dimension_numbers<[1], [0], [0], [1], [0, 0, 1, 1], [], []>, precision = #tpu.contract_precision<fp32>} : vector<32x32xf32>, vector<32x96xf32>, vector<32x96xf32> -> vector<32x96xf32>
    %5 = vector.extract_strided_slice %4 {offsets = [0, 0], sizes = [16, 32], strides = [1, 1]} : vector<32x96xf32> to vector<16x32xf32>
    %6 = vector.extract_strided_slice %4 {offsets = [16, 32], sizes = [16, 32], strides = [1, 1]} : vector<32x96xf32> to vector<16x32xf32>
    %7 = vector.extract_strided_slice %4 {offsets = [0, 64], sizes = [16, 32], strides = [1, 1]} : vector<32x96xf32> to vector<16x32xf32>
    %8 = tpu.concatenate %5, %6, %7 in 0 : vector<16x32xf32>, vector<16x32xf32>, vector<16x32xf32> -> vector<48x32xf32>
    %cst_6 = arith.constant dense<0.000000e+00> : vector<32x32xf32>
    %9 = tpu.matmul %0, %8, %cst_6 {dimension_numbers = #tpu.dot_dimension_numbers<[1], [0], [0], [1], [0, 0, 1, 1], [], []>, precision = #tpu.contract_precision<fp32>} : vector<32x48xf32>, vector<48x32xf32>, vector<32x32xf32> -> vector<32x32xf32>
    %c0_7 = arith.constant 0 : index
    %c0_8 = arith.constant 0 : index
    %c0_9 = arith.constant 0 : index
    %10 = vector.load %arg3[%c0_7, %c0_8, %c0_9] : memref<4x32x32xf32, #tpu.memory_space<vmem>>, vector<1x32x32xf32>
    %11 = vector.shape_cast %10 : vector<1x32x32xf32> to vector<32x32xf32>
    %12 = arith.addf %9, %11 : vector<32x32xf32>
    %cst_10 = arith.constant 0.000000e+00 : f32
    %13 = vector.broadcast %cst_10 : f32 to vector<32x32xf32>
    %14 = arith.maximumf %12, %13 : vector<32x32xf32>
    %15 = arith.mulf %14, %14 : vector<32x32xf32>
    %cst_11 = arith.constant dense<0.000000e+00> : vector<32xf32>
    %16 = vector.multi_reduction <add>, %15, %cst_11 [1] : vector<32x32xf32> to vector<32xf32>
    %17 = vector.shape_cast %16 : vector<32xf32> to vector<32x1xf32>
    %cst_12 = arith.constant 1.000000e-24 : f32
    %18 = vector.broadcast %cst_12 : f32 to vector<32x1xf32>
    %19 = arith.maximumf %17, %18 : vector<32x1xf32>
    %20 = math.rsqrt %19 : vector<32x1xf32>
    %21 = vector.broadcast %20 : vector<32x1xf32> to vector<32x32xf32>
    %22 = arith.mulf %14, %21 : vector<32x32xf32>
    %c1 = arith.constant 1 : index
    %c0_13 = arith.constant 0 : index
    %c0_14 = arith.constant 0 : index
    %23 = vector.load %arg2[%c1, %c0_13, %c0_14] : memref<4x32x96xf32, #tpu.memory_space<vmem>>, vector<1x32x96xf32>
    %24 = vector.shape_cast %23 : vector<1x32x96xf32> to vector<32x96xf32>
    %cst_15 = arith.constant dense<0.000000e+00> : vector<32x96xf32>
    %25 = tpu.matmul %22, %24, %cst_15 {dimension_numbers = #tpu.dot_dimension_numbers<[1], [0], [0], [1], [0, 0, 1, 1], [], []>, precision = #tpu.contract_precision<fp32>} : vector<32x32xf32>, vector<32x96xf32>, vector<32x96xf32> -> vector<32x96xf32>
    %26 = vector.extract_strided_slice %25 {offsets = [0, 0], sizes = [16, 32], strides = [1, 1]} : vector<32x96xf32> to vector<16x32xf32>
    %27 = vector.extract_strided_slice %25 {offsets = [16, 32], sizes = [16, 32], strides = [1, 1]} : vector<32x96xf32> to vector<16x32xf32>
    %28 = vector.extract_strided_slice %25 {offsets = [0, 64], sizes = [16, 32], strides = [1, 1]} : vector<32x96xf32> to vector<16x32xf32>
    %29 = tpu.concatenate %26, %27, %28 in 0 : vector<16x32xf32>, vector<16x32xf32>, vector<16x32xf32> -> vector<48x32xf32>
    %cst_16 = arith.constant dense<0.000000e+00> : vector<32x32xf32>
    %30 = tpu.matmul %0, %29, %cst_16 {dimension_numbers = #tpu.dot_dimension_numbers<[1], [0], [0], [1], [0, 0, 1, 1], [], []>, precision = #tpu.contract_precision<fp32>} : vector<32x48xf32>, vector<48x32xf32>, vector<32x32xf32> -> vector<32x32xf32>
    %c1_17 = arith.constant 1 : index
    %c0_18 = arith.constant 0 : index
    %c0_19 = arith.constant 0 : index
    %31 = vector.load %arg3[%c1_17, %c0_18, %c0_19] : memref<4x32x32xf32, #tpu.memory_space<vmem>>, vector<1x32x32xf32>
    %32 = vector.shape_cast %31 : vector<1x32x32xf32> to vector<32x32xf32>
    %33 = arith.addf %30, %32 : vector<32x32xf32>
    %cst_20 = arith.constant 0.000000e+00 : f32
    %34 = vector.broadcast %cst_20 : f32 to vector<32x32xf32>
    %35 = arith.maximumf %33, %34 : vector<32x32xf32>
    %36 = arith.mulf %35, %35 : vector<32x32xf32>
    %cst_21 = arith.constant dense<0.000000e+00> : vector<32xf32>
    %37 = vector.multi_reduction <add>, %36, %cst_21 [1] : vector<32x32xf32> to vector<32xf32>
    %38 = vector.shape_cast %37 : vector<32xf32> to vector<32x1xf32>
    %cst_22 = arith.constant 1.000000e-24 : f32
    %39 = vector.broadcast %cst_22 : f32 to vector<32x1xf32>
    %40 = arith.maximumf %38, %39 : vector<32x1xf32>
    %41 = math.rsqrt %40 : vector<32x1xf32>
    %42 = vector.broadcast %41 : vector<32x1xf32> to vector<32x32xf32>
    %43 = arith.mulf %35, %42 : vector<32x32xf32>
    %44 = arith.addf %43, %1 : vector<32x32xf32>
    %cst_23 = arith.constant 0.000000e+00 : f32
    %45 = vector.broadcast %cst_23 : f32 to vector<32x32xf32>
    %46 = arith.maximumf %44, %45 : vector<32x32xf32>
    %c2 = arith.constant 2 : index
    %c0_24 = arith.constant 0 : index
    %c0_25 = arith.constant 0 : index
    %47 = vector.load %arg2[%c2, %c0_24, %c0_25] : memref<4x32x96xf32, #tpu.memory_space<vmem>>, vector<1x32x96xf32>
    %48 = vector.shape_cast %47 : vector<1x32x96xf32> to vector<32x96xf32>
    %cst_26 = arith.constant dense<0.000000e+00> : vector<32x96xf32>
    %49 = tpu.matmul %46, %48, %cst_26 {dimension_numbers = #tpu.dot_dimension_numbers<[1], [0], [0], [1], [0, 0, 1, 1], [], []>, precision = #tpu.contract_precision<fp32>} : vector<32x32xf32>, vector<32x96xf32>, vector<32x96xf32> -> vector<32x96xf32>
    %50 = vector.extract_strided_slice %49 {offsets = [0, 0], sizes = [16, 32], strides = [1, 1]} : vector<32x96xf32> to vector<16x32xf32>
    %51 = vector.extract_strided_slice %49 {offsets = [16, 32], sizes = [16, 32], strides = [1, 1]} : vector<32x96xf32> to vector<16x32xf32>
    %52 = vector.extract_strided_slice %49 {offsets = [0, 64], sizes = [16, 32], strides = [1, 1]} : vector<32x96xf32> to vector<16x32xf32>
    %53 = tpu.concatenate %50, %51, %52 in 0 : vector<16x32xf32>, vector<16x32xf32>, vector<16x32xf32> -> vector<48x32xf32>
    %cst_27 = arith.constant dense<0.000000e+00> : vector<32x32xf32>
    %54 = tpu.matmul %0, %53, %cst_27 {dimension_numbers = #tpu.dot_dimension_numbers<[1], [0], [0], [1], [0, 0, 1, 1], [], []>, precision = #tpu.contract_precision<fp32>} : vector<32x48xf32>, vector<48x32xf32>, vector<32x32xf32> -> vector<32x32xf32>
    %c2_28 = arith.constant 2 : index
    %c0_29 = arith.constant 0 : index
    %c0_30 = arith.constant 0 : index
    %55 = vector.load %arg3[%c2_28, %c0_29, %c0_30] : memref<4x32x32xf32, #tpu.memory_space<vmem>>, vector<1x32x32xf32>
    %56 = vector.shape_cast %55 : vector<1x32x32xf32> to vector<32x32xf32>
    %57 = arith.addf %54, %56 : vector<32x32xf32>
    %cst_31 = arith.constant 0.000000e+00 : f32
    %58 = vector.broadcast %cst_31 : f32 to vector<32x32xf32>
    %59 = arith.maximumf %57, %58 : vector<32x32xf32>
    %60 = arith.mulf %59, %59 : vector<32x32xf32>
    %cst_32 = arith.constant dense<0.000000e+00> : vector<32xf32>
    %61 = vector.multi_reduction <add>, %60, %cst_32 [1] : vector<32x32xf32> to vector<32xf32>
    %62 = vector.shape_cast %61 : vector<32xf32> to vector<32x1xf32>
    %cst_33 = arith.constant 1.000000e-24 : f32
    %63 = vector.broadcast %cst_33 : f32 to vector<32x1xf32>
    %64 = arith.maximumf %62, %63 : vector<32x1xf32>
    %65 = math.rsqrt %64 : vector<32x1xf32>
    %66 = vector.broadcast %65 : vector<32x1xf32> to vector<32x32xf32>
    %67 = arith.mulf %59, %66 : vector<32x32xf32>
    %c3 = arith.constant 3 : index
    %c0_34 = arith.constant 0 : index
    %c0_35 = arith.constant 0 : index
    %68 = vector.load %arg2[%c3, %c0_34, %c0_35] : memref<4x32x96xf32, #tpu.memory_space<vmem>>, vector<1x32x96xf32>
    %69 = vector.shape_cast %68 : vector<1x32x96xf32> to vector<32x96xf32>
    %cst_36 = arith.constant dense<0.000000e+00> : vector<32x96xf32>
    %70 = tpu.matmul %67, %69, %cst_36 {dimension_numbers = #tpu.dot_dimension_numbers<[1], [0], [0], [1], [0, 0, 1, 1], [], []>, precision = #tpu.contract_precision<fp32>} : vector<32x32xf32>, vector<32x96xf32>, vector<32x96xf32> -> vector<32x96xf32>
    %71 = vector.extract_strided_slice %70 {offsets = [0, 0], sizes = [16, 32], strides = [1, 1]} : vector<32x96xf32> to vector<16x32xf32>
    %72 = vector.extract_strided_slice %70 {offsets = [16, 32], sizes = [16, 32], strides = [1, 1]} : vector<32x96xf32> to vector<16x32xf32>
    %73 = vector.extract_strided_slice %70 {offsets = [0, 64], sizes = [16, 32], strides = [1, 1]} : vector<32x96xf32> to vector<16x32xf32>
    %74 = tpu.concatenate %71, %72, %73 in 0 : vector<16x32xf32>, vector<16x32xf32>, vector<16x32xf32> -> vector<48x32xf32>
    %cst_37 = arith.constant dense<0.000000e+00> : vector<32x32xf32>
    %75 = tpu.matmul %0, %74, %cst_37 {dimension_numbers = #tpu.dot_dimension_numbers<[1], [0], [0], [1], [0, 0, 1, 1], [], []>, precision = #tpu.contract_precision<fp32>} : vector<32x48xf32>, vector<48x32xf32>, vector<32x32xf32> -> vector<32x32xf32>
    %c3_38 = arith.constant 3 : index
    %c0_39 = arith.constant 0 : index
    %c0_40 = arith.constant 0 : index
    %76 = vector.load %arg3[%c3_38, %c0_39, %c0_40] : memref<4x32x32xf32, #tpu.memory_space<vmem>>, vector<1x32x32xf32>
    %77 = vector.shape_cast %76 : vector<1x32x32xf32> to vector<32x32xf32>
    %78 = arith.addf %75, %77 : vector<32x32xf32>
    %cst_41 = arith.constant 0.000000e+00 : f32
    %79 = vector.broadcast %cst_41 : f32 to vector<32x32xf32>
    %80 = arith.maximumf %78, %79 : vector<32x32xf32>
    %81 = arith.mulf %80, %80 : vector<32x32xf32>
    %cst_42 = arith.constant dense<0.000000e+00> : vector<32xf32>
    %82 = vector.multi_reduction <add>, %81, %cst_42 [1] : vector<32x32xf32> to vector<32xf32>
    %83 = vector.shape_cast %82 : vector<32xf32> to vector<32x1xf32>
    %cst_43 = arith.constant 1.000000e-24 : f32
    %84 = vector.broadcast %cst_43 : f32 to vector<32x1xf32>
    %85 = arith.maximumf %83, %84 : vector<32x1xf32>
    %86 = math.rsqrt %85 : vector<32x1xf32>
    %87 = vector.broadcast %86 : vector<32x1xf32> to vector<32x32xf32>
    %88 = arith.mulf %80, %87 : vector<32x32xf32>
    %89 = arith.addf %88, %46 : vector<32x32xf32>
    %cst_44 = arith.constant 0.000000e+00 : f32
    %90 = vector.broadcast %cst_44 : f32 to vector<32x32xf32>
    %91 = arith.maximumf %89, %90 : vector<32x32xf32>
    %92 = arith.mulf %91, %91 : vector<32x32xf32>
    %cst_45 = arith.constant dense<0.000000e+00> : vector<32xf32>
    %93 = vector.multi_reduction <add>, %92, %cst_45 [1] : vector<32x32xf32> to vector<32xf32>
    %94 = vector.shape_cast %93 : vector<32xf32> to vector<32x1xf32>
    %cst_46 = arith.constant 1.000000e-24 : f32
    %95 = vector.broadcast %cst_46 : f32 to vector<32x1xf32>
    %96 = arith.maximumf %94, %95 : vector<32x1xf32>
    %97 = math.rsqrt %96 : vector<32x1xf32>
    %98 = vector.broadcast %97 : vector<32x1xf32> to vector<32x32xf32>
    %99 = arith.mulf %91, %98 : vector<32x32xf32>
    %c0_47 = arith.constant 0 : index
    %c0_48 = arith.constant 0 : index
    %100 = vector.load %arg4[%c0_47, %c0_48] : memref<32x32xf32, #tpu.memory_space<vmem>>, vector<32x32xf32>
    tpu.vector_store %arg4[%c0_47, %c0_48], %99 {strides = array<i32>} : memref<32x32xf32, #tpu.memory_space<vmem>>, vector<32x32xf32>,
    return
  }
}

</mosaic_0001>

<llo_original>
// kernel: hgnn_skip_stage.1
$region0: #{hgnn_skip_stage.1}
  #allocation0 [shape = 'u32[]', space=smem, size = 0x4, offset = 0x4, fixed_abs, tag = 'smem constant byte address 0x4 - core index']
  #allocation1 [shape = 'u32[144,128]{1,0:T(1,128)}', space=vmem, size = 0x12000, scoped, tag = 'internal scratch']
  %s0 = inlined_call_operand.hbm [shape: f32[32,48], index: 0, kind: input, shape index: {}]
  %s1 = inlined_call_operand.hbm [shape: f32[32,32], index: 1, kind: input, shape index: {}]
  %s2 = inlined_call_operand.hbm [shape: f32[4,32,96], index: 2, kind: input, shape index: {}]
  %s3 = inlined_call_operand.hbm [shape: f32[4,32,32], index: 3, kind: input, shape index: {}]
  %s4 = inlined_call_operand.vmem [shape: f32[32,32], index: 4, kind: output, shape index: {}]
  %s5 = sld [smem:[#allocation0]]
  $region42: #{hgnn_skip_stage.1} parent=0
    _
  %s7 = ssub.s32 1, %s5
  %s8 = scalar_select 0, %s7, %s5
  $region1: #{hgnn_skip_stage.1} parent=0
    #allocation2 [shape = 'u8[16384]{0}', space=vmem, size = 0x4000, scoped, tag = 'input window, operand 0, single buffered']
    #allocation3 [shape = 's32[1]{0}', space=sflag, size = 0x4, scoped, tag = 'scoped memory for hgnn_skip_stage.1']
    #allocation4 [shape = 'u8[16384]{0}', space=vmem, size = 0x4000, scoped, tag = 'input window, operand 1, single buffered']
    #allocation5 [shape = 's32[1]{0}', space=sflag, size = 0x4, scoped, tag = 'scoped memory for hgnn_skip_stage.1']
    #allocation6 [shape = 'u8[65536]{0}', space=vmem, size = 0x10000, scoped, tag = 'input window, operand 2, single buffered']
    #allocation7 [shape = 'u8[65536]{0}', space=vmem, size = 0x10000, scoped, tag = 'input window, operand 3, single buffered']
    #allocation8 [shape = 's32[1]{0}', space=sflag, size = 0x4, scoped, tag = 'scoped memory for hgnn_skip_stage.1']
    %9 = vsyncpa [#allocation3], 0
    %10 = vsyncpa [#allocation5], 0
    %11 = vsyncpa [#allocation8], 0
    // Predicated region
    $region2: #{hgnn_skip_stage.1} parent=1 // pred_check
      _
    $region3: #{hgnn_skip_stage.1} parent=1 // pred_check_branch
      %13 = sbr.rel (0) target = $region5
    $region4: #{hgnn_skip_stage.1} parent=1 // pred_region
      %s15 = ssub.s32 512, 512
      %16 = vsyncadd [#allocation3], %s15
      %s17 = sshll.u32 [#allocation2], 4
      %s18 = int_to_ptr.vmem [resolvable:$true] %s17
      %23 = dma.hbm_to_vmem [thread:$0]  %s0, 512, %s18, [#allocation3], 128, 128, 8
    $region5: #{hgnn_skip_stage.1} parent=1 // pred_fallthru
      _
    // Predicated region
    $region6: #{hgnn_skip_stage.1} parent=1 // pred_check
      _
    $region7: #{hgnn_skip_stage.1} parent=1 // pred_check_branch
      %25 = sbr.rel (0) target = $region9
    $region8: #{hgnn_skip_stage.1} parent=1 // pred_region
      %s27 = ssub.s32 512, 512
      %28 = vsyncadd [#allocation5], %s27
      %s29 = sshll.u32 [#allocation4], 4
      %s30 = int_to_ptr.vmem [resolvable:$true] %s29
      %35 = dma.hbm_to_vmem [thread:$0]  %s1, 512, %s30, [#allocation5], 128, 128, 8
    $region9: #{hgnn_skip_stage.1} parent=1 // pred_fallthru
      _
    // Predicated region
    $region10: #{hgnn_skip_stage.1} parent=1 // pred_check
      _
    $region11: #{hgnn_skip_stage.1} parent=1 // pred_check_branch
      %37 = sbr.rel (0) target = $region13
    $region12: #{hgnn_skip_stage.1} parent=1 // pred_region
      %s39 = ssub.s32 2048, 2048
      %40 = vsyncadd [#allocation5], %s39
      %s41 = sshll.u32 [#allocation6], 4
      %s42 = int_to_ptr.vmem [resolvable:$true] %s41
      %47 = dma.hbm_to_vmem [thread:$0]  %s2, 2048, %s42, [#allocation5], 128, 128, 8
    $region13: #{hgnn_skip_stage.1} parent=1 // pred_fallthru
      _
    // Predicated region
    $region14: #{hgnn_skip_stage.1} parent=1 // pred_check
      _
    $region15: #{hgnn_skip_stage.1} parent=1 // pred_check_branch
      %49 = sbr.rel (0) target = $region17
    $region16: #{hgnn_skip_stage.1} parent=1 // pred_region
      %s51 = ssub.s32 2048, 2048
      %52 = vsyncadd [#allocation8], %s51
      %s53 = sshll.u32 [#allocation7], 4
      %s54 = int_to_ptr.vmem [resolvable:$true] %s53
      %59 = dma.hbm_to_vmem [thread:$0]  %s3, 2048, %s54, [#allocation8], 128, 128, 8
    $region17: #{hgnn_skip_stage.1} parent=1 // pred_fallthru
      _
    // Predicated region
    $region18: #{hgnn_skip_stage.1} parent=1 // pred_check
      _
    $region19: #{hgnn_skip_stage.1} parent=1 // pred_check_branch
      %61 = sbr.rel (0) target = $region21
    $region20: #{hgnn_skip_stage.1} parent=1 // pred_region
      %62 = dma.done [#allocation3], 512
    $region21: #{hgnn_skip_stage.1} parent=1 // pred_fallthru
      _
    // Predicated region
    $region22: #{hgnn_skip_stage.1} parent=1 // pred_check
      _
    $region23: #{hgnn_skip_stage.1} parent=1 // pred_check_branch
      %64 = sbr.rel (0) target = $region25
    $region24: #{hgnn_skip_stage.1} parent=1 // pred_region
      %65 = dma.done [#allocation5], 512
    $region25: #{hgnn_skip_stage.1} parent=1 // pred_fallthru
      _
    // Predicated region
    $region26: #{hgnn_skip_stage.1} parent=1 // pred_check
      _
    $region27: #{hgnn_skip_stage.1} parent=1 // pred_check_branch
      %67 = sbr.rel (0) target = $region29
    $region28: #{hgnn_skip_stage.1} parent=1 // pred_region
      %68 = dma.done [#allocation5], 2048
    $region29: #{hgnn_skip_stage.1} parent=1 // pred_fallthru
      _
    // Predicated region
    $region30: #{hgnn_skip_stage.1} parent=1 // pred_check
      _
    $region31: #{hgnn_skip_stage.1} parent=1 // pred_check_branch
      %70 = sbr.rel (0) target = $region33
    $region32: #{hgnn_skip_stage.1} parent=1 // pred_region
      %71 = dma.done [#allocation8], 2048
    $region33: #{hgnn_skip_stage.1} parent=1 // pred_fallthru
      _
    %v72 = vld [vmem:[#allocation2] sm:$0xff]
    %v73 = vld [vmem:[#allocation2 + $0x8] sm:$0xff]
    %v74 = vld [vmem:[#allocation2 + $0x10] sm:$0xff]
    %v75 = vld [vmem:[#allocation2 + $0x18] sm:$0xff]
    %v76 = vld [vmem:[#allocation4] sm:$0xff]
    %v77 = vld [vmem:[#allocation4 + $0x8] sm:$0xff]
    %v78 = vld [vmem:[#allocation4 + $0x10] sm:$0xff]
    %v79 = vld [vmem:[#allocation4 + $0x18] sm:$0xff]
    %v80 = vld [vmem:[#allocation6] sm:$0xff]
    %v81 = vld [vmem:[#allocation6 + $0x8] sm:$0xff]
    %v82 = vld [vmem:[#allocation6 + $0x10] sm:$0xff]
    %v83 = vld [vmem:[#allocation6 + $0x18] sm:$0xff]
    %vm84 = vcmask 261120
    %v86 = vsel %vm84, %v76, 0
    %v89 = vsel %vm84, %v77, 0
    %v92 = vsel %vm84, %v78, 0
    %v95 = vsel %vm84, %v79, 0
    %97 = vmatprep.subr.mxu0 0.0
    %v98 = vand.u32 %v80, 4294901760
    %99 = vmatpush1.msra.mxu0 %v98
    %100 = vmatprep.subr.mxu0 0.0
    %v101 = vand.u32 %v81, 4294901760
    %102 = vmatpush1.msra.mxu0 %v101
    %103 = vmatprep.subr.mxu0 0.0
    %v104 = vand.u32 %v82, 4294901760
    %105 = vmatpush1.msra.mxu0 %v104
    %106 = vmatprep.subr.mxu0 0.0
    %v107 = vand.u32 %v83, 4294901760
    %108 = vmatpush1.msra.mxu0 %v107
    %109 = vmatprep.subr.mxu0 0.0
    %110 = vmatpush1.msra.mxu0 0.0
    %111 = vmatprep.subr.mxu0 0.0
    %112 = vmatpush1.msra.mxu0 0.0
    %113 = vmatprep.subr.mxu0 0.0
    %114 = vmatpush1.msra.mxu0 0.0
    %115 = vmatprep.subr.mxu0 0.0
    %116 = vmatpush1.msra.mxu0 0.0
    %117 = vmatprep.subr.mxu0 0.0
    %118 = vmatpush1.msra.mxu0 0.0
    %119 = vmatprep.subr.mxu0 0.0
    %120 = vmatpush1.msra.mxu0 0.0
    %121 = vmatprep.subr.mxu0 0.0
    %122 = vmatpush1.msra.mxu0 0.0
    %123 = vmatprep.subr.mxu0 0.0
    %124 = vmatpush1.msra.mxu0 0.0
    %125 = vmatprep.subr.mxu0 0.0
    %126 = vmatpush1.msra.mxu0 0.0
    %127 = vmatprep.subr.mxu0 0.0
    %128 = vmatpush1.msra.mxu0 0.0
    %129 = vmatprep.subr.mxu0 0.0
    %130 = vmatpush1.msra.mxu0 0.0
    %131 = vmatprep.subr.mxu0 0.0
    %132 = vmatpush1.msra.mxu0 0.0
    %133 = vmatprep.subr.mxu0 0.0
    %134 = vmatpush1.msra.mxu0 0.0
    %135 = vmatprep.subr.mxu0 0.0
    %136 = vmatpush1.msra.mxu0 0.0
    %137 = vmatprep.subr.mxu0 0.0
    %138 = vmatpush1.msra.mxu0 0.0
    %139 = vmatprep.subr.mxu0 0.0
    %140 = vmatpush1.msra.mxu0 0.0
    %141 = vmatprep.subr.mxu0 0.0
    %142 = vmatpush1.msra.mxu0 0.0
    %143 = vmatprep.subr.mxu0 0.0
    %144 = vmatpush1.msra.mxu0 0.0
    %145 = vmatprep.subr.mxu0 0.0
    %146 = vmatpush1.msra.mxu0 0.0
    %147 = vmatprep.subr.mxu0 0.0
    %148 = vmatpush1.msra.mxu0 0.0
    %149 = vmatprep.subr.mxu0 0.0
    %150 = vmatpush1.msra.mxu0 0.0
    %151 = vmatprep.subr.mxu0 0.0
    %152 = vmatpush1.msra.mxu0 0.0
    %153 = vmatprep.subr.mxu0 0.0
    %154 = vmatpush1.msra.mxu0 0.0
    %155 = vmatprep.subr.mxu0 0.0
    %156 = vmatpush1.msra.mxu0 0.0
    %157 = vmatprep.subr.mxu0 0.0
    %158 = vmatpush1.msra.mxu0 0.0
    %159 = vmatprep.subr.mxu0 0.0
    %160 = vmatpush1.msra.mxu0 0.0
    %161 = vmatprep.subr.mxu0 0.0
    %162 = vmatpush1.msra.mxu0 0.0
    %163 = vmatprep.subr.mxu0 0.0
    %164 = vmatpush1.msra.mxu0 0.0
    %165 = vmatprep.mubr.f32.mxu0 0.0
    %v166 = vand.u32 %v86, 4294901760
    %v167 = vsub.f32 %v86, %v166
    %v168 = vand.u32 %v167, 4294901760
    %v169 = vsub.f32 %v167, %v168
    %v170 = vand.u32 %v169, 4294901760
    %171 = vmatmul.mubr.f32.gmra.mrb[0].mxu0 %v170
    %v172 = vpop.f32.mrb[0].mxu0
    %v173 = vadd.f32 0.0, %v172
    %v174 = vpop.f32.mrb[0].mxu0
    %175 = vmatprep.mubr.f32.mxu0 0.0
    %v176 = vand.u32 %v89, 4294901760
    %v177 = vsub.f32 %v89, %v176
    %v178 = vand.u32 %v177, 4294901760
    %v179 = vsub.f32 %v177, %v178
    %v180 = vand.u32 %v179, 4294901760
    %181 = vmatmul.mubr.f32.gmra.mrb[0].mxu0 %v180
    %v182 = vpop.f32.mrb[0].mxu0
    %v183 = vadd.f32 0.0, %v182
    %v184 = vpop.f32.mrb[0].mxu0
    %185 = vmatprep.mubr.f32.mxu0 0.0
    %v186 = vand.u32 %v92, 4294901760
    %v187 = vsub.f32 %v92, %v186
    %v188 = vand.u32 %v187, 4294901760
    %v189 = vsub.f32 %v187, %v188
    %v190 = vand.u32 %v189, 4294901760
    %191 = vmatmul.mubr.f32.gmra.mrb[0].mxu0 %v190
    %v192 = vpop.f32.mrb[0].mxu0
    %v193 = vadd.f32 0.0, %v192
    %v194 = vpop.f32.mrb[0].mxu0
    %195 = vmatprep.mubr.f32.mxu0 0.0
    %v196 = vand.u32 %v95, 4294901760
    %v197 = vsub.f32 %v95, %v196
    %v198 = vand.u32 %v197, 4294901760
    %v199 = vsub.f32 %v197, %v198
    %v200 = vand.u32 %v199, 4294901760
    %201 = vmatmul.mubr.f32.gmra.mrb[0].mxu0 %v200
    %v202 = vpop.f32.mrb[0].mxu0
    %v203 = vadd.f32 0.0, %v202
    %v204 = vpop.f32.mrb[0].mxu0
    %205 = vdwg.mxu0
    %206 = vmatprep.subr.mxu0 0.0
    %v207 = vand.u32 %v80, 4294901760
    %v208 = vsub.f32 %v80, %v207
    %v209 = vand.u32 %v208, 4294901760
    %v210 = vsub.f32 %v208, %v209
    %v211 = vand.u32 %v210, 4294901760
    %212 = vmatpush1.msra.mxu0 %v211
    %213 = vmatprep.subr.mxu0 0.0
    %v214 = vand.u32 %v81, 4294901760
    %v215 = vsub.f32 %v81, %v214
    %v216 = vand.u32 %v215, 4294901760
    %v217 = vsub.f32 %v215, %v216
    %v218 = vand.u32 %v217, 4294901760
    %219 = vmatpush1.msra.mxu0 %v218
    %220 = vmatprep.subr.mxu0 0.0
    %v221 = vand.u32 %v82, 4294901760
    %v222 = vsub.f32 %v82, %v221
    %v223 = vand.u32 %v222, 4294901760
    %v224 = vsub.f32 %v222, %v223
    %v225 = vand.u32 %v224, 4294901760
    %226 = vmatpush1.msra.mxu0 %v225
    %227 = vmatprep.subr.mxu0 0.0
    %v228 = vand.u32 %v83, 4294901760
    %v229 = vsub.f32 %v83, %v228
    %v230 = vand.u32 %v229, 4294901760
    %v231 = vsub.f32 %v229, %v230
    %v232 = vand.u32 %v231, 4294901760
    %233 = vmatpush1.msra.mxu0 %v232
    %234 = vmatprep.subr.mxu0 0.0
    %235 = vmatpush1.msra.mxu0 0.0
    %236 = vmatprep.subr.mxu0 0.0
    %237 = vmatpush1.msra.mxu0 0.0
    %238 = vmatprep.subr.mxu0 0.0
    %239 = vmatpush1.msra.mxu0 0.0
    %240 = vmatprep.subr.mxu0 0.0
    %241 = vmatpush1.msra.mxu0 0.0
    %242 = vmatprep.subr.mxu0 0.0
    %243 = vmatpush1.msra.mxu0 0.0
    %244 = vmatprep.subr.mxu0 0.0
    %245 = vmatpush1.msra.mxu0 0.0
    %246 = vmatprep.subr.mxu0 0.0
    %247 = vmatpush1.msra.mxu0 0.0
    %248 = vmatprep.subr.mxu0 0.0
    %249 = vmatpush1.msra.mxu0 0.0
    %250 = vmatprep.subr.mxu0 0.0
    %251 = vmatpush1.msra.mxu0 0.0
    %252 = vmatprep.subr.mxu0 0.0
    %253 = vmatpush1.msra.mxu0 0.0
    %254 = vmatprep.subr.mxu0 0.0
    %255 = vmatpush1.msra.mxu0 0.0
    %256 = vmatprep.subr.mxu0 0.0
    %257 = vmatpush1.msra.mxu0 0.0
    %258 = vmatprep.subr.mxu0 0.0
    %259 = vmatpush1.msra.mxu0 0.0
    %260 = vmatprep.subr.mxu0 0.0
    %261 = vmatpush1.msra.mxu0 0.0
    %262 = vmatprep.subr.mxu0 0.0
    %263 = vmatpush1.msra.mxu0 0.0
    %264 = vmatprep.subr.mxu0 0.0
    %265 = vmatpush1.msra.mxu0 0.0
    %266 = vmatprep.subr.mxu0 0.0
    %267 = vmatpush1.msra.mxu0 0.0
    %268 = vmatprep.subr.mxu0 0.0
    %269 = vmatpush1.msra.mxu0 0.0
    %270 = vmatprep.subr.mxu0 0.0
    %271 = vmatpush1.msra.mxu0 0.0
    %272 = vmatprep.subr.mxu0 0.0
    %273 = vmatpush1.msra.mxu0 0.0
    %274 = vmatprep.subr.mxu0 0.0
    %275 = vmatpush1.msra.mxu0 0.0
    %276 = vmatprep.subr.mxu0 0.0
    %277 = vmatpush1.msra.mxu0 0.0
    %278 = vmatprep.subr.mxu0 0.0
    %279 = vmatpush1.msra.mxu0 0.0
    %280 = vmatprep.subr.mxu0 0.0
    %281 = vmatpush1.msra.mxu0 0.0
    %282 = vmatprep.subr.mxu0 0.0
    %283 = vmatpush1.msra.mxu0 0.0
    %284 = vmatprep.subr.mxu0 0.0
    %285 = vmatpush1.msra.mxu0 0.0
    %286 = vmatprep.subr.mxu0 0.0
    %287 = vmatpush1.msra.mxu0 0.0
    %288 = vmatprep.subr.mxu0 0.0
    %289 = vmatpush1.msra.mxu0 0.0
    %290 = vmatprep.mubr.f32.mxu0 0.0
    %v291 = vand.u32 %v86, 4294901760
    %292 = vmatmul.mubr.f32.gmra.mrb[0].mxu0 %v291
    %v293 = vpop.f32.mrb[0].mxu0
    %v294 = vadd.f32 %v173, %v293
    %v295 = vpop.f32.mrb[0].mxu0
    %296 = vmatprep.mubr.f32.mxu0 0.0
    %v297 = vand.u32 %v89, 4294901760
    %298 = vmatmul.mubr.f32.gmra.mrb[0].mxu0 %v297
    %v299 = vpop.f32.mrb[0].mxu0
    %v300 = vadd.f32 %v183, %v299
    %v301 = vpop.f32.mrb[0].mxu0
    %302 = vmatprep.mubr.f32.mxu0 0.0
    %v303 = vand.u32 %v92, 4294901760
    %304 = vmatmul.mubr.f32.gmra.mrb[0].mxu0 %v303
    %v305 = vpop.f32.mrb[0].mxu0
    %v306 = vadd.f32 %v193, %v305
    %v307 = vpop.f32.mrb[0].mxu0
    %308 = vmatprep.mubr.f32.mxu0 0.0
    %v309 = vand.u32 %v95, 4294901760
    %310 = vmatmul.mubr.f32.gmra.mrb[0].mxu0 %v309
    %v311 = vpop.f32.mrb[0].mxu0
    %v312 = vadd.f32 %v203, %v311
    %v313 = vpop.f32.mrb[0].mxu0
    %314 = vdwg.mxu0
    %315 = vmatprep.subr.mxu0 0.0
    %v316 = vand.u32 %v80, 4294901760
    %v317 = vsub.f32 %v80, %v316
    %318 = vmatpush1.msra.mxu0 %v317
    %319 = vmatprep.subr.mxu0 0.0
    %v320 = vand.u32 %v81, 4294901760
    %v321 = vsub.f32 %v81, %v320
    %322 = vmatpush1.msra.mxu0 %v321
    %323 = vmatprep.subr.mxu0 0.0
    %v324 = vand.u32 %v82, 4294901760
    %v325 = vsub.f32 %v82, %v324
    %326 = vmatpush1.msra.mxu0 %v325
    %327 = vmatprep.subr.mxu0 0.0
    %v328 = vand.u32 %v83, 4294901760
    %v329 = vsub.f32 %v83, %v328
    %330 = vmatpush1.msra.mxu0 %v329
    %331 = vmatprep.subr.mxu0 0.0
    %332 = vmatpush1.msra.mxu0 0.0
    %333 = vmatprep.subr.mxu0 0.0
    %334 = vmatpush1.msra.mxu0 0.0
    %335 = vmatprep.subr.mxu0 0.0
    %336 = vmatpush1.msra.mxu0 0.0
    %337 = vmatprep.subr.mxu0 0.0
    %338 = vmatpush1.msra.mxu0 0.0
    %339 = vmatprep.subr.mxu0 0.0
    %340 = vmatpush1.msra.mxu0 0.0
    %341 = vmatprep.subr.mxu0 0.0
    %342 = vmatpush1.msra.mxu0 0.0
    %343 = vmatprep.subr.mxu0 0.0
    %344 = vmatpush1.msra.mxu0 0.0
    %345 = vmatprep.subr.mxu0 0.0
    %346 = vmatpush1.msra.mxu0 0.0
    %347 = vmatprep.subr.mxu0 0.0
    %348 = vmatpush1.msra.mxu0 0.0
    %349 = vmatprep.subr.mxu0 0.0
    %350 = vmatpush1.msra.mxu0 0.0
    %351 = vmatprep.subr.mxu0 0.0
    %352 = vmatpush1.msra.mxu0 0.0
    %353 = vmatprep.subr.mxu0 0.0
    %354 = vmatpush1.msra.mxu0 0.0
    %355 = vmatprep.subr.mxu0 0.0
    %356 = vmatpush1.msra.mxu0 0.0
    %357 = vmatprep.subr.mxu0 0.0
    %358 = vmatpush1.msra.mxu0 0.0
    %359 = vmatprep.subr.mxu0 0.0
    %360 = vmatpush1.msra.mxu0 0.0
    %361 = vmatprep.subr.mxu0 0.0
    %362 = vmatpush1.msra.mxu0 0.0
    %363 = vmatprep.subr.mxu0 0.0
    %364 = vmatpush1.msra.mxu0 0.0
    %365 = vmatprep.subr.mxu0 0.0
    %366 = vmatpush1.msra.mxu0 0.0
    %367 = vmatprep.subr.mxu0 0.0
    %368 = vmatpush1.msra.mxu0 0.0
    %369 = vmatprep.subr.mxu0 0.0
    %370 = vmatpush1.msra.mxu0 0.0
    %371 = vmatprep.subr.mxu0 0.0
    %372 = vmatpush1.msra.mxu0 0.0
    %373 = vmatprep.subr.mxu0 0.0
    %374 = vmatpush1.msra.mxu0 0.0
    %375 = vmatprep.subr.mxu0 0.0
    %376 = vmatpush1.msra.mxu0 0.0
    %377 = vmatprep.subr.mxu0 0.0
    %378 = vmatpush1.msra.mxu0 0.0
    %379 = vmatprep.subr.mxu0 0.0
    %380 = vmatpush1.msra.mxu0 0.0
    %381 = vmatprep.subr.mxu0 0.0
    %382 = vmatpush1.msra.mxu0 0.0
    %383 = vmatprep.subr.mxu0 0.0
    %384 = vmatpush1.msra.mxu0 0.0
    %385 = vmatprep.subr.mxu0 0.0
    %386 = vmatpush1.msra.mxu0 0.0
    %387 = vmatprep.mubr.f32.mxu0 0.0
    %v388 = vand.u32 %v86, 4294901760
    %v389 = vsub.f32 %v86, %v388
    %390 = vmatmul.mubr.f32.gmra.mrb[0].mxu0 %v389
    %v391 = vpop.f32.mrb[0].mxu0
    %v392 = vadd.f32 %v294, %v391
    %v393 = vpop.f32.mrb[0].mxu0
    %394 = vmatprep.mubr.f32.mxu0 0.0
    %v395 = vand.u32 %v89, 4294901760
    %v396 = vsub.f32 %v89, %v395
    %397 = vmatmul.mubr.f32.gmra.mrb[0].mxu0 %v396
    %v398 = vpop.f32.mrb[0].mxu0
    %v399 = vadd.f32 %v300, %v398
    %v400 = vpop.f32.mrb[0].mxu0
    %401 = vmatprep.mubr.f32.mxu0 0.0
    %v402 = vand.u32 %v92, 4294901760
    %v403 = vsub.f32 %v92, %v402
    %404 = vmatmul.mubr.f32.gmra.mrb[0].mxu0 %v403
    %v405 = vpop.f32.mrb[0].mxu0
    %v406 = vadd.f32 %v306, %v405
    %v407 = vpop.f32.mrb[0].mxu0
    %408 = vmatprep.mubr.f32.mxu0 0.0
    %v409 = vand.u32 %v95, 4294901760
    %v410 = vsub.f32 %v95, %v409
    %411 = vmatmul.mubr.f32.gmra.mrb[0].mxu0 %v410
    %v412 = vpop.f32.mrb[0].mxu0
    %v413 = vadd.f32 %v312, %v412
    %v414 = vpop.f32.mrb[0].mxu0
    %415 = vdwg.mxu0
    %416 = vmatprep.subr.mxu0 0.0
    %v417 = vand.u32 %v80, 4294901760
    %418 = vmatpush1.msra.mxu0 %v417
    %419 = vmatprep.subr.mxu0 0.0
    %v420 = vand.u32 %v81, 4294901760
    %421 = vmatpush1.msra.mxu0 %v420
    %422 = vmatprep.subr.mxu0 0.0
    %v423 = vand.u32 %v82, 4294901760
    %424 = vmatpush1.msra.mxu0 %v423
    %425 = vmatprep.subr.mxu0 0.0
    %v426 = vand.u32 %v83, 4294901760
    %427 = vmatpush1.msra.mxu0 %v426
    %428 = vmatprep.subr.mxu0 0.0
    %429 = vmatpush1.msra.mxu0 0.0
    %430 = vmatprep.subr.mxu0 0.0
    %431 = vmatpush1.msra.mxu0 0.0
    %432 = vmatprep.subr.mxu0 0.0
    %433 = vmatpush1.msra.mxu0 0.0
    %434 = vmatprep.subr.mxu0 0.0
    %435 = vmatpush1.msra.mxu0 0.0
    %436 = vmatprep.subr.mxu0 0.0
    %437 = vmatpush1.msra.mxu0 0.0
    %438 = vmatprep.subr.mxu0 0.0
    %439 = vmatpush1.msra.mxu0 0.0
    %440 = vmatprep.subr.mxu0 0.0
    %441 = vmatpush1.msra.mxu0 0.0
    %442 = vmatprep.subr.mxu0 0.0
    %443 = vmatpush1.msra.mxu0 0.0
    %444 = vmatprep.subr.mxu0 0.0
    %445 = vmatpush1.msra.mxu0 0.0
    %446 = vmatprep.subr.mxu0 0.0
    %447 = vmatpush1.msra.mxu0 0.0
    %448 = vmatprep.subr.mxu0 0.0
    %449 = vmatpush1.msra.mxu0 0.0
    %450 = vmatprep.subr.mxu0 0.0
    %451 = vmatpush1.msra.mxu0 0.0
    %452 = vmatprep.subr.mxu0 0.0
    %453 = vmatpush1.msra.mxu0 0.0
    %454 = vmatprep.subr.mxu0 0.0
    %455 = vmatpush1.msra.mxu0 0.0
    %456 = vmatprep.subr.mxu0 0.0
    %457 = vmatpush1.msra.mxu0 0.0
    %458 = vmatprep.subr.mxu0 0.0
    %459 = vmatpush1.msra.mxu0 0.0
    %460 = vmatprep.subr.mxu0 0.0
    %461 = vmatpush1.msra.mxu0 0.0
    %462 = vmatprep.subr.mxu0 0.0
    %463 = vmatpush1.msra.mxu0 0.0
    %464 = vmatprep.subr.mxu0 0.0
    %465 = vmatpush1.msra.mxu0 0.0
    %466 = vmatprep.subr.mxu0 0.0
    %467 = vmatpush1.msra.mxu0 0.0
    %468 = vmatprep.subr.mxu0 0.0
    %469 = vmatpush1.msra.mxu0 0.0
    %470 = vmatprep.subr.mxu0 0.0
    %471 = vmatpush1.msra.mxu0 0.0
    %472 = vmatprep.subr.mxu0 0.0
    %473 = vmatpush1.msra.mxu0 0.0
    %474 = vmatprep.subr.mxu0 0.0
    %475 = vmatpush1.msra.mxu0 0.0
    %476 = vmatprep.subr.mxu0 0.0
    %477 = vmatpush1.msra.mxu0 0.0
    %478 = vmatprep.subr.mxu0 0.0
    %479 = vmatpush1.msra.mxu0 0.0
    %480 = vmatprep.subr.mxu0 0.0
    %481 = vmatpush1.msra.mxu0 0.0
    %482 = vmatprep.subr.mxu0 0.0
    %483 = vmatpush1.msra.mxu0 0.0
    %484 = vmatprep.mubr.f32.mxu0 0.0
    %v485 = vand.u32 %v86, 4294901760
    %v486 = vsub.f32 %v86, %v485
    %v487 = vand.u32 %v486, 4294901760
    %488 = vmatmul.mubr.f32.gmra.mrb[0].mxu0 %v487
    %v489 = vpop.f32.mrb[0].mxu0
    %v490 = vadd.f32 %v392, %v489
    %v491 = vpop.f32.mrb[0].mxu0
    %492 = vmatprep.mubr.f32.mxu0 0.0
    %v493 = vand.u32 %v89, 4294901760
    %v494 = vsub.f32 %v89, %v493
    %v495 = vand.u32 %v494, 4294901760
    %496 = vmatmul.mubr.f32.gmra.mrb[0].mxu0 %v495
    %v497 = vpop.f32.mrb[0].mxu0
    %v498 = vadd.f32 %v399, %v497
    %v499 = vpop.f32.mrb[0].mxu0
    %500 = vmatprep.mubr.f32.mxu0 0.0
    %v501 = vand.u32 %v92, 4294901760
    %v502 = vsub.f32 %v92, %v501
    %v503 = vand.u32 %v502, 4294901760
    %504 = vmatmul.mubr.f32.gmra.mrb[0].mxu0 %v503
    %v505 = vpop.f32.mrb[0].mxu0
    %v506 = vadd.f32 %v406, %v505
    %v507 = vpop.f32.mrb[0].mxu0
    %508 = vmatprep.mubr.f32.mxu0 0.0
    %v509 = vand.u32 %v95, 4294901760
    %v510 = vsub.f32 %v95, %v509
    %v511 = vand.u32 %v510, 4294901760
    %512 = vmatmul.mubr.f32.gmra.mrb[0].mxu0 %v511
    %v513 = vpop.f32.mrb[0].mxu0
    %v514 = vadd.f32 %v413, %v513
    %v515 = vpop.f32.mrb[0].mxu0
    %516 = vdwg.mxu0
    %517 = vmatprep.subr.mxu0 0.0
    %v518 = vand.u32 %v80, 4294901760
    %v519 = vsub.f32 %v80, %v518
    %v520 = vand.u32 %v519, 4294901760
    %521 = vmatpush1.msra.mxu0 %v520
    %522 = vmatprep.subr.mxu0 0.0
    %v523 = vand.u32 %v81, 4294901760
    %v524 = vsub.f32 %v81, %v523
    %v525 = vand.u32 %v524, 4294901760
    %526 = vmatpush1.msra.mxu0 %v525
    %527 = vmatprep.subr.mxu0 0.0
    %v528 = vand.u32 %v82, 4294901760
    %v529 = vsub.f32 %v82, %v528
    %v530 = vand.u32 %v529, 4294901760
    %531 = vmatpush1.msra.mxu0 %v530
    %532 = vmatprep.subr.mxu0 0.0
    %v533 = vand.u32 %v83, 4294901760
    %v534 = vsub.f32 %v83, %v533
    %v535 = vand.u32 %v534, 4294901760
    %536 = vmatpush1.msra.mxu0 %v535
    %537 = vmatprep.subr.mxu0 0.0
    %538 = vmatpush1.msra.mxu0 0.0
    %539 = vmatprep.subr.mxu0 0.0
    %540 = vmatpush1.msra.mxu0 0.0
    %541 = vmatprep.subr.mxu0 0.0
    %542 = vmatpush1.msra.mxu0 0.0
    %543 = vmatprep.subr.mxu0 0.0
    %544 = vmatpush1.msra.mxu0 0.0
    %545 = vmatprep.subr.mxu0 0.0
    %546 = vmatpush1.msra.mxu0 0.0
    %547 = vmatprep.subr.mxu0 0.0
    %548 = vmatpush1.msra.mxu0 0.0
    %549 = vmatprep.subr.mxu0 0.0
    %550 = vmatpush1.msra.mxu0 0.0
    %551 = vmatprep.subr.mxu0 0.0
    %552 = vmatpush1.msra.mxu0 0.0
    %553 = vmatprep.subr.mxu0 0.0
    %554 = vmatpush1.msra.mxu0 0.0
    %555 = vmatprep.subr.mxu0 0.0
    %556 = vmatpush1.msra.mxu0 0.0
    %557 = vmatprep.subr.mxu0 0.0
    %558 = vmatpush1.msra.mxu0 0.0
    %559 = vmatprep.subr.mxu0 0.0
    %560 = vmatpush1.msra.mxu0 0.0
    %561 = vmatprep.subr.mxu0 0.0
    %562 = vmatpush1.msra.mxu0 0.0
    %563 = vmatprep.subr.mxu0 0.0
    %564 = vmatpush1.msra.mxu0 0.0
    %565 = vmatprep.subr.mxu0 0.0
    %566 = vmatpush1.msra.mxu0 0.0
    %567 = vmatprep.subr.mxu0 0.0
    %568 = vmatpush1.msra.mxu0 0.0
    %569 = vmatprep.subr.mxu0 0.0
    %570 = vmatpush1.msra.mxu0 0.0
    %571 = vmatprep.subr.mxu0 0.0
    %572 = vmatpush1.msra.mxu0 0.0
    %573 = vmatprep.subr.mxu0 0.0
    %574 = vmatpush1.msra.mxu0 0.0
    %575 = vmatprep.subr.mxu0 0.0
    %576 = vmatpush1.msra.mxu0 0.0
    %577 = vmatprep.subr.mxu0 0.0
    %578 = vmatpush1.msra.mxu0 0.0
    %579 = vmatprep.subr.mxu0 0.0
    %580 = vmatpush1.msra.mxu0 0.0
    %581 = vmatprep.subr.mxu0 0.0
    %582 = vmatpush1.msra.mxu0 0.0
    %583 = vmatprep.subr.mxu0 0.0
    %584 = vmatpush1.msra.mxu0 0.0
    %585 = vmatprep.subr.mxu0 0.0
    %586 = vmatpush1.msra.mxu0 0.0
    %587 = vmatprep.subr.mxu0 0.0
    %588 = vmatpush1.msra.mxu0 0.0
    %589 = vmatprep.subr.mxu0 0.0
    %590 = vmatpush1.msra.mxu0 0.0
    %591 = vmatprep.subr.mxu0 0.0
    %592 = vmatpush1.msra.mxu0 0.0
    %593 = vmatprep.mubr.f32.mxu0 0.0
    %v594 = vand.u32 %v86, 4294901760
    %595 = vmatmul.mubr.f32.gmra.mrb[0].mxu0 %v594
    %v596 = vpop.f32.mrb[0].mxu0
    %v597 = vadd.f32 %v490, %v596
    %v598 = vpop.f32.mrb[0].mxu0
    %599 = vmatprep.mubr.f32.mxu0 0.0
    %v600 = vand.u32 %v89, 4294901760
    %601 = vmatmul.mubr.f32.gmra.mrb[0].mxu0 %v600
    %v602 = vpop.f32.mrb[0].mxu0
    %v603 = vadd.f32 %v498, %v602
    %v604 = vpop.f32.mrb[0].mxu0
    %605 = vmatprep.mubr.f32.mxu0 0.0
    %v606 = vand.u32 %v92, 4294901760
    %607 = vmatmul.mubr.f32.gmra.mrb[0].mxu0 %v606
    %v608 = vpop.f32.mrb[0].mxu0
    %v609 = vadd.f32 %v506, %v608
    %v610 = vpop.f32.mrb[0].mxu0
    %611 = vmatprep.mubr.f32.mxu0 0.0
    %v612 = vand.u32 %v95, 4294901760
    %613 = vmatmul.mubr.f32.gmra.mrb[0].mxu0 %v612
    %v614 = vpop.f32.mrb[0].mxu0
    %v615 = vadd.f32 %v514, %v614
    %v616 = vpop.f32.mrb[0].mxu0
    %617 = vdwg.mxu0
    %618 = vmatprep.subr.mxu0 0.0
    %v619 = vand.u32 %v80, 4294901760
    %620 = vmatpush1.msra.mxu0 %v619
    %621 = vmatprep.subr.mxu0 0.0
    %v622 = vand.u32 %v81, 4294901760
    %623 = vmatpush1.msra.mxu0 %v622
    %624 = vmatprep.subr.mxu0 0.0
    %v625 = vand.u32 %v82, 4294901760
    %626 = vmatpush1.msra.mxu0 %v625
    %627 = vmatprep.subr.mxu0 0.0
    %v628 = vand.u32 %v83, 4294901760
    %629 = vmatpush1.msra.mxu0 %v628
    %630 = vmatprep.subr.mxu0 0.0
    %631 = vmatpush1.msra.mxu0 0.0
    %632 = vmatprep.subr.mxu0 0.0
    %633 = vmatpush1.msra.mxu0 0.0
    %634 = vmatprep.subr.mxu0 0.0
    %635 = vmatpush1.msra.mxu0 0.0
    %636 = vmatprep.subr.mxu0 0.0
    %637 = vmatpush1.msra.mxu0 0.0
    %638 = vmatprep.subr.mxu0 0.0
    %639 = vmatpush1.msra.mxu0 0.0
    %640 = vmatprep.subr.mxu0 0.0
    %641 = vmatpush1.msra.mxu0 0.0
    %642 = vmatprep.subr.mxu0 0.0
    %643 = vmatpush1.msra.mxu0 0.0
    %644 = vmatprep.subr.mxu0 0.0
    %645 = vmatpush1.msra.mxu0 0.0
    %646 = vmatprep.subr.mxu0 0.0
    %647 = vmatpush1.msra.mxu0 0.0
    %648 = vmatprep.subr.mxu0 0.0
    %649 = vmatpush1.msra.mxu0 0.0
    %650 = vmatprep.subr.mxu0 0.0
    %651 = vmatpush1.msra.mxu0 0.0
    %652 = vmatprep.subr.mxu0 0.0
    %653 = vmatpush1.msra.mxu0 0.0
    %654 = vmatprep.subr.mxu0 0.0
    %655 = vmatpush1.msra.mxu0 0.0
    %656 = vmatprep.subr.mxu0 0.0
    %657 = vmatpush1.msra.mxu0 0.0
    %658 = vmatprep.subr.mxu0 0.0
    %659 = vmatpush1.msra.mxu0 0.0
    %660 = vmatprep.subr.mxu0 0.0
    %661 = vmatpush1.msra.mxu0 0.0
    %662 = vmatprep.subr.mxu0 0.0
    %663 = vmatpush1.msra.mxu0 0.0
    %664 = vmatprep.subr.mxu0 0.0
    %665 = vmatpush1.msra.mxu0 0.0
    %666 = vmatprep.subr.mxu0 0.0
    %667 = vmatpush1.msra.mxu0 0.0
    %668 = vmatprep.subr.mxu0 0.0
    %669 = vmatpush1.msra.mxu0 0.0
    %670 = vmatprep.subr.mxu0 0.0
    %671 = vmatpush1.msra.mxu0 0.0
    %672 = vmatprep.subr.mxu0 0.0
    %673 = vmatpush1.msra.mxu0 0.0
    %674 = vmatprep.subr.mxu0 0.0
    %675 = vmatpush1.msra.mxu0 0.0
    %676 = vmatprep.subr.mxu0 0.0
    %677 = vmatpush1.msra.mxu0 0.0
    %678 = vmatprep.subr.mxu0 0.0
    %679 = vmatpush1.msra.mxu0 0.0
    %680 = vmatprep.subr.mxu0 0.0
    %681 = vmatpush1.msra.mxu0 0.0
    %682 = vmatprep.subr.mxu0 0.0
    %683 = vmatpush1.msra.mxu0 0.0
    %684 = vmatprep.subr.mxu0 0.0
    %685 = vmatpush1.msra.mxu0 0.0
    %686 = vmatprep.mubr.f32.mxu0 0.0
    %v687 = vand.u32 %v86, 4294901760
    %688 = vmatmul.mubr.f32.gmra.mrb[0].mxu0 %v687
    %v689 = vpop.f32.mrb[0].mxu0
    %v690 = vadd.f32 %v597, %v689
    %v691 = vpop.f32.mrb[0].mxu0
    %692 = vmatprep.mubr.f32.mxu0 0.0
    %v693 = vand.u32 %v89, 4294901760
    %694 = vmatmul.mubr.f32.gmra.mrb[0].mxu0 %v693
    %v695 = vpop.f32.mrb[0].mxu0
    %v696 = vadd.f32 %v603, %v695
    %v697 = vpop.f32.mrb[0].mxu0
    %698 = vmatprep.mubr.f32.mxu0 0.0
    %v699 = vand.u32 %v92, 4294901760
    %700 = vmatmul.mubr.f32.gmra.mrb[0].mxu0 %v699
    %v701 = vpop.f32.mrb[0].mxu0
    %v702 = vadd.f32 %v609, %v701
    %v703 = vpop.f32.mrb[0].mxu0
    %704 = vmatprep.mubr.f32.mxu0 0.0
    %v705 = vand.u32 %v95, 4294901760
    %706 = vmatmul.mubr.f32.gmra.mrb[0].mxu0 %v705
    %v707 = vpop.f32.mrb[0].mxu0
    %v708 = vadd.f32 %v615, %v707
    %v709 = vpop.f32.mrb[0].mxu0
    %710 = vdwg.mxu0
    %713 = vrot.lane.b32.xlu0 %v702, 96
    %v714 = vpop.permute.xlu0 %713
    %715 = vrot.lane.b32.xlu0 %v708, 96
    %v716 = vpop.permute.xlu0 %715
    %721 = vrot.lane.b32.xlu0 %v690, 64
    %v722 = vpop.permute.xlu0 %721
    %723 = vrot.lane.b32.xlu0 %v696, 64
    %v724 = vpop.permute.xlu0 %723
    %v727 = vld [vmem:[#allocation7] sm:$0xff]
    %v728 = vld [vmem:[#allocation7 + $0x8] sm:$0xff]
    %v729 = vld [vmem:[#allocation7 + $0x10] sm:$0xff]
    %v730 = vld [vmem:[#allocation7 + $0x18] sm:$0xff]
    %vm731 = vcmask 392192
    %v733 = vsel %vm731, %v72, 0
    %v736 = vsel %vm731, %v73, 0
    %v739 = vsel %vm731, %v74, 0
    %v742 = vsel %vm731, %v75, 0
    %744 = vmatprep.subr.mxu0 0.0
    %v745 = vand.u32 %v690, 4294901760
    %746 = vmatpush1.msra.mxu0 %v745
    %747 = vmatprep.subr.mxu0 0.0
    %v748 = vand.u32 %v696, 4294901760
    %749 = vmatpush1.msra.mxu0 %v748
    %750 = vmatprep.subr.mxu0 0.0
    %v751 = vand.u32 %v714, 4294901760
    %752 = vmatpush1.msra.mxu0 %v751
    %753 = vmatprep.subr.mxu0 0.0
    %v754 = vand.u32 %v716, 4294901760
    %755 = vmatpush1.msra.mxu0 %v754
    %756 = vmatprep.subr.mxu0 0.0
    %v757 = vand.u32 %v722, 4294901760
    %758 = vmatpush1.msra.mxu0 %v757
    %759 = vmatprep.subr.mxu0 0.0
    %v760 = vand.u32 %v724, 4294901760
    %761 = vmatpush1.msra.mxu0 %v760
    %762 = vmatprep.subr.mxu0 0.0
    %763 = vmatpush1.msra.mxu0 0.0
    %764 = vmatprep.subr.mxu0 0.0
    %765 = vmatpush1.msra.mxu0 0.0
    %766 = vmatprep.subr.mxu0 0.0
    %767 = vmatpush1.msra.mxu0 0.0
    %768 = vmatprep.subr.mxu0 0.0
    %769 = vmatpush1.msra.mxu0 0.0
    %770 = vmatprep.subr.mxu0 0.0
    %771 = vmatpush1.msra.mxu0 0.0
    %772 = vmatprep.subr.mxu0 0.0
    %773 = vmatpush1.msra.mxu0 0.0
    %774 = vmatprep.subr.mxu0 0.0
    %775 = vmatpush1.msra.mxu0 0.0
    %776 = vmatprep.subr.mxu0 0.0
    %777 = vmatpush1.msra.mxu0 0.0
    %778 = vmatprep.subr.mxu0 0.0
    %779 = vmatpush1.msra.mxu0 0.0
    %780 = vmatprep.subr.mxu0 0.0
    %781 = vmatpush1.msra.mxu0 0.0
    %782 = vmatprep.subr.mxu0 0.0
    %783 = vmatpush1.msra.mxu0 0.0
    %784 = vmatprep.subr.mxu0 0.0
    %785 = vmatpush1.msra.mxu0 0.0
    %786 = vmatprep.subr.mxu0 0.0
    %787 = vmatpush1.msra.mxu0 0.0
    %788 = vmatprep.subr.mxu0 0.0
    %789 = vmatpush1.msra.mxu0 0.0
    %790 = vmatprep.subr.mxu0 0.0
    %791 = vmatpush1.msra.mxu0 0.0
    %792 = vmatprep.subr.mxu0 0.0
    %793 = vmatpush1.msra.mxu0 0.0
    %794 = vmatprep.subr.mxu0 0.0
    %795 = vmatpush1.msra.mxu0 0.0
    %796 = vmatprep.subr.mxu0 0.0
    %797 = vmatpush1.msra.mxu0 0.0
    %798 = vmatprep.subr.mxu0 0.0
    %799 = vmatpush1.msra.mxu0 0.0
    %800 = vmatprep.subr.mxu0 0.0
    %801 = vmatpush1.msra.mxu0 0.0
    %802 = vmatprep.subr.mxu0 0.0
    %803 = vmatpush1.msra.mxu0 0.0
    %804 = vmatprep.subr.mxu0 0.0
    %805 = vmatpush1.msra.mxu0 0.0
    %806 = vmatprep.subr.mxu0 0.0
    %807 = vmatpush1.msra.mxu0 0.0
    %808 = vmatprep.subr.mxu0 0.0
    %809 = vmatpush1.msra.mxu0 0.0
    %810 = vmatprep.subr.mxu0 0.0
    %811 = vmatpush1.msra.mxu0 0.0
    %812 = vmatprep.subr.mxu0 0.0
    %813 = vmatpush1.msra.mxu0 0.0
    %814 = vmatprep.mubr.f32.mxu0 0.0
    %v815 = vand.u32 %v733, 4294901760
    %v816 = vsub.f32 %v733, %v815
    %v817 = vand.u32 %v816, 4294901760
    %v818 = vsub.f32 %v816, %v817
    %v819 = vand.u32 %v818, 4294901760
    %820 = vmatmul.mubr.f32.gmra.mrb[0].mxu0 %v819
    %v821 = vpop.f32.mrb[0].mxu0
    %v822 = vadd.f32 %v727, %v821
    %v823 = vpop.f32.mrb[0].mxu0
    %824 = vmatprep.mubr.f32.mxu0 0.0
    %v825 = vand.u32 %v736, 4294901760
    %v826 = vsub.f32 %v736, %v825
    %v827 = vand.u32 %v826, 4294901760
    %v828 = vsub.f32 %v826, %v827
    %v829 = vand.u32 %v828, 4294901760
    %830 = vmatmul.mubr.f32.gmra.mrb[0].mxu0 %v829
    %v831 = vpop.f32.mrb[0].mxu0
    %v832 = vadd.f32 %v728, %v831
    %v833 = vpop.f32.mrb[0].mxu0
    %834 = vmatprep.mubr.f32.mxu0 0.0
    %v835 = vand.u32 %v739, 4294901760
    %v836 = vsub.f32 %v739, %v835
    %v837 = vand.u32 %v836, 4294901760
    %v838 = vsub.f32 %v836, %v837
    %v839 = vand.u32 %v838, 4294901760
    %840 = vmatmul.mubr.f32.gmra.mrb[0].mxu0 %v839
    %v841 = vpop.f32.mrb[0].mxu0
    %v842 = vadd.f32 %v729, %v841
    %v843 = vpop.f32.mrb[0].mxu0
    %844 = vmatprep.mubr.f32.mxu0 0.0
    %v845 = vand.u32 %v742, 4294901760
    %v846 = vsub.f32 %v742, %v845
    %v847 = vand.u32 %v846, 4294901760
    %v848 = vsub.f32 %v846, %v847
    %v849 = vand.u32 %v848, 4294901760
    %850 = vmatmul.mubr.f32.gmra.mrb[0].mxu0 %v849
    %v851 = vpop.f32.mrb[0].mxu0
    %v852 = vadd.f32 %v730, %v851
    %v853 = vpop.f32.mrb[0].mxu0
    %854 = vdwg.mxu0
    %855 = vmatprep.subr.mxu0 0.0
    %v856 = vand.u32 %v690, 4294901760
    %v857 = vsub.f32 %v690, %v856
    %v858 = vand.u32 %v857, 4294901760
    %v859 = vsub.f32 %v857, %v858
    %v860 = vand.u32 %v859, 4294901760
    %861 = vmatpush1.msra.mxu0 %v860
    %862 = vmatprep.subr.mxu0 0.0
    %v863 = vand.u32 %v696, 4294901760
    %v864 = vsub.f32 %v696, %v863
    %v865 = vand.u32 %v864, 4294901760
    %v866 = vsub.f32 %v864, %v865
    %v867 = vand.u32 %v866, 4294901760
    %868 = vmatpush1.msra.mxu0 %v867
    %869 = vmatprep.subr.mxu0 0.0
    %v870 = vand.u32 %v714, 4294901760
    %v871 = vsub.f32 %v714, %v870
    %v872 = vand.u32 %v871, 4294901760
    %v873 = vsub.f32 %v871, %v872
    %v874 = vand.u32 %v873, 4294901760
    %875 = vmatpush1.msra.mxu0 %v874
    %876 = vmatprep.subr.mxu0 0.0
    %v877 = vand.u32 %v716, 4294901760
    %v878 = vsub.f32 %v716, %v877
    %v879 = vand.u32 %v878, 4294901760
    %v880 = vsub.f32 %v878, %v879
    %v881 = vand.u32 %v880, 4294901760
    %882 = vmatpush1.msra.mxu0 %v881
    %883 = vmatprep.subr.mxu0 0.0
    %v884 = vand.u32 %v722, 4294901760
    %v885 = vsub.f32 %v722, %v884
    %v886 = vand.u32 %v885, 4294901760
    %v887 = vsub.f32 %v885, %v886
    %v888 = vand.u32 %v887, 4294901760
    %889 = vmatpush1.msra.mxu0 %v888
    %890 = vmatprep.subr.mxu0 0.0
    %v891 = vand.u32 %v724, 4294901760
    %v892 = vsub.f32 %v724, %v891
    %v893 = vand.u32 %v892, 4294901760
    %v894 = vsub.f32 %v892, %v893
    %v895 = vand.u32 %v894, 4294901760
    %896 = vmatpush1.msra.mxu0 %v895
    %897 = vmatprep.subr.mxu0 0.0
    %898 = vmatpush1.msra.mxu0 0.0
    %899 = vmatprep.subr.mxu0 0.0
    %900 = vmatpush1.msra.mxu0 0.0
    %901 = vmatprep.subr.mxu0 0.0
    %902 = vmatpush1.msra.mxu0 0.0
    %903 = vmatprep.subr.mxu0 0.0
    %904 = vmatpush1.msra.mxu0 0.0
    %905 = vmatprep.subr.mxu0 0.0
    %906 = vmatpush1.msra.mxu0 0.0
    %907 = vmatprep.subr.mxu0 0.0
    %908 = vmatpush1.msra.mxu0 0.0
    %909 = vmatprep.subr.mxu0 0.0
    %910 = vmatpush1.msra.mxu0 0.0
    %911 = vmatprep.subr.mxu0 0.0
    %912 = vmatpush1.msra.mxu0 0.0
    %913 = vmatprep.subr.mxu0 0.0
    %914 = vmatpush1.msra.mxu0 0.0
    %915 = vmatprep.subr.mxu0 0.0
    %916 = vmatpush1.msra.mxu0 0.0
    %917 = vmatprep.subr.mxu0 0.0
    %918 = vmatpush1.msra.mxu0 0.0
    %919 = vmatprep.subr.mxu0 0.0
    %920 = vmatpush1.msra.mxu0 0.0
    %921 = vmatprep.subr.mxu0 0.0
    %922 = vmatpush1.msra.mxu0 0.0
    %923 = vmatprep.subr.mxu0 0.0
    %924 = vmatpush1.msra.mxu0 0.0
    %925 = vmatprep.subr.mxu0 0.0
    %926 = vmatpush1.msra.mxu0 0.0
    %927 = vmatprep.subr.mxu0 0.0
    %928 = vmatpush1.msra.mxu0 0.0
    %929 = vmatprep.subr.mxu0 0.0
    %930 = vmatpush1.msra.mxu0 0.0
    %931 = vmatprep.subr.mxu0 0.0
    %932 = vmatpush1.msra.mxu0 0.0
    %933 = vmatprep.subr.mxu0 0.0
    %934 = vmatpush1.msra.mxu0 0.0
    %935 = vmatprep.subr.mxu0 0.0
    %936 = vmatpush1.msra.mxu0 0.0
    %937 = vmatprep.subr.mxu0 0.0
    %938 = vmatpush1.msra.mxu0 0.0
    %939 = vmatprep.subr.mxu0 0.0
    %940 = vmatpush1.msra.mxu0 0.0
    %941 = vmatprep.subr.mxu0 0.0
    %942 = vmatpush1.msra.mxu0 0.0
    %943 = vmatprep.subr.mxu0 0.0
    %944 = vmatpush1.msra.mxu0 0.0
    %945 = vmatprep.subr.mxu0 0.0
    %946 = vmatpush1.msra.mxu0 0.0
    %947 = vmatprep.subr.mxu0 0.0
    %948 = vmatpush1.msra.mxu0 0.0
    %949 = vmatprep.mubr.f32.mxu0 0.0
    %v950 = vand.u32 %v733, 4294901760
    %951 = vmatmul.mubr.f32.gmra.mrb[0].mxu0 %v950
    %v952 = vpop.f32.mrb[0].mxu0
    %v953 = vadd.f32 %v822, %v952
    %v954 = vpop.f32.mrb[0].mxu0
    %955 = vmatprep.mubr.f32.mxu0 0.0
    %v956 = vand.u32 %v736, 4294901760
    %957 = vmatmul.mubr.f32.gmra.mrb[0].mxu0 %v956
    %v958 = vpop.f32.mrb[0].mxu0
    %v959 = vadd.f32 %v832, %v958
    %v960 = vpop.f32.mrb[0].mxu0
    %961 = vmatprep.mubr.f32.mxu0 0.0
    %v962 = vand.u32 %v739, 4294901760
    %963 = vmatmul.mubr.f32.gmra.mrb[0].mxu0 %v962
    %v964 = vpop.f32.mrb[0].mxu0
    %v965 = vadd.f32 %v842, %v964
    %v966 = vpop.f32.mrb[0].mxu0
    %967 = vmatprep.mubr.f32.mxu0 0.0
    %v968 = vand.u32 %v742, 4294901760
    %969 = vmatmul.mubr.f32.gmra.mrb[0].mxu0 %v968
    %v970 = vpop.f32.mrb[0].mxu0
    %v971 = vadd.f32 %v852, %v970
    %v972 = vpop.f32.mrb[0].mxu0
    %973 = vdwg.mxu0
    %974 = vmatprep.subr.mxu0 0.0
    %v975 = vand.u32 %v690, 4294901760
    %v976 = vsub.f32 %v690, %v975
    %977 = vmatpush1.msra.mxu0 %v976
    %978 = vmatprep.subr.mxu0 0.0
    %v979 = vand.u32 %v696, 4294901760
    %v980 = vsub.f32 %v696, %v979
    %981 = vmatpush1.msra.mxu0 %v980
    %982 = vmatprep.subr.mxu0 0.0
    %v983 = vand.u32 %v714, 4294901760
    %v984 = vsub.f32 %v714, %v983
    %985 = vmatpush1.msra.mxu0 %v984
    %986 = vmatprep.subr.mxu0 0.0
    %v987 = vand.u32 %v716, 4294901760
    %v988 = vsub.f32 %v716, %v987
    %989 = vmatpush1.msra.mxu0 %v988
    %990 = vmatprep.subr.mxu0 0.0
    %v991 = vand.u32 %v722, 4294901760
    %v992 = vsub.f32 %v722, %v991
    %993 = vmatpush1.msra.mxu0 %v992
    %994 = vmatprep.subr.mxu0 0.0
    %v995 = vand.u32 %v724, 4294901760
    %v996 = vsub.f32 %v724, %v995
    %997 = vmatpush1.msra.mxu0 %v996
    %998 = vmatprep.subr.mxu0 0.0
    %999 = vmatpush1.msra.mxu0 0.0
    %1000 = vmatprep.subr.mxu0 0.0
    %1001 = vmatpush1.msra.mxu0 0.0
    %1002 = vmatprep.subr.mxu0 0.0
    %1003 = vmatpush1.msra.mxu0 0.0
    %1004 = vmatprep.subr.mxu0 0.0
    %1005 = vmatpush1.msra.mxu0 0.0
    %1006 = vmatprep.subr.mxu0 0.0
    %1007 = vmatpush1.msra.mxu0 0.0
    %1008 = vmatprep.subr.mxu0 0.0
    %1009 = vmatpush1.msra.mxu0 0.0
    %1010 = vmatprep.subr.mxu0 0.0
    %1011 = vmatpush1.msra.mxu0 0.0
    %1012 = vmatprep.subr.mxu0 0.0
    %1013 = vmatpush1.msra.mxu0 0.0
    %1014 = vmatprep.subr.mxu0 0.0
    %1015 = vmatpush1.msra.mxu0 0.0
    %1016 = vmatprep.subr.mxu0 0.0
    %1017 = vmatpush1.msra.mxu0 0.0
    %1018 = vmatprep.subr.mxu0 0.0
    %1019 = vmatpush1.msra.mxu0 0.0
    %1020 = vmatprep.subr.mxu0 0.0
    %1021 = vmatpush1.msra.mxu0 0.0
    %1022 = vmatprep.subr.mxu0 0.0
    %1023 = vmatpush1.msra.mxu0 0.0
    %1024 = vmatprep.subr.mxu0 0.0
    %1025 = vmatpush1.msra.mxu0 0.0
    %1026 = vmatprep.subr.mxu0 0.0
    %1027 = vmatpush1.msra.mxu0 0.0
    %1028 = vmatprep.subr.mxu0 0.0
    %1029 = vmatpush1.msra.mxu0 0.0
    %1030 = vmatprep.subr.mxu0 0.0
    %1031 = vmatpush1.msra.mxu0 0.0
    %1032 = vmatprep.subr.mxu0 0.0
    %1033 = vmatpush1.msra.mxu0 0.0
    %1034 = vmatprep.subr.mxu0 0.0
    %1035 = vmatpush1.msra.mxu0 0.0
    %1036 = vmatprep.subr.mxu0 0.0
    %1037 = vmatpush1.msra.mxu0 0.0
    %1038 = vmatprep.subr.mxu0 0.0
    %1039 = vmatpush1.msra.mxu0 0.0
    %1040 = vmatprep.subr.mxu0 0.0
    %1041 = vmatpush1.msra.mxu0 0.0
    %1042 = vmatprep.subr.mxu0 0.0
    %1043 = vmatpush1.msra.mxu0 0.0
    %1044 = vmatprep.subr.mxu0 0.0
    %1045 = vmatpush1.msra.mxu0 0.0
    %1046 = vmatprep.subr.mxu0 0.0
    %1047 = vmatpush1.msra.mxu0 0.0
    %1048 = vmatprep.subr.mxu0 0.0
    %1049 = vmatpush1.msra.mxu0 0.0
    %1050 = vmatprep.mubr.f32.mxu0 0.0
    %v1051 = vand.u32 %v733, 4294901760
    %v1052 = vsub.f32 %v733, %v1051
    %1053 = vmatmul.mubr.f32.gmra.mrb[0].mxu0 %v1052
    %v1054 = vpop.f32.mrb[0].mxu0
    %v1055 = vadd.f32 %v953, %v1054
    %v1056 = vpop.f32.mrb[0].mxu0
    %1057 = vmatprep.mubr.f32.mxu0 0.0
    %v1058 = vand.u32 %v736, 4294901760
    %v1059 = vsub.f32 %v736, %v1058
    %1060 = vmatmul.mubr.f32.gmra.mrb[0].mxu0 %v1059
    %v1061 = vpop.f32.mrb[0].mxu0
    %v1062 = vadd.f32 %v959, %v1061
    %v1063 = vpop.f32.mrb[0].mxu0
    %1064 = vmatprep.mubr.f32.mxu0 0.0
    %v1065 = vand.u32 %v739, 4294901760
    %v1066 = vsub.f32 %v739, %v1065
    %1067 = vmatmul.mubr.f32.gmra.mrb[0].mxu0 %v1066
    %v1068 = vpop.f32.mrb[0].mxu0
    %v1069 = vadd.f32 %v965, %v1068
    %v1070 = vpop.f32.mrb[0].mxu0
    %1071 = vmatprep.mubr.f32.mxu0 0.0
    %v1072 = vand.u32 %v742, 4294901760
    %v1073 = vsub.f32 %v742, %v1072
    %1074 = vmatmul.mubr.f32.gmra.mrb[0].mxu0 %v1073
    %v1075 = vpop.f32.mrb[0].mxu0
    %v1076 = vadd.f32 %v971, %v1075
    %v1077 = vpop.f32.mrb[0].mxu0
    %1078 = vdwg.mxu0
    %1079 = vmatprep.subr.mxu0 0.0
    %v1080 = vand.u32 %v690, 4294901760
    %1081 = vmatpush1.msra.mxu0 %v1080
    %1082 = vmatprep.subr.mxu0 0.0
    %v1083 = vand.u32 %v696, 4294901760
    %1084 = vmatpush1.msra.mxu0 %v1083
    %1085 = vmatprep.subr.mxu0 0.0
    %v1086 = vand.u32 %v714, 4294901760
    %1087 = vmatpush1.msra.mxu0 %v1086
    %1088 = vmatprep.subr.mxu0 0.0
    %v1089 = vand.u32 %v716, 4294901760
    %1090 = vmatpush1.msra.mxu0 %v1089
    %1091 = vmatprep.subr.mxu0 0.0
    %v1092 = vand.u32 %v722, 4294901760
    %1093 = vmatpush1.msra.mxu0 %v1092
    %1094 = vmatprep.subr.mxu0 0.0
    %v1095 = vand.u32 %v724, 4294901760
    %1096 = vmatpush1.msra.mxu0 %v1095
    %1097 = vmatprep.subr.mxu0 0.0
    %1098 = vmatpush1.msra.mxu0 0.0
    %1099 = vmatprep.subr.mxu0 0.0
    %1100 = vmatpush1.msra.mxu0 0.0
    %1101 = vmatprep.subr.mxu0 0.0
    %1102 = vmatpush1.msra.mxu0 0.0
    %1103 = vmatprep.subr.mxu0 0.0
    %1104 = vmatpush1.msra.mxu0 0.0
    %1105 = vmatprep.subr.mxu0 0.0
    %1106 = vmatpush1.msra.mxu0 0.0
    %1107 = vmatprep.subr.mxu0 0.0
    %1108 = vmatpush1.msra.mxu0 0.0
    %1109 = vmatprep.subr.mxu0 0.0
    %1110 = vmatpush1.msra.mxu0 0.0
    %1111 = vmatprep.subr.mxu0 0.0
    %1112 = vmatpush1.msra.mxu0 0.0
    %1113 = vmatprep.subr.mxu0 0.0
    %1114 = vmatpush1.msra.mxu0 0.0
    %1115 = vmatprep.subr.mxu0 0.0
    %1116 = vmatpush1.msra.mxu0 0.0
    %1117 = vmatprep.subr.mxu0 0.0
    %1118 = vmatpush1.msra.mxu0 0.0
    %1119 = vmatprep.subr.mxu0 0.0
    %1120 = vmatpush1.msra.mxu0 0.0
    %1121 = vmatprep.subr.mxu0 0.0
    %1122 = vmatpush1.msra.mxu0 0.0
    %1123 = vmatprep.subr.mxu0 0.0
    %1124 = vmatpush1.msra.mxu0 0.0
    %1125 = vmatprep.subr.mxu0 0.0
    %1126 = vmatpush1.msra.mxu0 0.0
    %1127 = vmatprep.subr.mxu0 0.0
    %1128 = vmatpush1.msra.mxu0 0.0
    %1129 = vmatprep.subr.mxu0 0.0
    %1130 = vmatpush1.msra.mxu0 0.0
    %1131 = vmatprep.subr.mxu0 0.0
    %1132 = vmatpush1.msra.mxu0 0.0
    %1133 = vmatprep.subr.mxu0 0.0
    %1134 = vmatpush1.msra.mxu0 0.0
    %1135 = vmatprep.subr.mxu0 0.0
    %1136 = vmatpush1.msra.mxu0 0.0
    %1137 = vmatprep.subr.mxu0 0.0
    %1138 = vmatpush1.msra.mxu0 0.0
    %1139 = vmatprep.subr.mxu0 0.0
    %1140 = vmatpush1.msra.mxu0 0.0
    %1141 = vmatprep.subr.mxu0 0.0
    %1142 = vmatpush1.msra.mxu0 0.0
    %1143 = vmatprep.subr.mxu0 0.0
    %1144 = vmatpush1.msra.mxu0 0.0
    %1145 = vmatprep.subr.mxu0 0.0
    %1146 = vmatpush1.msra.mxu0 0.0
    %1147 = vmatprep.subr.mxu0 0.0
    %1148 = vmatpush1.msra.mxu0 0.0
    %1149 = vmatprep.mubr.f32.mxu0 0.0
    %v1150 = vand.u32 %v733, 4294901760
    %v1151 = vsub.f32 %v733, %v1150
    %v1152 = vand.u32 %v1151, 4294901760
    %1153 = vmatmul.mubr.f32.gmra.mrb[0].mxu0 %v1152
    %v1154 = vpop.f32.mrb[0].mxu0
    %v1155 = vadd.f32 %v1055, %v1154
    %v1156 = vpop.f32.mrb[0].mxu0
    %1157 = vmatprep.mubr.f32.mxu0 0.0
    %v1158 = vand.u32 %v736, 4294901760
    %v1159 = vsub.f32 %v736, %v1158
    %v1160 = vand.u32 %v1159, 4294901760
    %1161 = vmatmul.mubr.f32.gmra.mrb[0].mxu0 %v1160
    %v1162 = vpop.f32.mrb[0].mxu0
    %v1163 = vadd.f32 %v1062, %v1162
    %v1164 = vpop.f32.mrb[0].mxu0
    %1165 = vmatprep.mubr.f32.mxu0 0.0
    %v1166 = vand.u32 %v739, 4294901760
    %v1167 = vsub.f32 %v739, %v1166
    %v1168 = vand.u32 %v1167, 4294901760
    %1169 = vmatmul.mubr.f32.gmra.mrb[0].mxu0 %v1168
    %v1170 = vpop.f32.mrb[0].mxu0
    %v1171 = vadd.f32 %v1069, %v1170
    %v1172 = vpop.f32.mrb[0].mxu0
    %1173 = vmatprep.mubr.f32.mxu0 0.0
    %v1174 = vand.u32 %v742, 4294901760
    %v1175 = vsub.f32 %v742, %v1174
    %v1176 = vand.u32 %v1175, 4294901760
    %1177 = vmatmul.mubr.f32.gmra.mrb[0].mxu0 %v1176
    %v1178 = vpop.f32.mrb[0].mxu0
    %v1179 = vadd.f32 %v1076, %v1178
    %v1180 = vpop.f32.mrb[0].mxu0
    %1181 = vdwg.mxu0
    %1182 = vmatprep.subr.mxu0 0.0
    %v1183 = vand.u32 %v690, 4294901760
    %v1184 = vsub.f32 %v690, %v1183
    %v1185 = vand.u32 %v1184, 4294901760
    %1186 = vmatpush1.msra.mxu0 %v1185
    %1187 = vmatprep.subr.mxu0 0.0
    %v1188 = vand.u32 %v696, 4294901760
    %v1189 = vsub.f32 %v696, %v1188
    %v1190 = vand.u32 %v1189, 4294901760
    %1191 = vmatpush1.msra.mxu0 %v1190
    %1192 = vmatprep.subr.mxu0 0.0
    %v1193 = vand.u32 %v714, 4294901760
    %v1194 = vsub.f32 %v714, %v1193
    %v1195 = vand.u32 %v1194, 4294901760
    %1196 = vmatpush1.msra.mxu0 %v1195
    %1197 = vmatprep.subr.mxu0 0.0
    %v1198 = vand.u32 %v716, 4294901760
    %v1199 = vsub.f32 %v716, %v1198
    %v1200 = vand.u32 %v1199, 4294901760
    %1201 = vmatpush1.msra.mxu0 %v1200
    %1202 = vmatprep.subr.mxu0 0.0
    %v1203 = vand.u32 %v722, 4294901760
    %v1204 = vsub.f32 %v722, %v1203
    %v1205 = vand.u32 %v1204, 4294901760
    %1206 = vmatpush1.msra.mxu0 %v1205
    %1207 = vmatprep.subr.mxu0 0.0
    %v1208 = vand.u32 %v724, 4294901760
    %v1209 = vsub.f32 %v724, %v1208
    %v1210 = vand.u32 %v1209, 4294901760
    %1211 = vmatpush1.msra.mxu0 %v1210
    %1212 = vmatprep.subr.mxu0 0.0
    %1213 = vmatpush1.msra.mxu0 0.0
    %1214 = vmatprep.subr.mxu0 0.0
    %1215 = vmatpush1.msra.mxu0 0.0
    %1216 = vmatprep.subr.mxu0 0.0
    %1217 = vmatpush1.msra.mxu0 0.0
    %1218 = vmatprep.subr.mxu0 0.0
    %1219 = vmatpush1.msra.mxu0 0.0
    %1220 = vmatprep.subr.mxu0 0.0
    %1221 = vmatpush1.msra.mxu0 0.0
    %1222 = vmatprep.subr.mxu0 0.0
    %1223 = vmatpush1.msra.mxu0 0.0
    %1224 = vmatprep.subr.mxu0 0.0
    %1225 = vmatpush1.msra.mxu0 0.0
    %1226 = vmatprep.subr.mxu0 0.0
    %1227 = vmatpush1.msra.mxu0 0.0
    %1228 = vmatprep.subr.mxu0 0.0
    %1229 = vmatpush1.msra.mxu0 0.0
    %1230 = vmatprep.subr.mxu0 0.0
    %1231 = vmatpush1.msra.mxu0 0.0
    %1232 = vmatprep.subr.mxu0 0.0
    %1233 = vmatpush1.msra.mxu0 0.0
    %1234 = vmatprep.subr.mxu0 0.0
    %1235 = vmatpush1.msra.mxu0 0.0
    %1236 = vmatprep.subr.mxu0 0.0
    %1237 = vmatpush1.msra.mxu0 0.0
    %1238 = vmatprep.subr.mxu0 0.0
    %1239 = vmatpush1.msra.mxu0 0.0
    %1240 = vmatprep.subr.mxu0 0.0
    %1241 = vmatpush1.msra.mxu0 0.0
    %1242 = vmatprep.subr.mxu0 0.0
    %1243 = vmatpush1.msra.mxu0 0.0
    %1244 = vmatprep.subr.mxu0 0.0
    %1245 = vmatpush1.msra.mxu0 0.0
    %1246 = vmatprep.subr.mxu0 0.0
    %1247 = vmatpush1.msra.mxu0 0.0
    %1248 = vmatprep.subr.mxu0 0.0
    %1249 = vmatpush1.msra.mxu0 0.0
    %1250 = vmatprep.subr.mxu0 0.0
    %1251 = vmatpush1.msra.mxu0 0.0
    %1252 = vmatprep.subr.mxu0 0.0
    %1253 = vmatpush1.msra.mxu0 0.0
    %1254 = vmatprep.subr.mxu0 0.0
    %1255 = vmatpush1.msra.mxu0 0.0
    %1256 = vmatprep.subr.mxu0 0.0
    %1257 = vmatpush1.msra.mxu0 0.0
    %1258 = vmatprep.subr.mxu0 0.0
    %1259 = vmatpush1.msra.mxu0 0.0
    %1260 = vmatprep.subr.mxu0 0.0
    %1261 = vmatpush1.msra.mxu0 0.0
    %1262 = vmatprep.subr.mxu0 0.0
    %1263 = vmatpush1.msra.mxu0 0.0
    %1264 = vmatprep.mubr.f32.mxu0 0.0
    %v1265 = vand.u32 %v733, 4294901760
    %1266 = vmatmul.mubr.f32.gmra.mrb[0].mxu0 %v1265
    %v1267 = vpop.f32.mrb[0].mxu0
    %v1268 = vadd.f32 %v1155, %v1267
    %v1269 = vpop.f32.mrb[0].mxu0
    %1270 = vmatprep.mubr.f32.mxu0 0.0
    %v1271 = vand.u32 %v736, 4294901760
    %1272 = vmatmul.mubr.f32.gmra.mrb[0].mxu0 %v1271
    %v1273 = vpop.f32.mrb[0].mxu0
    %v1274 = vadd.f32 %v1163, %v1273
    %v1275 = vpop.f32.mrb[0].mxu0
    %1276 = vmatprep.mubr.f32.mxu0 0.0
    %v1277 = vand.u32 %v739, 4294901760
    %1278 = vmatmul.mubr.f32.gmra.mrb[0].mxu0 %v1277
    %v1279 = vpop.f32.mrb[0].mxu0
    %v1280 = vadd.f32 %v1171, %v1279
    %v1281 = vpop.f32.mrb[0].mxu0
    %1282 = vmatprep.mubr.f32.mxu0 0.0
    %v1283 = vand.u32 %v742, 4294901760
    %1284 = vmatmul.mubr.f32.gmra.mrb[0].mxu0 %v1283
    %v1285 = vpop.f32.mrb[0].mxu0
    %v1286 = vadd.f32 %v1179, %v1285
    %v1287 = vpop.f32.mrb[0].mxu0
    %1288 = vdwg.mxu0
    %1289 = vmatprep.subr.mxu0 0.0
    %v1290 = vand.u32 %v690, 4294901760
    %1291 = vmatpush1.msra.mxu0 %v1290
    %1292 = vmatprep.subr.mxu0 0.0
    %v1293 = vand.u32 %v696, 4294901760
    %1294 = vmatpush1.msra.mxu0 %v1293
    %1295 = vmatprep.subr.mxu0 0.0
    %v1296 = vand.u32 %v714, 4294901760
    %1297 = vmatpush1.msra.mxu0 %v1296
    %1298 = vmatprep.subr.mxu0 0.0
    %v1299 = vand.u32 %v716, 4294901760
    %1300 = vmatpush1.msra.mxu0 %v1299
    %1301 = vmatprep.subr.mxu0 0.0
    %v1302 = vand.u32 %v722, 4294901760
    %1303 = vmatpush1.msra.mxu0 %v1302
    %1304 = vmatprep.subr.mxu0 0.0
    %v1305 = vand.u32 %v724, 4294901760
    %1306 = vmatpush1.msra.mxu0 %v1305
    %1307 = vmatprep.subr.mxu0 0.0
    %1308 = vmatpush1.msra.mxu0 0.0
    %1309 = vmatprep.subr.mxu0 0.0
    %1310 = vmatpush1.msra.mxu0 0.0
    %1311 = vmatprep.subr.mxu0 0.0
    %1312 = vmatpush1.msra.mxu0 0.0
    %1313 = vmatprep.subr.mxu0 0.0
    %1314 = vmatpush1.msra.mxu0 0.0
    %1315 = vmatprep.subr.mxu0 0.0
    %1316 = vmatpush1.msra.mxu0 0.0
    %1317 = vmatprep.subr.mxu0 0.0
    %1318 = vmatpush1.msra.mxu0 0.0
    %1319 = vmatprep.subr.mxu0 0.0
    %1320 = vmatpush1.msra.mxu0 0.0
    %1321 = vmatprep.subr.mxu0 0.0
    %1322 = vmatpush1.msra.mxu0 0.0
    %1323 = vmatprep.subr.mxu0 0.0
    %1324 = vmatpush1.msra.mxu0 0.0
    %1325 = vmatprep.subr.mxu0 0.0
    %1326 = vmatpush1.msra.mxu0 0.0
    %1327 = vmatprep.subr.mxu0 0.0
    %1328 = vmatpush1.msra.mxu0 0.0
    %1329 = vmatprep.subr.mxu0 0.0
    %1330 = vmatpush1.msra.mxu0 0.0
    %1331 = vmatprep.subr.mxu0 0.0
    %1332 = vmatpush1.msra.mxu0 0.0
    %1333 = vmatprep.subr.mxu0 0.0
    %1334 = vmatpush1.msra.mxu0 0.0
    %1335 = vmatprep.subr.mxu0 0.0
    %1336 = vmatpush1.msra.mxu0 0.0
    %1337 = vmatprep.subr.mxu0 0.0
    %1338 = vmatpush1.msra.mxu0 0.0
    %1339 = vmatprep.subr.mxu0 0.0
    %1340 = vmatpush1.msra.mxu0 0.0
    %1341 = vmatprep.subr.mxu0 0.0
    %1342 = vmatpush1.msra.mxu0 0.0
    %1343 = vmatprep.subr.mxu0 0.0
    %1344 = vmatpush1.msra.mxu0 0.0
    %1345 = vmatprep.subr.mxu0 0.0
    %1346 = vmatpush1.msra.mxu0 0.0
    %1347 = vmatprep.subr.mxu0 0.0
    %1348 = vmatpush1.msra.mxu0 0.0
    %1349 = vmatprep.subr.mxu0 0.0
    %1350 = vmatpush1.msra.mxu0 0.0
    %1351 = vmatprep.subr.mxu0 0.0
    %1352 = vmatpush1.msra.mxu0 0.0
    %1353 = vmatprep.subr.mxu0 0.0
    %1354 = vmatpush1.msra.mxu0 0.0
    %1355 = vmatprep.subr.mxu0 0.0
    %1356 = vmatpush1.msra.mxu0 0.0
    %1357 = vmatprep.subr.mxu0 0.0
    %1358 = vmatpush1.msra.mxu0 0.0
    %1359 = vmatprep.mubr.f32.mxu0 0.0
    %v1360 = vand.u32 %v733, 4294901760
    %1361 = vmatmul.mubr.f32.gmra.mrb[0].mxu0 %v1360
    %v1362 = vpop.f32.mrb[0].mxu0
    %v1363 = vadd.f32 %v1268, %v1362
    %v1364 = vpop.f32.mrb[0].mxu0
    %1365 = vmatprep.mubr.f32.mxu0 0.0
    %v1366 = vand.u32 %v736, 4294901760
    %1367 = vmatmul.mubr.f32.gmra.mrb[0].mxu0 %v1366
    %v1368 = vpop.f32.mrb[0].mxu0
    %v1369 = vadd.f32 %v1274, %v1368
    %v1370 = vpop.f32.mrb[0].mxu0
    %1371 = vmatprep.mubr.f32.mxu0 0.0
    %v1372 = vand.u32 %v739, 4294901760
    %1373 = vmatmul.mubr.f32.gmra.mrb[0].mxu0 %v1372
    %v1374 = vpop.f32.mrb[0].mxu0
    %v1375 = vadd.f32 %v1280, %v1374
    %v1376 = vpop.f32.mrb[0].mxu0
    %1377 = vmatprep.mubr.f32.mxu0 0.0
    %v1378 = vand.u32 %v742, 4294901760
    %1379 = vmatmul.mubr.f32.gmra.mrb[0].mxu0 %v1378
    %v1380 = vpop.f32.mrb[0].mxu0
    %v1381 = vadd.f32 %v1286, %v1380
    %v1382 = vpop.f32.mrb[0].mxu0
    %1383 = vdwg.mxu0
    %v1384 = vmax.f32 %v1363, 0.0
    %v1385 = vmax.f32 %v1369, 0.0
    %v1386 = vmax.f32 %v1375, 0.0
    %v1387 = vmax.f32 %v1381, 0.0
    %v1388 = vmul.f32 %v1384, %v1384
    %v1389 = vmul.f32 %v1385, %v1385
    %v1390 = vmul.f32 %v1386, %v1386
    %v1391 = vmul.f32 %v1387, %v1387
    %v1392 = vsel %vm84, %v1388, 0.0
    %1393 = vadd.xlane.f32.xlu0 %v1392
    %v1394 = vpop.xlane.xlu0 %1393
    %v1395 = vsel %vm84, %v1389, 0.0
    %1396 = vadd.xlane.f32.xlu0 %v1395
    %v1397 = vpop.xlane.xlu0 %1396
    %v1398 = vsel %vm84, %v1390, 0.0
    %1399 = vadd.xlane.f32.xlu0 %v1398
    %v1400 = vpop.xlane.xlu0 %1399
    %v1401 = vsel %vm84, %v1391, 0.0
    %1402 = vadd.xlane.f32.xlu0 %v1401
    %v1403 = vpop.xlane.xlu0 %1402
    %v1404 = vmax.f32 %v1394, 1e-24
    %v1405 = vmax.f32 %v1397, 1e-24
    %v1406 = vmax.f32 %v1400, 1e-24
    %v1407 = vmax.f32 %v1403, 1e-24
    %v1408 = vrsqrt.pop %v1404
    %v1409 = vrsqrt.pop %v1405
    %v1410 = vrsqrt.pop %v1406
    %v1411 = vrsqrt.pop %v1407
    %v1412 = vmul.f32 %v1384, %v1408
    %v1413 = vmul.f32 %v1385, %v1409
    %v1414 = vmul.f32 %v1386, %v1410
    %v1415 = vmul.f32 %v1387, %v1411
    %s1416 = scalar_lea.vmem [#allocation6], 32
    %v1417 = vld [vmem:[%s1416] sm:$0xff]
    %v1418 = vld [vmem:[%s1416 + $0x8] sm:$0xff]
    %v1419 = vld [vmem:[%s1416 + $0x10] sm:$0xff]
    %v1420 = vld [vmem:[%s1416 + $0x18] sm:$0xff]
    %v1422 = vsel %vm84, %v1412, 0
    %v1425 = vsel %vm84, %v1413, 0
    %v1428 = vsel %vm84, %v1414, 0
    %v1431 = vsel %vm84, %v1415, 0
    %1433 = vmatprep.subr.mxu0 0.0
    %v1434 = vand.u32 %v1417, 4294901760
    %1435 = vmatpush1.msra.mxu0 %v1434
    %1436 = vmatprep.subr.mxu0 0.0
    %v1437 = vand.u32 %v1418, 4294901760
    %1438 = vmatpush1.msra.mxu0 %v1437
    %1439 = vmatprep.subr.mxu0 0.0
    %v1440 = vand.u32 %v1419, 4294901760
    %1441 = vmatpush1.msra.mxu0 %v1440
    %1442 = vmatprep.subr.mxu0 0.0
    %v1443 = vand.u32 %v1420, 4294901760
    %1444 = vmatpush1.msra.mxu0 %v1443
    %1445 = vmatprep.subr.mxu0 0.0
    %1446 = vmatpush1.msra.mxu0 0.0
    %1447 = vmatprep.subr.mxu0 0.0
    %1448 = vmatpush1.msra.mxu0 0.0
    %1449 = vmatprep.subr.mxu0 0.0
    %1450 = vmatpush1.msra.mxu0 0.0
    %1451 = vmatprep.subr.mxu0 0.0
    %1452 = vmatpush1.msra.mxu0 0.0
    %1453 = vmatprep.subr.mxu0 0.0
    %1454 = vmatpush1.msra.mxu0 0.0
    %1455 = vmatprep.subr.mxu0 0.0
    %1456 = vmatpush1.msra.mxu0 0.0
    %1457 = vmatprep.subr.mxu0 0.0
    %1458 = vmatpush1.msra.mxu0 0.0
    %1459 = vmatprep.subr.mxu0 0.0
    %1460 = vmatpush1.msra.mxu0 0.0
    %1461 = vmatprep.subr.mxu0 0.0
    %1462 = vmatpush1.msra.mxu0 0.0
    %1463 = vmatprep.subr.mxu0 0.0
    %1464 = vmatpush1.msra.mxu0 0.0
    %1465 = vmatprep.subr.mxu0 0.0
    %1466 = vmatpush1.msra.mxu0 0.0
    %1467 = vmatprep.subr.mxu0 0.0
    %1468 = vmatpush1.msra.mxu0 0.0
    %1469 = vmatprep.subr.mxu0 0.0
    %1470 = vmatpush1.msra.mxu0 0.0
    %1471 = vmatprep.subr.mxu0 0.0
    %1472 = vmatpush1.msra.mxu0 0.0
    %1473 = vmatprep.subr.mxu0 0.0
    %1474 = vmatpush1.msra.mxu0 0.0
    %1475 = vmatprep.subr.mxu0 0.0
    %1476 = vmatpush1.msra.mxu0 0.0
    %1477 = vmatprep.subr.mxu0 0.0
    %1478 = vmatpush1.msra.mxu0 0.0
    %1479 = vmatprep.subr.mxu0 0.0
    %1480 = vmatpush1.msra.mxu0 0.0
    %1481 = vmatprep.subr.mxu0 0.0
    %1482 = vmatpush1.msra.mxu0 0.0
    %1483 = vmatprep.subr.mxu0 0.0
    %1484 = vmatpush1.msra.mxu0 0.0
    %1485 = vmatprep.subr.mxu0 0.0
    %1486 = vmatpush1.msra.mxu0 0.0
    %1487 = vmatprep.subr.mxu0 0.0
    %1488 = vmatpush1.msra.mxu0 0.0
    %1489 = vmatprep.subr.mxu0 0.0
    %1490 = vmatpush1.msra.mxu0 0.0
    %1491 = vmatprep.subr.mxu0 0.0
    %1492 = vmatpush1.msra.mxu0 0.0
    %1493 = vmatprep.subr.mxu0 0.0
    %1494 = vmatpush1.msra.mxu0 0.0
    %1495 = vmatprep.subr.mxu0 0.0
    %1496 = vmatpush1.msra.mxu0 0.0
    %1497 = vmatprep.subr.mxu0 0.0
    %1498 = vmatpush1.msra.mxu0 0.0
    %1499 = vmatprep.subr.mxu0 0.0
    %1500 = vmatpush1.msra.mxu0 0.0
    %1501 = vmatprep.mubr.f32.mxu0 0.0
    %v1502 = vand.u32 %v1422, 4294901760
    %v1503 = vsub.f32 %v1422, %v1502
    %v1504 = vand.u32 %v1503, 4294901760
    %v1505 = vsub.f32 %v1503, %v1504
    %v1506 = vand.u32 %v1505, 4294901760
    %1507 = vmatmul.mubr.f32.gmra.mrb[0].mxu0 %v1506
    %v1508 = vpop.f32.mrb[0].mxu0
    %v1509 = vadd.f32 0.0, %v1508
    %v1510 = vpop.f32.mrb[0].mxu0
    %1511 = vmatprep.mubr.f32.mxu0 0.0
    %v1512 = vand.u32 %v1425, 4294901760
    %v1513 = vsub.f32 %v1425, %v1512
    %v1514 = vand.u32 %v1513, 4294901760
    %v1515 = vsub.f32 %v1513, %v1514
    %v1516 = vand.u32 %v1515, 4294901760
    %1517 = vmatmul.mubr.f32.gmra.mrb[0].mxu0 %v1516
    %v1518 = vpop.f32.mrb[0].mxu0
    %v1519 = vadd.f32 0.0, %v1518
    %v1520 = vpop.f32.mrb[0].mxu0
    %1521 = vmatprep.mubr.f32.mxu0 0.0
    %v1522 = vand.u32 %v1428, 4294901760
    %v1523 = vsub.f32 %v1428, %v1522
    %v1524 = vand.u32 %v1523, 4294901760
    %v1525 = vsub.f32 %v1523, %v1524
    %v1526 = vand.u32 %v1525, 4294901760
    %1527 = vmatmul.mubr.f32.gmra.mrb[0].mxu0 %v1526
    %v1528 = vpop.f32.mrb[0].mxu0
    %v1529 = vadd.f32 0.0, %v1528
    %v1530 = vpop.f32.mrb[0].mxu0
    %1531 = vmatprep.mubr.f32.mxu0 0.0
    %v1532 = vand.u32 %v1431, 4294901760
    %v1533 = vsub.f32 %v1431, %v1532
    %v1534 = vand.u32 %v1533, 4294901760
    %v1535 = vsub.f32 %v1533, %v1534
    %v1536 = vand.u32 %v1535, 4294901760
    %1537 = vmatmul.mubr.f32.gmra.mrb[0].mxu0 %v1536
    %v1538 = vpop.f32.mrb[0].mxu0
    %v1539 = vadd.f32 0.0, %v1538
    %v1540 = vpop.f32.mrb[0].mxu0
    %1541 = vdwg.mxu0
    %1542 = vmatprep.subr.mxu0 0.0
    %v1543 = vand.u32 %v1417, 4294901760
    %v1544 = vsub.f32 %v1417, %v1543
    %v1545 = vand.u32 %v1544, 4294901760
    %v1546 = vsub.f32 %v1544, %v1545
    %v1547 = vand.u32 %v1546, 4294901760
    %1548 = vmatpush1.msra.mxu0 %v1547
    %1549 = vmatprep.subr.mxu0 0.0
    %v1550 = vand.u32 %v1418, 4294901760
    %v1551 = vsub.f32 %v1418, %v1550
    %v1552 = vand.u32 %v1551, 4294901760
    %v1553 = vsub.f32 %v1551, %v1552
    %v1554 = vand.u32 %v1553, 4294901760
    %1555 = vmatpush1.msra.mxu0 %v1554
    %1556 = vmatprep.subr.mxu0 0.0
    %v1557 = vand.u32 %v1419, 4294901760
    %v1558 = vsub.f32 %v1419, %v1557
    %v1559 = vand.u32 %v1558, 4294901760
    %v1560 = vsub.f32 %v1558, %v1559
    %v1561 = vand.u32 %v1560, 4294901760
    %1562 = vmatpush1.msra.mxu0 %v1561
    %1563 = vmatprep.subr.mxu0 0.0
    %v1564 = vand.u32 %v1420, 4294901760
    %v1565 = vsub.f32 %v1420, %v1564
    %v1566 = vand.u32 %v1565, 4294901760
    %v1567 = vsub.f32 %v1565, %v1566
    %v1568 = vand.u32 %v1567, 4294901760
    %1569 = vmatpush1.msra.mxu0 %v1568
    %1570 = vmatprep.subr.mxu0 0.0
    %1571 = vmatpush1.msra.mxu0 0.0
    %1572 = vmatprep.subr.mxu0 0.0
    %1573 = vmatpush1.msra.mxu0 0.0
    %1574 = vmatprep.subr.mxu0 0.0
    %1575 = vmatpush1.msra.mxu0 0.0
    %1576 = vmatprep.subr.mxu0 0.0
    %1577 = vmatpush1.msra.mxu0 0.0
    %1578 = vmatprep.subr.mxu0 0.0
    %1579 = vmatpush1.msra.mxu0 0.0
    %1580 = vmatprep.subr.mxu0 0.0
    %1581 = vmatpush1.msra.mxu0 0.0
    %1582 = vmatprep.subr.mxu0 0.0
    %1583 = vmatpush1.msra.mxu0 0.0
    %1584 = vmatprep.subr.mxu0 0.0
    %1585 = vmatpush1.msra.mxu0 0.0
    %1586 = vmatprep.subr.mxu0 0.0
    %1587 = vmatpush1.msra.mxu0 0.0
    %1588 = vmatprep.subr.mxu0 0.0
    %1589 = vmatpush1.msra.mxu0 0.0
    %1590 = vmatprep.subr.mxu0 0.0
    %1591 = vmatpush1.msra.mxu0 0.0
    %1592 = vmatprep.subr.mxu0 0.0
    %1593 = vmatpush1.msra.mxu0 0.0
    %1594 = vmatprep.subr.mxu0 0.0
    %1595 = vmatpush1.msra.mxu0 0.0
    %1596 = vmatprep.subr.mxu0 0.0
    %1597 = vmatpush1.msra.mxu0 0.0
    %1598 = vmatprep.subr.mxu0 0.0
    %1599 = vmatpush1.msra.mxu0 0.0
    %1600 = vmatprep.subr.mxu0 0.0
    %1601 = vmatpush1.msra.mxu0 0.0
    %1602 = vmatprep.subr.mxu0 0.0
    %1603 = vmatpush1.msra.mxu0 0.0
    %1604 = vmatprep.subr.mxu0 0.0
    %1605 = vmatpush1.msra.mxu0 0.0
    %1606 = vmatprep.subr.mxu0 0.0
    %1607 = vmatpush1.msra.mxu0 0.0
    %1608 = vmatprep.subr.mxu0 0.0
    %1609 = vmatpush1.msra.mxu0 0.0
    %1610 = vmatprep.subr.mxu0 0.0
    %1611 = vmatpush1.msra.mxu0 0.0
    %1612 = vmatprep.subr.mxu0 0.0
    %1613 = vmatpush1.msra.mxu0 0.0
    %1614 = vmatprep.subr.mxu0 0.0
    %1615 = vmatpush1.msra.mxu0 0.0
    %1616 = vmatprep.subr.mxu0 0.0
    %1617 = vmatpush1.msra.mxu0 0.0
    %1618 = vmatprep.subr.mxu0 0.0
    %1619 = vmatpush1.msra.mxu0 0.0
    %1620 = vmatprep.subr.mxu0 0.0
    %1621 = vmatpush1.msra.mxu0 0.0
    %1622 = vmatprep.subr.mxu0 0.0
    %1623 = vmatpush1.msra.mxu0 0.0
    %1624 = vmatprep.subr.mxu0 0.0
    %1625 = vmatpush1.msra.mxu0 0.0
    %1626 = vmatprep.mubr.f32.mxu0 0.0
    %v1627 = vand.u32 %v1422, 4294901760
    %1628 = vmatmul.mubr.f32.gmra.mrb[0].mxu0 %v1627
    %v1629 = vpop.f32.mrb[0].mxu0
    %v1630 = vadd.f32 %v1509, %v1629
    %v1631 = vpop.f32.mrb[0].mxu0
    %1632 = vmatprep.mubr.f32.mxu0 0.0
    %v1633 = vand.u32 %v1425, 4294901760
    %1634 = vmatmul.mubr.f32.gmra.mrb[0].mxu0 %v1633
    %v1635 = vpop.f32.mrb[0].mxu0
    %v1636 = vadd.f32 %v1519, %v1635
    %v1637 = vpop.f32.mrb[0].mxu0
    %1638 = vmatprep.mubr.f32.mxu0 0.0
    %v1639 = vand.u32 %v1428, 4294901760
    %1640 = vmatmul.mubr.f32.gmra.mrb[0].mxu0 %v1639
    %v1641 = vpop.f32.mrb[0].mxu0
    %v1642 = vadd.f32 %v1529, %v1641
    %v1643 = vpop.f32.mrb[0].mxu0
    %1644 = vmatprep.mubr.f32.mxu0 0.0
    %v1645 = vand.u32 %v1431, 4294901760
    %1646 = vmatmul.mubr.f32.gmra.mrb[0].mxu0 %v1645
    %v1647 = vpop.f32.mrb[0].mxu0
    %v1648 = vadd.f32 %v1539, %v1647
    %v1649 = vpop.f32.mrb[0].mxu0
    %1650 = vdwg.mxu0
    %1651 = vmatprep.subr.mxu0 0.0
    %v1652 = vand.u32 %v1417, 4294901760
    %v1653 = vsub.f32 %v1417, %v1652
    %1654 = vmatpush1.msra.mxu0 %v1653
    %1655 = vmatprep.subr.mxu0 0.0
    %v1656 = vand.u32 %v1418, 4294901760
    %v1657 = vsub.f32 %v1418, %v1656
    %1658 = vmatpush1.msra.mxu0 %v1657
    %1659 = vmatprep.subr.mxu0 0.0
    %v1660 = vand.u32 %v1419, 4294901760
    %v1661 = vsub.f32 %v1419, %v1660
    %1662 = vmatpush1.msra.mxu0 %v1661
    %1663 = vmatprep.subr.mxu0 0.0
    %v1664 = vand.u32 %v1420, 4294901760
    %v1665 = vsub.f32 %v1420, %v1664
    %1666 = vmatpush1.msra.mxu0 %v1665
    %1667 = vmatprep.subr.mxu0 0.0
    %1668 = vmatpush1.msra.mxu0 0.0
    %1669 = vmatprep.subr.mxu0 0.0
    %1670 = vmatpush1.msra.mxu0 0.0
    %1671 = vmatprep.subr.mxu0 0.0
    %1672 = vmatpush1.msra.mxu0 0.0
    %1673 = vmatprep.subr.mxu0 0.0
    %1674 = vmatpush1.msra.mxu0 0.0
    %1675 = vmatprep.subr.mxu0 0.0
    %1676 = vmatpush1.msra.mxu0 0.0
    %1677 = vmatprep.subr.mxu0 0.0
    %1678 = vmatpush1.msra.mxu0 0.0
    %1679 = vmatprep.subr.mxu0 0.0
    %1680 = vmatpush1.msra.mxu0 0.0
    %1681 = vmatprep.subr.mxu0 0.0
    %1682 = vmatpush1.msra.mxu0 0.0
    %1683 = vmatprep.subr.mxu0 0.0
    %1684 = vmatpush1.msra.mxu0 0.0
    %1685 = vmatprep.subr.mxu0 0.0
    %1686 = vmatpush1.msra.mxu0 0.0
    %1687 = vmatprep.subr.mxu0 0.0
    %1688 = vmatpush1.msra.mxu0 0.0
    %1689 = vmatprep.subr.mxu0 0.0
    %1690 = vmatpush1.msra.mxu0 0.0
    %1691 = vmatprep.subr.mxu0 0.0
    %1692 = vmatpush1.msra.mxu0 0.0
    %1693 = vmatprep.subr.mxu0 0.0
    %1694 = vmatpush1.msra.mxu0 0.0
    %1695 = vmatprep.subr.mxu0 0.0
    %1696 = vmatpush1.msra.mxu0 0.0
    %1697 = vmatprep.subr.mxu0 0.0
    %1698 = vmatpush1.msra.mxu0 0.0
    %1699 = vmatprep.subr.mxu0 0.0
    %1700 = vmatpush1.msra.mxu0 0.0
    %1701 = vmatprep.subr.mxu0 0.0
    %1702 = vmatpush1.msra.mxu0 0.0
    %1703 = vmatprep.subr.mxu0 0.0
    %1704 = vmatpush1.msra.mxu0 0.0
    %1705 = vmatprep.subr.mxu0 0.0
    %1706 = vmatpush1.msra.mxu0 0.0
    %1707 = vmatprep.subr.mxu0 0.0
    %1708 = vmatpush1.msra.mxu0 0.0
    %1709 = vmatprep.subr.mxu0 0.0
    %1710 = vmatpush1.msra.mxu0 0.0
    %1711 = vmatprep.subr.mxu0 0.0
    %1712 = vmatpush1.msra.mxu0 0.0
    %1713 = vmatprep.subr.mxu0 0.0
    %1714 = vmatpush1.msra.mxu0 0.0
    %1715 = vmatprep.subr.mxu0 0.0
    %1716 = vmatpush1.msra.mxu0 0.0
    %1717 = vmatprep.subr.mxu0 0.0
    %1718 = vmatpush1.msra.mxu0 0.0
    %1719 = vmatprep.subr.mxu0 0.0
    %1720 = vmatpush1.msra.mxu0 0.0
    %1721 = vmatprep.subr.mxu0 0.0
    %1722 = vmatpush1.msra.mxu0 0.0
    %1723 = vmatprep.mubr.f32.mxu0 0.0
    %v1724 = vand.u32 %v1422, 4294901760
    %v1725 = vsub.f32 %v1422, %v1724
    %1726 = vmatmul.mubr.f32.gmra.mrb[0].mxu0 %v1725
    %v1727 = vpop.f32.mrb[0].mxu0
    %v1728 = vadd.f32 %v1630, %v1727
    %v1729 = vpop.f32.mrb[0].mxu0
    %1730 = vmatprep.mubr.f32.mxu0 0.0
    %v1731 = vand.u32 %v1425, 4294901760
    %v1732 = vsub.f32 %v1425, %v1731
    %1733 = vmatmul.mubr.f32.gmra.mrb[0].mxu0 %v1732
    %v1734 = vpop.f32.mrb[0].mxu0
    %v1735 = vadd.f32 %v1636, %v1734
    %v1736 = vpop.f32.mrb[0].mxu0
    %1737 = vmatprep.mubr.f32.mxu0 0.0
    %v1738 = vand.u32 %v1428, 4294901760
    %v1739 = vsub.f32 %v1428, %v1738
    %1740 = vmatmul.mubr.f32.gmra.mrb[0].mxu0 %v1739
    %v1741 = vpop.f32.mrb[0].mxu0
    %v1742 = vadd.f32 %v1642, %v1741
    %v1743 = vpop.f32.mrb[0].mxu0
    %1744 = vmatprep.mubr.f32.mxu0 0.0
    %v1745 = vand.u32 %v1431, 4294901760
    %v1746 = vsub.f32 %v1431, %v1745
    %1747 = vmatmul.mubr.f32.gmra.mrb[0].mxu0 %v1746
    %v1748 = vpop.f32.mrb[0].mxu0
    %v1749 = vadd.f32 %v1648, %v1748
    %v1750 = vpop.f32.mrb[0].mxu0
    %1751 = vdwg.mxu0
    %1752 = vmatprep.subr.mxu0 0.0
    %v1753 = vand.u32 %v1417, 4294901760
    %1754 = vmatpush1.msra.mxu0 %v1753
    %1755 = vmatprep.subr.mxu0 0.0
    %v1756 = vand.u32 %v1418, 4294901760
    %1757 = vmatpush1.msra.mxu0 %v1756
    %1758 = vmatprep.subr.mxu0 0.0
    %v1759 = vand.u32 %v1419, 4294901760
    %1760 = vmatpush1.msra.mxu0 %v1759
    %1761 = vmatprep.subr.mxu0 0.0
    %v1762 = vand.u32 %v1420, 4294901760
    %1763 = vmatpush1.msra.mxu0 %v1762
    %1764 = vmatprep.subr.mxu0 0.0
    %1765 = vmatpush1.msra.mxu0 0.0
    %1766 = vmatprep.subr.mxu0 0.0
    %1767 = vmatpush1.msra.mxu0 0.0
    %1768 = vmatprep.subr.mxu0 0.0
    %1769 = vmatpush1.msra.mxu0 0.0
    %1770 = vmatprep.subr.mxu0 0.0
    %1771 = vmatpush1.msra.mxu0 0.0
    %1772 = vmatprep.subr.mxu0 0.0
    %1773 = vmatpush1.msra.mxu0 0.0
    %1774 = vmatprep.subr.mxu0 0.0
    %1775 = vmatpush1.msra.mxu0 0.0
    %1776 = vmatprep.subr.mxu0 0.0
    %1777 = vmatpush1.msra.mxu0 0.0
    %1778 = vmatprep.subr.mxu0 0.0
    %1779 = vmatpush1.msra.mxu0 0.0
    %1780 = vmatprep.subr.mxu0 0.0
    %1781 = vmatpush1.msra.mxu0 0.0
    %1782 = vmatprep.subr.mxu0 0.0
    %1783 = vmatpush1.msra.mxu0 0.0
    %1784 = vmatprep.subr.mxu0 0.0
    %1785 = vmatpush1.msra.mxu0 0.0
    %1786 = vmatprep.subr.mxu0 0.0
    %1787 = vmatpush1.msra.mxu0 0.0
    %1788 = vmatprep.subr.mxu0 0.0
    %1789 = vmatpush1.msra.mxu0 0.0
    %1790 = vmatprep.subr.mxu0 0.0
    %1791 = vmatpush1.msra.mxu0 0.0
    %1792 = vmatprep.subr.mxu0 0.0
    %1793 = vmatpush1.msra.mxu0 0.0
    %1794 = vmatprep.subr.mxu0 0.0
    %1795 = vmatpush1.msra.mxu0 0.0
    %1796 = vmatprep.subr.mxu0 0.0
    %1797 = vmatpush1.msra.mxu0 0.0
    %1798 = vmatprep.subr.mxu0 0.0
    %1799 = vmatpush1.msra.mxu0 0.0
    %1800 = vmatprep.subr.mxu0 0.0
    %1801 = vmatpush1.msra.mxu0 0.0
    %1802 = vmatprep.subr.mxu0 0.0
    %1803 = vmatpush1.msra.mxu0 0.0
    %1804 = vmatprep.subr.mxu0 0.0
    %1805 = vmatpush1.msra.mxu0 0.0
    %1806 = vmatprep.subr.mxu0 0.0
    %1807 = vmatpush1.msra.mxu0 0.0
    %1808 = vmatprep.subr.mxu0 0.0
    %1809 = vmatpush1.msra.mxu0 0.0
    %1810 = vmatprep.subr.mxu0 0.0
    %1811 = vmatpush1.msra.mxu0 0.0
    %1812 = vmatprep.subr.mxu0 0.0
    %1813 = vmatpush1.msra.mxu0 0.0
    %1814 = vmatprep.subr.mxu0 0.0
    %1815 = vmatpush1.msra.mxu0 0.0
    %1816 = vmatprep.subr.mxu0 0.0
    %1817 = vmatpush1.msra.mxu0 0.0
    %1818 = vmatprep.subr.mxu0 0.0
    %1819 = vmatpush1.msra.mxu0 0.0
    %1820 = vmatprep.mubr.f32.mxu0 0.0
    %v1821 = vand.u32 %v1422, 4294901760
    %v1822 = vsub.f32 %v1422, %v1821
    %v1823 = vand.u32 %v1822, 4294901760
    %1824 = vmatmul.mubr.f32.gmra.mrb[0].mxu0 %v1823
    %v1825 = vpop.f32.mrb[0].mxu0
    %v1826 = vadd.f32 %v1728, %v1825
    %v1827 = vpop.f32.mrb[0].mxu0
    %1828 = vmatprep.mubr.f32.mxu0 0.0
    %v1829 = vand.u32 %v1425, 4294901760
    %v1830 = vsub.f32 %v1425, %v1829
    %v1831 = vand.u32 %v1830, 4294901760
    %1832 = vmatmul.mubr.f32.gmra.mrb[0].mxu0 %v1831
    %v1833 = vpop.f32.mrb[0].mxu0
    %v1834 = vadd.f32 %v1735, %v1833
    %v1835 = vpop.f32.mrb[0].mxu0
    %1836 = vmatprep.mubr.f32.mxu0 0.0
    %v1837 = vand.u32 %v1428, 4294901760
    %v1838 = vsub.f32 %v1428, %v1837
    %v1839 = vand.u32 %v1838, 4294901760
    %1840 = vmatmul.mubr.f32.gmra.mrb[0].mxu0 %v1839
    %v1841 = vpop.f32.mrb[0].mxu0
    %v1842 = vadd.f32 %v1742, %v1841
    %v1843 = vpop.f32.mrb[0].mxu0
    %1844 = vmatprep.mubr.f32.mxu0 0.0
    %v1845 = vand.u32 %v1431, 4294901760
    %v1846 = vsub.f32 %v1431, %v1845
    %v1847 = vand.u32 %v1846, 4294901760
    %1848 = vmatmul.mubr.f32.gmra.mrb[0].mxu0 %v1847
    %v1849 = vpop.f32.mrb[0].mxu0
    %v1850 = vadd.f32 %v1749, %v1849
    %v1851 = vpop.f32.mrb[0].mxu0
    %1852 = vdwg.mxu0
    %1853 = vmatprep.subr.mxu0 0.0
    %v1854 = vand.u32 %v1417, 4294901760
    %v1855 = vsub.f32 %v1417, %v1854
    %v1856 = vand.u32 %v1855, 4294901760
    %1857 = vmatpush1.msra.mxu0 %v1856
    %1858 = vmatprep.subr.mxu0 0.0
    %v1859 = vand.u32 %v1418, 4294901760
    %v1860 = vsub.f32 %v1418, %v1859
    %v1861 = vand.u32 %v1860, 4294901760
    %1862 = vmatpush1.msra.mxu0 %v1861
    %1863 = vmatprep.subr.mxu0 0.0
    %v1864 = vand.u32 %v1419, 4294901760
    %v1865 = vsub.f32 %v1419, %v1864
    %v1866 = vand.u32 %v1865, 4294901760
    %1867 = vmatpush1.msra.mxu0 %v1866
    %1868 = vmatprep.subr.mxu0 0.0
    %v1869 = vand.u32 %v1420, 4294901760
    %v1870 = vsub.f32 %v1420, %v1869
    %v1871 = vand.u32 %v1870, 4294901760
    %1872 = vmatpush1.msra.mxu0 %v1871
    %1873 = vmatprep.subr.mxu0 0.0
    %1874 = vmatpush1.msra.mxu0 0.0
    %1875 = vmatprep.subr.mxu0 0.0
    %1876 = vmatpush1.msra.mxu0 0.0
    %1877 = vmatprep.subr.mxu0 0.0
    %1878 = vmatpush1.msra.mxu0 0.0
    %1879 = vmatprep.subr.mxu0 0.0
    %1880 = vmatpush1.msra.mxu0 0.0
    %1881 = vmatprep.subr.mxu0 0.0
    %1882 = vmatpush1.msra.mxu0 0.0
    %1883 = vmatprep.subr.mxu0 0.0
    %1884 = vmatpush1.msra.mxu0 0.0
    %1885 = vmatprep.subr.mxu0 0.0
    %1886 = vmatpush1.msra.mxu0 0.0
    %1887 = vmatprep.subr.mxu0 0.0
    %1888 = vmatpush1.msra.mxu0 0.0
    %1889 = vmatprep.subr.mxu0 0.0
    %1890 = vmatpush1.msra.mxu0 0.0
    %1891 = vmatprep.subr.mxu0 0.0
    %1892 = vmatpush1.msra.mxu0 0.0
    %1893 = vmatprep.subr.mxu0 0.0
    %1894 = vmatpush1.msra.mxu0 0.0
    %1895 = vmatprep.subr.mxu0 0.0
    %1896 = vmatpush1.msra.mxu0 0.0
    %1897 = vmatprep.subr.mxu0 0.0
    %1898 = vmatpush1.msra.mxu0 0.0
    %1899 = vmatprep.subr.mxu0 0.0
    %1900 = vmatpush1.msra.mxu0 0.0
    %1901 = vmatprep.subr.mxu0 0.0
    %1902 = vmatpush1.msra.mxu0 0.0
    %1903 = vmatprep.subr.mxu0 0.0
    %1904 = vmatpush1.msra.mxu0 0.0
    %1905 = vmatprep.subr.mxu0 0.0
    %1906 = vmatpush1.msra.mxu0 0.0
    %1907 = vmatprep.subr.mxu0 0.0
    %1908 = vmatpush1.msra.mxu0 0.0
    %1909 = vmatprep.subr.mxu0 0.0
    %1910 = vmatpush1.msra.mxu0 0.0
    %1911 = vmatprep.subr.mxu0 0.0
    %1912 = vmatpush1.msra.mxu0 0.0
    %1913 = vmatprep.subr.mxu0 0.0
    %1914 = vmatpush1.msra.mxu0 0.0
    %1915 = vmatprep.subr.mxu0 0.0
    %1916 = vmatpush1.msra.mxu0 0.0
    %1917 = vmatprep.subr.mxu0 0.0
    %1918 = vmatpush1.msra.mxu0 0.0
    %1919 = vmatprep.subr.mxu0 0.0
    %1920 = vmatpush1.msra.mxu0 0.0
    %1921 = vmatprep.subr.mxu0 0.0
    %1922 = vmatpush1.msra.mxu0 0.0
    %1923 = vmatprep.subr.mxu0 0.0
    %1924 = vmatpush1.msra.mxu0 0.0
    %1925 = vmatprep.subr.mxu0 0.0
    %1926 = vmatpush1.msra.mxu0 0.0
    %1927 = vmatprep.subr.mxu0 0.0
    %1928 = vmatpush1.msra.mxu0 0.0
    %1929 = vmatprep.mubr.f32.mxu0 0.0
    %v1930 = vand.u32 %v1422, 4294901760
    %1931 = vmatmul.mubr.f32.gmra.mrb[0].mxu0 %v1930
    %v1932 = vpop.f32.mrb[0].mxu0
    %v1933 = vadd.f32 %v1826, %v1932
    %v1934 = vpop.f32.mrb[0].mxu0
    %1935 = vmatprep.mubr.f32.mxu0 0.0
    %v1936 = vand.u32 %v1425, 4294901760
    %1937 = vmatmul.mubr.f32.gmra.mrb[0].mxu0 %v1936
    %v1938 = vpop.f32.mrb[0].mxu0
    %v1939 = vadd.f32 %v1834, %v1938
    %v1940 = vpop.f32.mrb[0].mxu0
    %1941 = vmatprep.mubr.f32.mxu0 0.0
    %v1942 = vand.u32 %v1428, 4294901760
    %1943 = vmatmul.mubr.f32.gmra.mrb[0].mxu0 %v1942
    %v1944 = vpop.f32.mrb[0].mxu0
    %v1945 = vadd.f32 %v1842, %v1944
    %v1946 = vpop.f32.mrb[0].mxu0
    %1947 = vmatprep.mubr.f32.mxu0 0.0
    %v1948 = vand.u32 %v1431, 4294901760
    %1949 = vmatmul.mubr.f32.gmra.mrb[0].mxu0 %v1948
    %v1950 = vpop.f32.mrb[0].mxu0
    %v1951 = vadd.f32 %v1850, %v1950
    %v1952 = vpop.f32.mrb[0].mxu0
    %1953 = vdwg.mxu0
    %1954 = vmatprep.subr.mxu0 0.0
    %v1955 = vand.u32 %v1417, 4294901760
    %1956 = vmatpush1.msra.mxu0 %v1955
    %1957 = vmatprep.subr.mxu0 0.0
    %v1958 = vand.u32 %v1418, 4294901760
    %1959 = vmatpush1.msra.mxu0 %v1958
    %1960 = vmatprep.subr.mxu0 0.0
    %v1961 = vand.u32 %v1419, 4294901760
    %1962 = vmatpush1.msra.mxu0 %v1961
    %1963 = vmatprep.subr.mxu0 0.0
    %v1964 = vand.u32 %v1420, 4294901760
    %1965 = vmatpush1.msra.mxu0 %v1964
    %1966 = vmatprep.subr.mxu0 0.0
    %1967 = vmatpush1.msra.mxu0 0.0
    %1968 = vmatprep.subr.mxu0 0.0
    %1969 = vmatpush1.msra.mxu0 0.0
    %1970 = vmatprep.subr.mxu0 0.0
    %1971 = vmatpush1.msra.mxu0 0.0
    %1972 = vmatprep.subr.mxu0 0.0
    %1973 = vmatpush1.msra.mxu0 0.0
    %1974 = vmatprep.subr.mxu0 0.0
    %1975 = vmatpush1.msra.mxu0 0.0
    %1976 = vmatprep.subr.mxu0 0.0
    %1977 = vmatpush1.msra.mxu0 0.0
    %1978 = vmatprep.subr.mxu0 0.0
    %1979 = vmatpush1.msra.mxu0 0.0
    %1980 = vmatprep.subr.mxu0 0.0
    %1981 = vmatpush1.msra.mxu0 0.0
    %1982 = vmatprep.subr.mxu0 0.0
    %1983 = vmatpush1.msra.mxu0 0.0
    %1984 = vmatprep.subr.mxu0 0.0
    %1985 = vmatpush1.msra.mxu0 0.0
    %1986 = vmatprep.subr.mxu0 0.0
    %1987 = vmatpush1.msra.mxu0 0.0
    %1988 = vmatprep.subr.mxu0 0.0
    %1989 = vmatpush1.msra.mxu0 0.0
    %1990 = vmatprep.subr.mxu0 0.0
    %1991 = vmatpush1.msra.mxu0 0.0
    %1992 = vmatprep.subr.mxu0 0.0
    %1993 = vmatpush1.msra.mxu0 0.0
    %1994 = vmatprep.subr.mxu0 0.0
    %1995 = vmatpush1.msra.mxu0 0.0
    %1996 = vmatprep.subr.mxu0 0.0
    %1997 = vmatpush1.msra.mxu0 0.0
    %1998 = vmatprep.subr.mxu0 0.0
    %1999 = vmatpush1.msra.mxu0 0.0
    %2000 = vmatprep.subr.mxu0 0.0
    %2001 = vmatpush1.msra.mxu0 0.0
    %2002 = vmatprep.subr.mxu0 0.0
    %2003 = vmatpush1.msra.mxu0 0.0
    %2004 = vmatprep.subr.mxu0 0.0
    %2005 = vmatpush1.msra.mxu0 0.0
    %2006 = vmatprep.subr.mxu0 0.0
    %2007 = vmatpush1.msra.mxu0 0.0
    %2008 = vmatprep.subr.mxu0 0.0
    %2009 = vmatpush1.msra.mxu0 0.0
    %2010 = vmatprep.subr.mxu0 0.0
    %2011 = vmatpush1.msra.mxu0 0.0
    %2012 = vmatprep.subr.mxu0 0.0
    %2013 = vmatpush1.msra.mxu0 0.0
    %2014 = vmatprep.subr.mxu0 0.0
    %2015 = vmatpush1.msra.mxu0 0.0
    %2016 = vmatprep.subr.mxu0 0.0
    %2017 = vmatpush1.msra.mxu0 0.0
    %2018 = vmatprep.subr.mxu0 0.0
    %2019 = vmatpush1.msra.mxu0 0.0
    %2020 = vmatprep.subr.mxu0 0.0
    %2021 = vmatpush1.msra.mxu0 0.0
    %2022 = vmatprep.mubr.f32.mxu0 0.0
    %v2023 = vand.u32 %v1422, 4294901760
    %2024 = vmatmul.mubr.f32.gmra.mrb[0].mxu0 %v2023
    %v2025 = vpop.f32.mrb[0].mxu0
    %v2026 = vadd.f32 %v1933, %v2025
    %v2027 = vpop.f32.mrb[0].mxu0
    %2028 = vmatprep.mubr.f32.mxu0 0.0
    %v2029 = vand.u32 %v1425, 4294901760
    %2030 = vmatmul.mubr.f32.gmra.mrb[0].mxu0 %v2029
    %v2031 = vpop.f32.mrb[0].mxu0
    %v2032 = vadd.f32 %v1939, %v2031
    %v2033 = vpop.f32.mrb[0].mxu0
    %2034 = vmatprep.mubr.f32.mxu0 0.0
    %v2035 = vand.u32 %v1428, 4294901760
    %2036 = vmatmul.mubr.f32.gmra.mrb[0].mxu0 %v2035
    %v2037 = vpop.f32.mrb[0].mxu0
    %v2038 = vadd.f32 %v1945, %v2037
    %v2039 = vpop.f32.mrb[0].mxu0
    %2040 = vmatprep.mubr.f32.mxu0 0.0
    %v2041 = vand.u32 %v1431, 4294901760
    %2042 = vmatmul.mubr.f32.gmra.mrb[0].mxu0 %v2041
    %v2043 = vpop.f32.mrb[0].mxu0
    %v2044 = vadd.f32 %v1951, %v2043
    %v2045 = vpop.f32.mrb[0].mxu0
    %2046 = vdwg.mxu0
    %2049 = vrot.lane.b32.xlu0 %v2038, 96
    %v2050 = vpop.permute.xlu0 %2049
    %2051 = vrot.lane.b32.xlu0 %v2044, 96
    %v2052 = vpop.permute.xlu0 %2051
    %2057 = vrot.lane.b32.xlu0 %v2026, 64
    %v2058 = vpop.permute.xlu0 %2057
    %2059 = vrot.lane.b32.xlu0 %v2032, 64
    %v2060 = vpop.permute.xlu0 %2059
    %s2063 = scalar_lea.vmem [#allocation7], 32
    %v2064 = vld [vmem:[%s2063] sm:$0xff]
    %v2065 = vld [vmem:[%s2063 + $0x8] sm:$0xff]
    %v2066 = vld [vmem:[%s2063 + $0x10] sm:$0xff]
    %v2067 = vld [vmem:[%s2063 + $0x18] sm:$0xff]
    %2068 = vmatprep.subr.mxu0 0.0
    %v2069 = vand.u32 %v2026, 4294901760
    %2070 = vmatpush1.msra.mxu0 %v2069
    %2071 = vmatprep.subr.mxu0 0.0
    %v2072 = vand.u32 %v2032, 4294901760
    %2073 = vmatpush1.msra.mxu0 %v2072
    %2074 = vmatprep.subr.mxu0 0.0
    %v2075 = vand.u32 %v2050, 4294901760
    %2076 = vmatpush1.msra.mxu0 %v2075
    %2077 = vmatprep.subr.mxu0 0.0
    %v2078 = vand.u32 %v2052, 4294901760
    %2079 = vmatpush1.msra.mxu0 %v2078
    %2080 = vmatprep.subr.mxu0 0.0
    %v2081 = vand.u32 %v2058, 4294901760
    %2082 = vmatpush1.msra.mxu0 %v2081
    %2083 = vmatprep.subr.mxu0 0.0
    %v2084 = vand.u32 %v2060, 4294901760
    %2085 = vmatpush1.msra.mxu0 %v2084
    %2086 = vmatprep.subr.mxu0 0.0
    %2087 = vmatpush1.msra.mxu0 0.0
    %2088 = vmatprep.subr.mxu0 0.0
    %2089 = vmatpush1.msra.mxu0 0.0
    %2090 = vmatprep.subr.mxu0 0.0
    %2091 = vmatpush1.msra.mxu0 0.0
    %2092 = vmatprep.subr.mxu0 0.0
    %2093 = vmatpush1.msra.mxu0 0.0
    %2094 = vmatprep.subr.mxu0 0.0
    %2095 = vmatpush1.msra.mxu0 0.0
    %2096 = vmatprep.subr.mxu0 0.0
    %2097 = vmatpush1.msra.mxu0 0.0
    %2098 = vmatprep.subr.mxu0 0.0
    %2099 = vmatpush1.msra.mxu0 0.0
    %2100 = vmatprep.subr.mxu0 0.0
    %2101 = vmatpush1.msra.mxu0 0.0
    %2102 = vmatprep.subr.mxu0 0.0
    %2103 = vmatpush1.msra.mxu0 0.0
    %2104 = vmatprep.subr.mxu0 0.0
    %2105 = vmatpush1.msra.mxu0 0.0
    %2106 = vmatprep.subr.mxu0 0.0
    %2107 = vmatpush1.msra.mxu0 0.0
    %2108 = vmatprep.subr.mxu0 0.0
    %2109 = vmatpush1.msra.mxu0 0.0
    %2110 = vmatprep.subr.mxu0 0.0
    %2111 = vmatpush1.msra.mxu0 0.0
    %2112 = vmatprep.subr.mxu0 0.0
    %2113 = vmatpush1.msra.mxu0 0.0
    %2114 = vmatprep.subr.mxu0 0.0
    %2115 = vmatpush1.msra.mxu0 0.0
    %2116 = vmatprep.subr.mxu0 0.0
    %2117 = vmatpush1.msra.mxu0 0.0
    %2118 = vmatprep.subr.mxu0 0.0
    %2119 = vmatpush1.msra.mxu0 0.0
    %2120 = vmatprep.subr.mxu0 0.0
    %2121 = vmatpush1.msra.mxu0 0.0
    %2122 = vmatprep.subr.mxu0 0.0
    %2123 = vmatpush1.msra.mxu0 0.0
    %2124 = vmatprep.subr.mxu0 0.0
    %2125 = vmatpush1.msra.mxu0 0.0
    %2126 = vmatprep.subr.mxu0 0.0
    %2127 = vmatpush1.msra.mxu0 0.0
    %2128 = vmatprep.subr.mxu0 0.0
    %2129 = vmatpush1.msra.mxu0 0.0
    %2130 = vmatprep.subr.mxu0 0.0
    %2131 = vmatpush1.msra.mxu0 0.0
    %2132 = vmatprep.subr.mxu0 0.0
    %2133 = vmatpush1.msra.mxu0 0.0
    %2134 = vmatprep.subr.mxu0 0.0
    %2135 = vmatpush1.msra.mxu0 0.0
    %2136 = vmatprep.subr.mxu0 0.0
    %2137 = vmatpush1.msra.mxu0 0.0
    %2138 = vmatprep.mubr.f32.mxu0 0.0
    %v2139 = vand.u32 %v733, 4294901760
    %v2140 = vsub.f32 %v733, %v2139
    %v2141 = vand.u32 %v2140, 4294901760
    %v2142 = vsub.f32 %v2140, %v2141
    %v2143 = vand.u32 %v2142, 4294901760
    %2144 = vmatmul.mubr.f32.gmra.mrb[0].mxu0 %v2143
    %v2145 = vpop.f32.mrb[0].mxu0
    %v2146 = vadd.f32 %v2064, %v2145
    %v2147 = vpop.f32.mrb[0].mxu0
    %2148 = vmatprep.mubr.f32.mxu0 0.0
    %v2149 = vand.u32 %v736, 4294901760
    %v2150 = vsub.f32 %v736, %v2149
    %v2151 = vand.u32 %v2150, 4294901760
    %v2152 = vsub.f32 %v2150, %v2151
    %v2153 = vand.u32 %v2152, 4294901760
    %2154 = vmatmul.mubr.f32.gmra.mrb[0].mxu0 %v2153
    %v2155 = vpop.f32.mrb[0].mxu0
    %v2156 = vadd.f32 %v2065, %v2155
    %v2157 = vpop.f32.mrb[0].mxu0
    %2158 = vmatprep.mubr.f32.mxu0 0.0
    %v2159 = vand.u32 %v739, 4294901760
    %v2160 = vsub.f32 %v739, %v2159
    %v2161 = vand.u32 %v2160, 4294901760
    %v2162 = vsub.f32 %v2160, %v2161
    %v2163 = vand.u32 %v2162, 4294901760
    %2164 = vmatmul.mubr.f32.gmra.mrb[0].mxu0 %v2163
    %v2165 = vpop.f32.mrb[0].mxu0
    %v2166 = vadd.f32 %v2066, %v2165
    %v2167 = vpop.f32.mrb[0].mxu0
    %2168 = vmatprep.mubr.f32.mxu0 0.0
    %v2169 = vand.u32 %v742, 4294901760
    %v2170 = vsub.f32 %v742, %v2169
    %v2171 = vand.u32 %v2170, 4294901760
    %v2172 = vsub.f32 %v2170, %v2171
    %v2173 = vand.u32 %v2172, 4294901760
    %2174 = vmatmul.mubr.f32.gmra.mrb[0].mxu0 %v2173
    %v2175 = vpop.f32.mrb[0].mxu0
    %v2176 = vadd.f32 %v2067, %v2175
    %v2177 = vpop.f32.mrb[0].mxu0
    %2178 = vdwg.mxu0
    %2179 = vmatprep.subr.mxu0 0.0
    %v2180 = vand.u32 %v2026, 4294901760
    %v2181 = vsub.f32 %v2026, %v2180
    %v2182 = vand.u32 %v2181, 4294901760
    %v2183 = vsub.f32 %v2181, %v2182
    %v2184 = vand.u32 %v2183, 4294901760
    %2185 = vmatpush1.msra.mxu0 %v2184
    %2186 = vmatprep.subr.mxu0 0.0
    %v2187 = vand.u32 %v2032, 4294901760
    %v2188 = vsub.f32 %v2032, %v2187
    %v2189 = vand.u32 %v2188, 4294901760
    %v2190 = vsub.f32 %v2188, %v2189
    %v2191 = vand.u32 %v2190, 4294901760
    %2192 = vmatpush1.msra.mxu0 %v2191
    %2193 = vmatprep.subr.mxu0 0.0
    %v2194 = vand.u32 %v2050, 4294901760
    %v2195 = vsub.f32 %v2050, %v2194
    %v2196 = vand.u32 %v2195, 4294901760
    %v2197 = vsub.f32 %v2195, %v2196
    %v2198 = vand.u32 %v2197, 4294901760
    %2199 = vmatpush1.msra.mxu0 %v2198
    %2200 = vmatprep.subr.mxu0 0.0
    %v2201 = vand.u32 %v2052, 4294901760
    %v2202 = vsub.f32 %v2052, %v2201
    %v2203 = vand.u32 %v2202, 4294901760
    %v2204 = vsub.f32 %v2202, %v2203
    %v2205 = vand.u32 %v2204, 4294901760
    %2206 = vmatpush1.msra.mxu0 %v2205
    %2207 = vmatprep.subr.mxu0 0.0
    %v2208 = vand.u32 %v2058, 4294901760
    %v2209 = vsub.f32 %v2058, %v2208
    %v2210 = vand.u32 %v2209, 4294901760
    %v2211 = vsub.f32 %v2209, %v2210
    %v2212 = vand.u32 %v2211, 4294901760
    %2213 = vmatpush1.msra.mxu0 %v2212
    %2214 = vmatprep.subr.mxu0 0.0
    %v2215 = vand.u32 %v2060, 4294901760
    %v2216 = vsub.f32 %v2060, %v2215
    %v2217 = vand.u32 %v2216, 4294901760
    %v2218 = vsub.f32 %v2216, %v2217
    %v2219 = vand.u32 %v2218, 4294901760
    %2220 = vmatpush1.msra.mxu0 %v2219
    %2221 = vmatprep.subr.mxu0 0.0
    %2222 = vmatpush1.msra.mxu0 0.0
    %2223 = vmatprep.subr.mxu0 0.0
    %2224 = vmatpush1.msra.mxu0 0.0
    %2225 = vmatprep.subr.mxu0 0.0
    %2226 = vmatpush1.msra.mxu0 0.0
    %2227 = vmatprep.subr.mxu0 0.0
    %2228 = vmatpush1.msra.mxu0 0.0
    %2229 = vmatprep.subr.mxu0 0.0
    %2230 = vmatpush1.msra.mxu0 0.0
    %2231 = vmatprep.subr.mxu0 0.0
    %2232 = vmatpush1.msra.mxu0 0.0
    %2233 = vmatprep.subr.mxu0 0.0
    %2234 = vmatpush1.msra.mxu0 0.0
    %2235 = vmatprep.subr.mxu0 0.0
    %2236 = vmatpush1.msra.mxu0 0.0
    %2237 = vmatprep.subr.mxu0 0.0
    %2238 = vmatpush1.msra.mxu0 0.0
    %2239 = vmatprep.subr.mxu0 0.0
    %2240 = vmatpush1.msra.mxu0 0.0
    %2241 = vmatprep.subr.mxu0 0.0
    %2242 = vmatpush1.msra.mxu0 0.0
    %2243 = vmatprep.subr.mxu0 0.0
    %2244 = vmatpush1.msra.mxu0 0.0
    %2245 = vmatprep.subr.mxu0 0.0
    %2246 = vmatpush1.msra.mxu0 0.0
    %2247 = vmatprep.subr.mxu0 0.0
    %2248 = vmatpush1.msra.mxu0 0.0
    %2249 = vmatprep.subr.mxu0 0.0
    %2250 = vmatpush1.msra.mxu0 0.0
    %2251 = vmatprep.subr.mxu0 0.0
    %2252 = vmatpush1.msra.mxu0 0.0
    %2253 = vmatprep.subr.mxu0 0.0
    %2254 = vmatpush1.msra.mxu0 0.0
    %2255 = vmatprep.subr.mxu0 0.0
    %2256 = vmatpush1.msra.mxu0 0.0
    %2257 = vmatprep.subr.mxu0 0.0
    %2258 = vmatpush1.msra.mxu0 0.0
    %2259 = vmatprep.subr.mxu0 0.0
    %2260 = vmatpush1.msra.mxu0 0.0
    %2261 = vmatprep.subr.mxu0 0.0
    %2262 = vmatpush1.msra.mxu0 0.0
    %2263 = vmatprep.subr.mxu0 0.0
    %2264 = vmatpush1.msra.mxu0 0.0
    %2265 = vmatprep.subr.mxu0 0.0
    %2266 = vmatpush1.msra.mxu0 0.0
    %2267 = vmatprep.subr.mxu0 0.0
    %2268 = vmatpush1.msra.mxu0 0.0
    %2269 = vmatprep.subr.mxu0 0.0
    %2270 = vmatpush1.msra.mxu0 0.0
    %2271 = vmatprep.subr.mxu0 0.0
    %2272 = vmatpush1.msra.mxu0 0.0
    %2273 = vmatprep.mubr.f32.mxu0 0.0
    %v2274 = vand.u32 %v733, 4294901760
    %2275 = vmatmul.mubr.f32.gmra.mrb[0].mxu0 %v2274
    %v2276 = vpop.f32.mrb[0].mxu0
    %v2277 = vadd.f32 %v2146, %v2276
    %v2278 = vpop.f32.mrb[0].mxu0
    %2279 = vmatprep.mubr.f32.mxu0 0.0
    %v2280 = vand.u32 %v736, 4294901760
    %2281 = vmatmul.mubr.f32.gmra.mrb[0].mxu0 %v2280
    %v2282 = vpop.f32.mrb[0].mxu0
    %v2283 = vadd.f32 %v2156, %v2282
    %v2284 = vpop.f32.mrb[0].mxu0
    %2285 = vmatprep.mubr.f32.mxu0 0.0
    %v2286 = vand.u32 %v739, 4294901760
    %2287 = vmatmul.mubr.f32.gmra.mrb[0].mxu0 %v2286
    %v2288 = vpop.f32.mrb[0].mxu0
    %v2289 = vadd.f32 %v2166, %v2288
    %v2290 = vpop.f32.mrb[0].mxu0
    %2291 = vmatprep.mubr.f32.mxu0 0.0
    %v2292 = vand.u32 %v742, 4294901760
    %2293 = vmatmul.mubr.f32.gmra.mrb[0].mxu0 %v2292
    %v2294 = vpop.f32.mrb[0].mxu0
    %v2295 = vadd.f32 %v2176, %v2294
    %v2296 = vpop.f32.mrb[0].mxu0
    %2297 = vdwg.mxu0
    %2298 = vmatprep.subr.mxu0 0.0
    %v2299 = vand.u32 %v2026, 4294901760
    %v2300 = vsub.f32 %v2026, %v2299
    %2301 = vmatpush1.msra.mxu0 %v2300
    %2302 = vmatprep.subr.mxu0 0.0
    %v2303 = vand.u32 %v2032, 4294901760
    %v2304 = vsub.f32 %v2032, %v2303
    %2305 = vmatpush1.msra.mxu0 %v2304
    %2306 = vmatprep.subr.mxu0 0.0
    %v2307 = vand.u32 %v2050, 4294901760
    %v2308 = vsub.f32 %v2050, %v2307
    %2309 = vmatpush1.msra.mxu0 %v2308
    %2310 = vmatprep.subr.mxu0 0.0
    %v2311 = vand.u32 %v2052, 4294901760
    %v2312 = vsub.f32 %v2052, %v2311
    %2313 = vmatpush1.msra.mxu0 %v2312
    %2314 = vmatprep.subr.mxu0 0.0
    %v2315 = vand.u32 %v2058, 4294901760
    %v2316 = vsub.f32 %v2058, %v2315
    %2317 = vmatpush1.msra.mxu0 %v2316
    %2318 = vmatprep.subr.mxu0 0.0
    %v2319 = vand.u32 %v2060, 4294901760
    %v2320 = vsub.f32 %v2060, %v2319
    %2321 = vmatpush1.msra.mxu0 %v2320
    %2322 = vmatprep.subr.mxu0 0.0
    %2323 = vmatpush1.msra.mxu0 0.0
    %2324 = vmatprep.subr.mxu0 0.0
    %2325 = vmatpush1.msra.mxu0 0.0
    %2326 = vmatprep.subr.mxu0 0.0
    %2327 = vmatpush1.msra.mxu0 0.0
    %2328 = vmatprep.subr.mxu0 0.0
    %2329 = vmatpush1.msra.mxu0 0.0
    %2330 = vmatprep.subr.mxu0 0.0
    %2331 = vmatpush1.msra.mxu0 0.0
    %2332 = vmatprep.subr.mxu0 0.0
    %2333 = vmatpush1.msra.mxu0 0.0
    %2334 = vmatprep.subr.mxu0 0.0
    %2335 = vmatpush1.msra.mxu0 0.0
    %2336 = vmatprep.subr.mxu0 0.0
    %2337 = vmatpush1.msra.mxu0 0.0
    %2338 = vmatprep.subr.mxu0 0.0
    %2339 = vmatpush1.msra.mxu0 0.0
    %2340 = vmatprep.subr.mxu0 0.0
    %2341 = vmatpush1.msra.mxu0 0.0
    %2342 = vmatprep.subr.mxu0 0.0
    %2343 = vmatpush1.msra.mxu0 0.0
    %2344 = vmatprep.subr.mxu0 0.0
    %2345 = vmatpush1.msra.mxu0 0.0
    %2346 = vmatprep.subr.mxu0 0.0
    %2347 = vmatpush1.msra.mxu0 0.0
    %2348 = vmatprep.subr.mxu0 0.0
    %2349 = vmatpush1.msra.mxu0 0.0
    %2350 = vmatprep.subr.mxu0 0.0
    %2351 = vmatpush1.msra.mxu0 0.0
    %2352 = vmatprep.subr.mxu0 0.0
    %2353 = vmatpush1.msra.mxu0 0.0
    %2354 = vmatprep.subr.mxu0 0.0
    %2355 = vmatpush1.msra.mxu0 0.0
    %2356 = vmatprep.subr.mxu0 0.0
    %2357 = vmatpush1.msra.mxu0 0.0
    %2358 = vmatprep.subr.mxu0 0.0
    %2359 = vmatpush1.msra.mxu0 0.0
    %2360 = vmatprep.subr.mxu0 0.0
    %2361 = vmatpush1.msra.mxu0 0.0
    %2362 = vmatprep.subr.mxu0 0.0
    %2363 = vmatpush1.msra.mxu0 0.0
    %2364 = vmatprep.subr.mxu0 0.0
    %2365 = vmatpush1.msra.mxu0 0.0
    %2366 = vmatprep.subr.mxu0 0.0
    %2367 = vmatpush1.msra.mxu0 0.0
    %2368 = vmatprep.subr.mxu0 0.0
    %2369 = vmatpush1.msra.mxu0 0.0
    %2370 = vmatprep.subr.mxu0 0.0
    %2371 = vmatpush1.msra.mxu0 0.0
    %2372 = vmatprep.subr.mxu0 0.0
    %2373 = vmatpush1.msra.mxu0 0.0
    %2374 = vmatprep.mubr.f32.mxu0 0.0
    %v2375 = vand.u32 %v733, 4294901760
    %v2376 = vsub.f32 %v733, %v2375
    %2377 = vmatmul.mubr.f32.gmra.mrb[0].mxu0 %v2376
    %v2378 = vpop.f32.mrb[0].mxu0
    %v2379 = vadd.f32 %v2277, %v2378
    %v2380 = vpop.f32.mrb[0].mxu0
    %2381 = vmatprep.mubr.f32.mxu0 0.0
    %v2382 = vand.u32 %v736, 4294901760
    %v2383 = vsub.f32 %v736, %v2382
    %2384 = vmatmul.mubr.f32.gmra.mrb[0].mxu0 %v2383
    %v2385 = vpop.f32.mrb[0].mxu0
    %v2386 = vadd.f32 %v2283, %v2385
    %v2387 = vpop.f32.mrb[0].mxu0
    %2388 = vmatprep.mubr.f32.mxu0 0.0
    %v2389 = vand.u32 %v739, 4294901760
    %v2390 = vsub.f32 %v739, %v2389
    %2391 = vmatmul.mubr.f32.gmra.mrb[0].mxu0 %v2390
    %v2392 = vpop.f32.mrb[0].mxu0
    %v2393 = vadd.f32 %v2289, %v2392
    %v2394 = vpop.f32.mrb[0].mxu0
    %2395 = vmatprep.mubr.f32.mxu0 0.0
    %v2396 = vand.u32 %v742, 4294901760
    %v2397 = vsub.f32 %v742, %v2396
    %2398 = vmatmul.mubr.f32.gmra.mrb[0].mxu0 %v2397
    %v2399 = vpop.f32.mrb[0].mxu0
    %v2400 = vadd.f32 %v2295, %v2399
    %v2401 = vpop.f32.mrb[0].mxu0
    %2402 = vdwg.mxu0
    %2403 = vmatprep.subr.mxu0 0.0
    %v2404 = vand.u32 %v2026, 4294901760
    %2405 = vmatpush1.msra.mxu0 %v2404
    %2406 = vmatprep.subr.mxu0 0.0
    %v2407 = vand.u32 %v2032, 4294901760
    %2408 = vmatpush1.msra.mxu0 %v2407
    %2409 = vmatprep.subr.mxu0 0.0
    %v2410 = vand.u32 %v2050, 4294901760
    %2411 = vmatpush1.msra.mxu0 %v2410
    %2412 = vmatprep.subr.mxu0 0.0
    %v2413 = vand.u32 %v2052, 4294901760
    %2414 = vmatpush1.msra.mxu0 %v2413
    %2415 = vmatprep.subr.mxu0 0.0
    %v2416 = vand.u32 %v2058, 4294901760
    %2417 = vmatpush1.msra.mxu0 %v2416
    %2418 = vmatprep.subr.mxu0 0.0
    %v2419 = vand.u32 %v2060, 4294901760
    %2420 = vmatpush1.msra.mxu0 %v2419
    %2421 = vmatprep.subr.mxu0 0.0
    %2422 = vmatpush1.msra.mxu0 0.0
    %2423 = vmatprep.subr.mxu0 0.0
    %2424 = vmatpush1.msra.mxu0 0.0
    %2425 = vmatprep.subr.mxu0 0.0
    %2426 = vmatpush1.msra.mxu0 0.0
    %2427 = vmatprep.subr.mxu0 0.0
    %2428 = vmatpush1.msra.mxu0 0.0
    %2429 = vmatprep.subr.mxu0 0.0
    %2430 = vmatpush1.msra.mxu0 0.0
    %2431 = vmatprep.subr.mxu0 0.0
    %2432 = vmatpush1.msra.mxu0 0.0
    %2433 = vmatprep.subr.mxu0 0.0
    %2434 = vmatpush1.msra.mxu0 0.0
    %2435 = vmatprep.subr.mxu0 0.0
    %2436 = vmatpush1.msra.mxu0 0.0
    %2437 = vmatprep.subr.mxu0 0.0
    %2438 = vmatpush1.msra.mxu0 0.0
    %2439 = vmatprep.subr.mxu0 0.0
    %2440 = vmatpush1.msra.mxu0 0.0
    %2441 = vmatprep.subr.mxu0 0.0
    %2442 = vmatpush1.msra.mxu0 0.0
    %2443 = vmatprep.subr.mxu0 0.0
    %2444 = vmatpush1.msra.mxu0 0.0
    %2445 = vmatprep.subr.mxu0 0.0
    %2446 = vmatpush1.msra.mxu0 0.0
    %2447 = vmatprep.subr.mxu0 0.0
    %2448 = vmatpush1.msra.mxu0 0.0
    %2449 = vmatprep.subr.mxu0 0.0
    %2450 = vmatpush1.msra.mxu0 0.0
    %2451 = vmatprep.subr.mxu0 0.0
    %2452 = vmatpush1.msra.mxu0 0.0
    %2453 = vmatprep.subr.mxu0 0.0
    %2454 = vmatpush1.msra.mxu0 0.0
    %2455 = vmatprep.subr.mxu0 0.0
    %2456 = vmatpush1.msra.mxu0 0.0
    %2457 = vmatprep.subr.mxu0 0.0
    %2458 = vmatpush1.msra.mxu0 0.0
    %2459 = vmatprep.subr.mxu0 0.0
    %2460 = vmatpush1.msra.mxu0 0.0
    %2461 = vmatprep.subr.mxu0 0.0
    %2462 = vmatpush1.msra.mxu0 0.0
    %2463 = vmatprep.subr.mxu0 0.0
    %2464 = vmatpush1.msra.mxu0 0.0
    %2465 = vmatprep.subr.mxu0 0.0
    %2466 = vmatpush1.msra.mxu0 0.0
    %2467 = vmatprep.subr.mxu0 0.0
    %2468 = vmatpush1.msra.mxu0 0.0
    %2469 = vmatprep.subr.mxu0 0.0
    %2470 = vmatpush1.msra.mxu0 0.0
    %2471 = vmatprep.subr.mxu0 0.0
    %2472 = vmatpush1.msra.mxu0 0.0
    %2473 = vmatprep.mubr.f32.mxu0 0.0
    %v2474 = vand.u32 %v733, 4294901760
    %v2475 = vsub.f32 %v733, %v2474
    %v2476 = vand.u32 %v2475, 4294901760
    %2477 = vmatmul.mubr.f32.gmra.mrb[0].mxu0 %v2476
    %v2478 = vpop.f32.mrb[0].mxu0
    %v2479 = vadd.f32 %v2379, %v2478
    %v2480 = vpop.f32.mrb[0].mxu0
    %2481 = vmatprep.mubr.f32.mxu0 0.0
    %v2482 = vand.u32 %v736, 4294901760
    %v2483 = vsub.f32 %v736, %v2482
    %v2484 = vand.u32 %v2483, 4294901760
    %2485 = vmatmul.mubr.f32.gmra.mrb[0].mxu0 %v2484
    %v2486 = vpop.f32.mrb[0].mxu0
    %v2487 = vadd.f32 %v2386, %v2486
    %v2488 = vpop.f32.mrb[0].mxu0
    %2489 = vmatprep.mubr.f32.mxu0 0.0
    %v2490 = vand.u32 %v739, 4294901760
    %v2491 = vsub.f32 %v739, %v2490
    %v2492 = vand.u32 %v2491, 4294901760
    %2493 = vmatmul.mubr.f32.gmra.mrb[0].mxu0 %v2492
    %v2494 = vpop.f32.mrb[0].mxu0
    %v2495 = vadd.f32 %v2393, %v2494
    %v2496 = vpop.f32.mrb[0].mxu0
    %2497 = vmatprep.mubr.f32.mxu0 0.0
    %v2498 = vand.u32 %v742, 4294901760
    %v2499 = vsub.f32 %v742, %v2498
    %v2500 = vand.u32 %v2499, 4294901760
    %2501 = vmatmul.mubr.f32.gmra.mrb[0].mxu0 %v2500
    %v2502 = vpop.f32.mrb[0].mxu0
    %v2503 = vadd.f32 %v2400, %v2502
    %v2504 = vpop.f32.mrb[0].mxu0
    %2505 = vdwg.mxu0
    %2506 = vmatprep.subr.mxu0 0.0
    %v2507 = vand.u32 %v2026, 4294901760
    %v2508 = vsub.f32 %v2026, %v2507
    %v2509 = vand.u32 %v2508, 4294901760
    %2510 = vmatpush1.msra.mxu0 %v2509
    %2511 = vmatprep.subr.mxu0 0.0
    %v2512 = vand.u32 %v2032, 4294901760
    %v2513 = vsub.f32 %v2032, %v2512
    %v2514 = vand.u32 %v2513, 4294901760
    %2515 = vmatpush1.msra.mxu0 %v2514
    %2516 = vmatprep.subr.mxu0 0.0
    %v2517 = vand.u32 %v2050, 4294901760
    %v2518 = vsub.f32 %v2050, %v2517
    %v2519 = vand.u32 %v2518, 4294901760
    %2520 = vmatpush1.msra.mxu0 %v2519
    %2521 = vmatprep.subr.mxu0 0.0
    %v2522 = vand.u32 %v2052, 4294901760
    %v2523 = vsub.f32 %v2052, %v2522
    %v2524 = vand.u32 %v2523, 4294901760
    %2525 = vmatpush1.msra.mxu0 %v2524
    %2526 = vmatprep.subr.mxu0 0.0
    %v2527 = vand.u32 %v2058, 4294901760
    %v2528 = vsub.f32 %v2058, %v2527
    %v2529 = vand.u32 %v2528, 4294901760
    %2530 = vmatpush1.msra.mxu0 %v2529
    %2531 = vmatprep.subr.mxu0 0.0
    %v2532 = vand.u32 %v2060, 4294901760
    %v2533 = vsub.f32 %v2060, %v2532
    %v2534 = vand.u32 %v2533, 4294901760
    %2535 = vmatpush1.msra.mxu0 %v2534
    %2536 = vmatprep.subr.mxu0 0.0
    %2537 = vmatpush1.msra.mxu0 0.0
    %2538 = vmatprep.subr.mxu0 0.0
    %2539 = vmatpush1.msra.mxu0 0.0
    %2540 = vmatprep.subr.mxu0 0.0
    %2541 = vmatpush1.msra.mxu0 0.0
    %2542 = vmatprep.subr.mxu0 0.0
    %2543 = vmatpush1.msra.mxu0 0.0
    %2544 = vmatprep.subr.mxu0 0.0
    %2545 = vmatpush1.msra.mxu0 0.0
    %2546 = vmatprep.subr.mxu0 0.0
    %2547 = vmatpush1.msra.mxu0 0.0
    %2548 = vmatprep.subr.mxu0 0.0
    %2549 = vmatpush1.msra.mxu0 0.0
    %2550 = vmatprep.subr.mxu0 0.0
    %2551 = vmatpush1.msra.mxu0 0.0
    %2552 = vmatprep.subr.mxu0 0.0
    %2553 = vmatpush1.msra.mxu0 0.0
    %2554 = vmatprep.subr.mxu0 0.0
    %2555 = vmatpush1.msra.mxu0 0.0
    %2556 = vmatprep.subr.mxu0 0.0
    %2557 = vmatpush1.msra.mxu0 0.0
    %2558 = vmatprep.subr.mxu0 0.0
    %2559 = vmatpush1.msra.mxu0 0.0
    %2560 = vmatprep.subr.mxu0 0.0
    %2561 = vmatpush1.msra.mxu0 0.0
    %2562 = vmatprep.subr.mxu0 0.0
    %2563 = vmatpush1.msra.mxu0 0.0
    %2564 = vmatprep.subr.mxu0 0.0
    %2565 = vmatpush1.msra.mxu0 0.0
    %2566 = vmatprep.subr.mxu0 0.0
    %2567 = vmatpush1.msra.mxu0 0.0
    %2568 = vmatprep.subr.mxu0 0.0
    %2569 = vmatpush1.msra.mxu0 0.0
    %2570 = vmatprep.subr.mxu0 0.0
    %2571 = vmatpush1.msra.mxu0 0.0
    %2572 = vmatprep.subr.mxu0 0.0
    %2573 = vmatpush1.msra.mxu0 0.0
    %2574 = vmatprep.subr.mxu0 0.0
    %2575 = vmatpush1.msra.mxu0 0.0
    %2576 = vmatprep.subr.mxu0 0.0
    %2577 = vmatpush1.msra.mxu0 0.0
    %2578 = vmatprep.subr.mxu0 0.0
    %2579 = vmatpush1.msra.mxu0 0.0
    %2580 = vmatprep.subr.mxu0 0.0
    %2581 = vmatpush1.msra.mxu0 0.0
    %2582 = vmatprep.subr.mxu0 0.0
    %2583 = vmatpush1.msra.mxu0 0.0
    %2584 = vmatprep.subr.mxu0 0.0
    %2585 = vmatpush1.msra.mxu0 0.0
    %2586 = vmatprep.subr.mxu0 0.0
    %2587 = vmatpush1.msra.mxu0 0.0
    %2588 = vmatprep.mubr.f32.mxu0 0.0
    %v2589 = vand.u32 %v733, 4294901760
    %2590 = vmatmul.mubr.f32.gmra.mrb[0].mxu0 %v2589
    %v2591 = vpop.f32.mrb[0].mxu0
    %v2592 = vadd.f32 %v2479, %v2591
    %v2593 = vpop.f32.mrb[0].mxu0
    %2594 = vmatprep.mubr.f32.mxu0 0.0
    %v2595 = vand.u32 %v736, 4294901760
    %2596 = vmatmul.mubr.f32.gmra.mrb[0].mxu0 %v2595
    %v2597 = vpop.f32.mrb[0].mxu0
    %v2598 = vadd.f32 %v2487, %v2597
    %v2599 = vpop.f32.mrb[0].mxu0
    %2600 = vmatprep.mubr.f32.mxu0 0.0
    %v2601 = vand.u32 %v739, 4294901760
    %2602 = vmatmul.mubr.f32.gmra.mrb[0].mxu0 %v2601
    %v2603 = vpop.f32.mrb[0].mxu0
    %v2604 = vadd.f32 %v2495, %v2603
    %v2605 = vpop.f32.mrb[0].mxu0
    %2606 = vmatprep.mubr.f32.mxu0 0.0
    %v2607 = vand.u32 %v742, 4294901760
    %2608 = vmatmul.mubr.f32.gmra.mrb[0].mxu0 %v2607
    %v2609 = vpop.f32.mrb[0].mxu0
    %v2610 = vadd.f32 %v2503, %v2609
    %v2611 = vpop.f32.mrb[0].mxu0
    %2612 = vdwg.mxu0
    %2613 = vmatprep.subr.mxu0 0.0
    %v2614 = vand.u32 %v2026, 4294901760
    %2615 = vmatpush1.msra.mxu0 %v2614
    %2616 = vmatprep.subr.mxu0 0.0
    %v2617 = vand.u32 %v2032, 4294901760
    %2618 = vmatpush1.msra.mxu0 %v2617
    %2619 = vmatprep.subr.mxu0 0.0
    %v2620 = vand.u32 %v2050, 4294901760
    %2621 = vmatpush1.msra.mxu0 %v2620
    %2622 = vmatprep.subr.mxu0 0.0
    %v2623 = vand.u32 %v2052, 4294901760
    %2624 = vmatpush1.msra.mxu0 %v2623
    %2625 = vmatprep.subr.mxu0 0.0
    %v2626 = vand.u32 %v2058, 4294901760
    %2627 = vmatpush1.msra.mxu0 %v2626
    %2628 = vmatprep.subr.mxu0 0.0
    %v2629 = vand.u32 %v2060, 4294901760
    %2630 = vmatpush1.msra.mxu0 %v2629
    %2631 = vmatprep.subr.mxu0 0.0
    %2632 = vmatpush1.msra.mxu0 0.0
    %2633 = vmatprep.subr.mxu0 0.0
    %2634 = vmatpush1.msra.mxu0 0.0
    %2635 = vmatprep.subr.mxu0 0.0
    %2636 = vmatpush1.msra.mxu0 0.0
    %2637 = vmatprep.subr.mxu0 0.0
    %2638 = vmatpush1.msra.mxu0 0.0
    %2639 = vmatprep.subr.mxu0 0.0
    %2640 = vmatpush1.msra.mxu0 0.0
    %2641 = vmatprep.subr.mxu0 0.0
    %2642 = vmatpush1.msra.mxu0 0.0
    %2643 = vmatprep.subr.mxu0 0.0
    %2644 = vmatpush1.msra.mxu0 0.0
    %2645 = vmatprep.subr.mxu0 0.0
    %2646 = vmatpush1.msra.mxu0 0.0
    %2647 = vmatprep.subr.mxu0 0.0
    %2648 = vmatpush1.msra.mxu0 0.0
    %2649 = vmatprep.subr.mxu0 0.0
    %2650 = vmatpush1.msra.mxu0 0.0
    %2651 = vmatprep.subr.mxu0 0.0
    %2652 = vmatpush1.msra.mxu0 0.0
    %2653 = vmatprep.subr.mxu0 0.0
    %2654 = vmatpush1.msra.mxu0 0.0
    %2655 = vmatprep.subr.mxu0 0.0
    %2656 = vmatpush1.msra.mxu0 0.0
    %2657 = vmatprep.subr.mxu0 0.0
    %2658 = vmatpush1.msra.mxu0 0.0
    %2659 = vmatprep.subr.mxu0 0.0
    %2660 = vmatpush1.msra.mxu0 0.0
    %2661 = vmatprep.subr.mxu0 0.0
    %2662 = vmatpush1.msra.mxu0 0.0
    %2663 = vmatprep.subr.mxu0 0.0
    %2664 = vmatpush1.msra.mxu0 0.0
    %2665 = vmatprep.subr.mxu0 0.0
    %2666 = vmatpush1.msra.mxu0 0.0
    %2667 = vmatprep.subr.mxu0 0.0
    %2668 = vmatpush1.msra.mxu0 0.0
    %2669 = vmatprep.subr.mxu0 0.0
    %2670 = vmatpush1.msra.mxu0 0.0
    %2671 = vmatprep.subr.mxu0 0.0
    %2672 = vmatpush1.msra.mxu0 0.0
    %2673 = vmatprep.subr.mxu0 0.0
    %2674 = vmatpush1.msra.mxu0 0.0
    %2675 = vmatprep.subr.mxu0 0.0
    %2676 = vmatpush1.msra.mxu0 0.0
    %2677 = vmatprep.subr.mxu0 0.0
    %2678 = vmatpush1.msra.mxu0 0.0
    %2679 = vmatprep.subr.mxu0 0.0
    %2680 = vmatpush1.msra.mxu0 0.0
    %2681 = vmatprep.subr.mxu0 0.0
    %2682 = vmatpush1.msra.mxu0 0.0
    %2683 = vmatprep.mubr.f32.mxu0 0.0
    %v2684 = vand.u32 %v733, 4294901760
    %2685 = vmatmul.mubr.f32.gmra.mrb[0].mxu0 %v2684
    %v2686 = vpop.f32.mrb[0].mxu0
    %v2687 = vadd.f32 %v2592, %v2686
    %v2688 = vpop.f32.mrb[0].mxu0
    %2689 = vmatprep.mubr.f32.mxu0 0.0
    %v2690 = vand.u32 %v736, 4294901760
    %2691 = vmatmul.mubr.f32.gmra.mrb[0].mxu0 %v2690
    %v2692 = vpop.f32.mrb[0].mxu0
    %v2693 = vadd.f32 %v2598, %v2692
    %v2694 = vpop.f32.mrb[0].mxu0
    %2695 = vmatprep.mubr.f32.mxu0 0.0
    %v2696 = vand.u32 %v739, 4294901760
    %2697 = vmatmul.mubr.f32.gmra.mrb[0].mxu0 %v2696
    %v2698 = vpop.f32.mrb[0].mxu0
    %v2699 = vadd.f32 %v2604, %v2698
    %v2700 = vpop.f32.mrb[0].mxu0
    %2701 = vmatprep.mubr.f32.mxu0 0.0
    %v2702 = vand.u32 %v742, 4294901760
    %2703 = vmatmul.mubr.f32.gmra.mrb[0].mxu0 %v2702
    %v2704 = vpop.f32.mrb[0].mxu0
    %v2705 = vadd.f32 %v2610, %v2704
    %v2706 = vpop.f32.mrb[0].mxu0
    %2707 = vdwg.mxu0
    %v2708 = vmax.f32 %v2687, 0.0
    %v2709 = vmax.f32 %v2693, 0.0
    %v2710 = vmax.f32 %v2699, 0.0
    %v2711 = vmax.f32 %v2705, 0.0
    %v2712 = vmul.f32 %v2708, %v2708
    %v2713 = vmul.f32 %v2709, %v2709
    %v2714 = vmul.f32 %v2710, %v2710
    %v2715 = vmul.f32 %v2711, %v2711
    %v2716 = vsel %vm84, %v2712, 0.0
    %2717 = vadd.xlane.f32.xlu0 %v2716
    %v2718 = vpop.xlane.xlu0 %2717
    %v2719 = vsel %vm84, %v2713, 0.0
    %2720 = vadd.xlane.f32.xlu0 %v2719
    %v2721 = vpop.xlane.xlu0 %2720
    %v2722 = vsel %vm84, %v2714, 0.0
    %2723 = vadd.xlane.f32.xlu0 %v2722
    %v2724 = vpop.xlane.xlu0 %2723
    %v2725 = vsel %vm84, %v2715, 0.0
    %2726 = vadd.xlane.f32.xlu0 %v2725
    %v2727 = vpop.xlane.xlu0 %2726
    %v2728 = vmax.f32 %v2718, 1e-24
    %v2729 = vmax.f32 %v2721, 1e-24
    %v2730 = vmax.f32 %v2724, 1e-24
    %v2731 = vmax.f32 %v2727, 1e-24
    %v2732 = vrsqrt.pop %v2728
    %v2733 = vrsqrt.pop %v2729
    %v2734 = vrsqrt.pop %v2730
    %v2735 = vrsqrt.pop %v2731
    %v2736 = vmul.f32 %v2708, %v2732
    %v2737 = vmul.f32 %v2709, %v2733
    %v2738 = vmul.f32 %v2710, %v2734
    %v2739 = vmul.f32 %v2711, %v2735
    %v2740 = vadd.f32 %v2736, %v76
    %v2741 = vadd.f32 %v2737, %v77
    %v2742 = vadd.f32 %v2738, %v78
    %v2743 = vadd.f32 %v2739, %v79
    %v2744 = vmax.f32 %v2740, 0.0
    %v2745 = vmax.f32 %v2741, 0.0
    %v2746 = vmax.f32 %v2742, 0.0
    %v2747 = vmax.f32 %v2743, 0.0
    %s2748 = scalar_lea.vmem [#allocation6], 64
    %v2749 = vld [vmem:[%s2748] sm:$0xff]
    %v2750 = vld [vmem:[%s2748 + $0x8] sm:$0xff]
    %v2751 = vld [vmem:[%s2748 + $0x10] sm:$0xff]
    %v2752 = vld [vmem:[%s2748 + $0x18] sm:$0xff]
    %v2754 = vsel %vm84, %v2744, 0
    %v2757 = vsel %vm84, %v2745, 0
    %v2760 = vsel %vm84, %v2746, 0
    %v2763 = vsel %vm84, %v2747, 0
    %2765 = vmatprep.subr.mxu0 0.0
    %v2766 = vand.u32 %v2749, 4294901760
    %2767 = vmatpush1.msra.mxu0 %v2766
    %2768 = vmatprep.subr.mxu0 0.0
    %v2769 = vand.u32 %v2750, 4294901760
    %2770 = vmatpush1.msra.mxu0 %v2769
    %2771 = vmatprep.subr.mxu0 0.0
    %v2772 = vand.u32 %v2751, 4294901760
    %2773 = vmatpush1.msra.mxu0 %v2772
    %2774 = vmatprep.subr.mxu0 0.0
    %v2775 = vand.u32 %v2752, 4294901760
    %2776 = vmatpush1.msra.mxu0 %v2775
    %2777 = vmatprep.subr.mxu0 0.0
    %2778 = vmatpush1.msra.mxu0 0.0
    %2779 = vmatprep.subr.mxu0 0.0
    %2780 = vmatpush1.msra.mxu0 0.0
    %2781 = vmatprep.subr.mxu0 0.0
    %2782 = vmatpush1.msra.mxu0 0.0
    %2783 = vmatprep.subr.mxu0 0.0
    %2784 = vmatpush1.msra.mxu0 0.0
    %2785 = vmatprep.subr.mxu0 0.0
    %2786 = vmatpush1.msra.mxu0 0.0
    %2787 = vmatprep.subr.mxu0 0.0
    %2788 = vmatpush1.msra.mxu0 0.0
    %2789 = vmatprep.subr.mxu0 0.0
    %2790 = vmatpush1.msra.mxu0 0.0
    %2791 = vmatprep.subr.mxu0 0.0
    %2792 = vmatpush1.msra.mxu0 0.0
    %2793 = vmatprep.subr.mxu0 0.0
    %2794 = vmatpush1.msra.mxu0 0.0
    %2795 = vmatprep.subr.mxu0 0.0
    %2796 = vmatpush1.msra.mxu0 0.0
    %2797 = vmatprep.subr.mxu0 0.0
    %2798 = vmatpush1.msra.mxu0 0.0
    %2799 = vmatprep.subr.mxu0 0.0
    %2800 = vmatpush1.msra.mxu0 0.0
    %2801 = vmatprep.subr.mxu0 0.0
    %2802 = vmatpush1.msra.mxu0 0.0
    %2803 = vmatprep.subr.mxu0 0.0
    %2804 = vmatpush1.msra.mxu0 0.0
    %2805 = vmatprep.subr.mxu0 0.0
    %2806 = vmatpush1.msra.mxu0 0.0
    %2807 = vmatprep.subr.mxu0 0.0
    %2808 = vmatpush1.msra.mxu0 0.0
    %2809 = vmatprep.subr.mxu0 0.0
    %2810 = vmatpush1.msra.mxu0 0.0
    %2811 = vmatprep.subr.mxu0 0.0
    %2812 = vmatpush1.msra.mxu0 0.0
    %2813 = vmatprep.subr.mxu0 0.0
    %2814 = vmatpush1.msra.mxu0 0.0
    %2815 = vmatprep.subr.mxu0 0.0
    %2816 = vmatpush1.msra.mxu0 0.0
    %2817 = vmatprep.subr.mxu0 0.0
    %2818 = vmatpush1.msra.mxu0 0.0
    %2819 = vmatprep.subr.mxu0 0.0
    %2820 = vmatpush1.msra.mxu0 0.0
    %2821 = vmatprep.subr.mxu0 0.0
    %2822 = vmatpush1.msra.mxu0 0.0
    %2823 = vmatprep.subr.mxu0 0.0
    %2824 = vmatpush1.msra.mxu0 0.0
    %2825 = vmatprep.subr.mxu0 0.0
    %2826 = vmatpush1.msra.mxu0 0.0
    %2827 = vmatprep.subr.mxu0 0.0
    %2828 = vmatpush1.msra.mxu0 0.0
    %2829 = vmatprep.subr.mxu0 0.0
    %2830 = vmatpush1.msra.mxu0 0.0
    %2831 = vmatprep.subr.mxu0 0.0
    %2832 = vmatpush1.msra.mxu0 0.0
    %2833 = vmatprep.mubr.f32.mxu0 0.0
    %v2834 = vand.u32 %v2754, 4294901760
    %v2835 = vsub.f32 %v2754, %v2834
    %v2836 = vand.u32 %v2835, 4294901760
    %v2837 = vsub.f32 %v2835, %v2836
    %v2838 = vand.u32 %v2837, 4294901760
    %2839 = vmatmul.mubr.f32.gmra.mrb[0].mxu0 %v2838
    %v2840 = vpop.f32.mrb[0].mxu0
    %v2841 = vadd.f32 0.0, %v2840
    %v2842 = vpop.f32.mrb[0].mxu0
    %2843 = vmatprep.mubr.f32.mxu0 0.0
    %v2844 = vand.u32 %v2757, 4294901760
    %v2845 = vsub.f32 %v2757, %v2844
    %v2846 = vand.u32 %v2845, 4294901760
    %v2847 = vsub.f32 %v2845, %v2846
    %v2848 = vand.u32 %v2847, 4294901760
    %2849 = vmatmul.mubr.f32.gmra.mrb[0].mxu0 %v2848
    %v2850 = vpop.f32.mrb[0].mxu0
    %v2851 = vadd.f32 0.0, %v2850
    %v2852 = vpop.f32.mrb[0].mxu0
    %2853 = vmatprep.mubr.f32.mxu0 0.0
    %v2854 = vand.u32 %v2760, 4294901760
    %v2855 = vsub.f32 %v2760, %v2854
    %v2856 = vand.u32 %v2855, 4294901760
    %v2857 = vsub.f32 %v2855, %v2856
    %v2858 = vand.u32 %v2857, 4294901760
    %2859 = vmatmul.mubr.f32.gmra.mrb[0].mxu0 %v2858
    %v2860 = vpop.f32.mrb[0].mxu0
    %v2861 = vadd.f32 0.0, %v2860
    %v2862 = vpop.f32.mrb[0].mxu0
    %2863 = vmatprep.mubr.f32.mxu0 0.0
    %v2864 = vand.u32 %v2763, 4294901760
    %v2865 = vsub.f32 %v2763, %v2864
    %v2866 = vand.u32 %v2865, 4294901760
    %v2867 = vsub.f32 %v2865, %v2866
    %v2868 = vand.u32 %v2867, 4294901760
    %2869 = vmatmul.mubr.f32.gmra.mrb[0].mxu0 %v2868
    %v2870 = vpop.f32.mrb[0].mxu0
    %v2871 = vadd.f32 0.0, %v2870
    %v2872 = vpop.f32.mrb[0].mxu0
    %2873 = vdwg.mxu0
    %2874 = vmatprep.subr.mxu0 0.0
    %v2875 = vand.u32 %v2749, 4294901760
    %v2876 = vsub.f32 %v2749, %v2875
    %v2877 = vand.u32 %v2876, 4294901760
    %v2878 = vsub.f32 %v2876, %v2877
    %v2879 = vand.u32 %v2878, 4294901760
    %2880 = vmatpush1.msra.mxu0 %v2879
    %2881 = vmatprep.subr.mxu0 0.0
    %v2882 = vand.u32 %v2750, 4294901760
    %v2883 = vsub.f32 %v2750, %v2882
    %v2884 = vand.u32 %v2883, 4294901760
    %v2885 = vsub.f32 %v2883, %v2884
    %v2886 = vand.u32 %v2885, 4294901760
    %2887 = vmatpush1.msra.mxu0 %v2886
    %2888 = vmatprep.subr.mxu0 0.0
    %v2889 = vand.u32 %v2751, 4294901760
    %v2890 = vsub.f32 %v2751, %v2889
    %v2891 = vand.u32 %v2890, 4294901760
    %v2892 = vsub.f32 %v2890, %v2891
    %v2893 = vand.u32 %v2892, 4294901760
    %2894 = vmatpush1.msra.mxu0 %v2893
    %2895 = vmatprep.subr.mxu0 0.0
    %v2896 = vand.u32 %v2752, 4294901760
    %v2897 = vsub.f32 %v2752, %v2896
    %v2898 = vand.u32 %v2897, 4294901760
    %v2899 = vsub.f32 %v2897, %v2898
    %v2900 = vand.u32 %v2899, 4294901760
    %2901 = vmatpush1.msra.mxu0 %v2900
    %2902 = vmatprep.subr.mxu0 0.0
    %2903 = vmatpush1.msra.mxu0 0.0
    %2904 = vmatprep.subr.mxu0 0.0
    %2905 = vmatpush1.msra.mxu0 0.0
    %2906 = vmatprep.subr.mxu0 0.0
    %2907 = vmatpush1.msra.mxu0 0.0
    %2908 = vmatprep.subr.mxu0 0.0
    %2909 = vmatpush1.msra.mxu0 0.0
    %2910 = vmatprep.subr.mxu0 0.0
    %2911 = vmatpush1.msra.mxu0 0.0
    %2912 = vmatprep.subr.mxu0 0.0
    %2913 = vmatpush1.msra.mxu0 0.0
    %2914 = vmatprep.subr.mxu0 0.0
    %2915 = vmatpush1.msra.mxu0 0.0
    %2916 = vmatprep.subr.mxu0 0.0
    %2917 = vmatpush1.msra.mxu0 0.0
    %2918 = vmatprep.subr.mxu0 0.0
    %2919 = vmatpush1.msra.mxu0 0.0
    %2920 = vmatprep.subr.mxu0 0.0
    %2921 = vmatpush1.msra.mxu0 0.0
    %2922 = vmatprep.subr.mxu0 0.0
    %2923 = vmatpush1.msra.mxu0 0.0
    %2924 = vmatprep.subr.mxu0 0.0
    %2925 = vmatpush1.msra.mxu0 0.0
    %2926 = vmatprep.subr.mxu0 0.0
    %2927 = vmatpush1.msra.mxu0 0.0
    %2928 = vmatprep.subr.mxu0 0.0
    %2929 = vmatpush1.msra.mxu0 0.0
    %2930 = vmatprep.subr.mxu0 0.0
    %2931 = vmatpush1.msra.mxu0 0.0
    %2932 = vmatprep.subr.mxu0 0.0
    %2933 = vmatpush1.msra.mxu0 0.0
    %2934 = vmatprep.subr.mxu0 0.0
    %2935 = vmatpush1.msra.mxu0 0.0
    %2936 = vmatprep.subr.mxu0 0.0
    %2937 = vmatpush1.msra.mxu0 0.0
    %2938 = vmatprep.subr.mxu0 0.0
    %2939 = vmatpush1.msra.mxu0 0.0
    %2940 = vmatprep.subr.mxu0 0.0
    %2941 = vmatpush1.msra.mxu0 0.0
    %2942 = vmatprep.subr.mxu0 0.0
    %2943 = vmatpush1.msra.mxu0 0.0
    %2944 = vmatprep.subr.mxu0 0.0
    %2945 = vmatpush1.msra.mxu0 0.0
    %2946 = vmatprep.subr.mxu0 0.0
    %2947 = vmatpush1.msra.mxu0 0.0
    %2948 = vmatprep.subr.mxu0 0.0
    %2949 = vmatpush1.msra.mxu0 0.0
    %2950 = vmatprep.subr.mxu0 0.0
    %2951 = vmatpush1.msra.mxu0 0.0
    %2952 = vmatprep.subr.mxu0 0.0
    %2953 = vmatpush1.msra.mxu0 0.0
    %2954 = vmatprep.subr.mxu0 0.0
    %2955 = vmatpush1.msra.mxu0 0.0
    %2956 = vmatprep.subr.mxu0 0.0
    %2957 = vmatpush1.msra.mxu0 0.0
    %2958 = vmatprep.mubr.f32.mxu0 0.0
    %v2959 = vand.u32 %v2754, 4294901760
    %2960 = vmatmul.mubr.f32.gmra.mrb[0].mxu0 %v2959
    %v2961 = vpop.f32.mrb[0].mxu0
    %v2962 = vadd.f32 %v2841, %v2961
    %v2963 = vpop.f32.mrb[0].mxu0
    %2964 = vmatprep.mubr.f32.mxu0 0.0
    %v2965 = vand.u32 %v2757, 4294901760
    %2966 = vmatmul.mubr.f32.gmra.mrb[0].mxu0 %v2965
    %v2967 = vpop.f32.mrb[0].mxu0
    %v2968 = vadd.f32 %v2851, %v2967
    %v2969 = vpop.f32.mrb[0].mxu0
    %2970 = vmatprep.mubr.f32.mxu0 0.0
    %v2971 = vand.u32 %v2760, 4294901760
    %2972 = vmatmul.mubr.f32.gmra.mrb[0].mxu0 %v2971
    %v2973 = vpop.f32.mrb[0].mxu0
    %v2974 = vadd.f32 %v2861, %v2973
    %v2975 = vpop.f32.mrb[0].mxu0
    %2976 = vmatprep.mubr.f32.mxu0 0.0
    %v2977 = vand.u32 %v2763, 4294901760
    %2978 = vmatmul.mubr.f32.gmra.mrb[0].mxu0 %v2977
    %v2979 = vpop.f32.mrb[0].mxu0
    %v2980 = vadd.f32 %v2871, %v2979
    %v2981 = vpop.f32.mrb[0].mxu0
    %2982 = vdwg.mxu0
    %2983 = vmatprep.subr.mxu0 0.0
    %v2984 = vand.u32 %v2749, 4294901760
    %v2985 = vsub.f32 %v2749, %v2984
    %2986 = vmatpush1.msra.mxu0 %v2985
    %2987 = vmatprep.subr.mxu0 0.0
    %v2988 = vand.u32 %v2750, 4294901760
    %v2989 = vsub.f32 %v2750, %v2988
    %2990 = vmatpush1.msra.mxu0 %v2989
    %2991 = vmatprep.subr.mxu0 0.0
    %v2992 = vand.u32 %v2751, 4294901760
    %v2993 = vsub.f32 %v2751, %v2992
    %2994 = vmatpush1.msra.mxu0 %v2993
    %2995 = vmatprep.subr.mxu0 0.0
    %v2996 = vand.u32 %v2752, 4294901760
    %v2997 = vsub.f32 %v2752, %v2996
    %2998 = vmatpush1.msra.mxu0 %v2997
    %2999 = vmatprep.subr.mxu0 0.0
    %3000 = vmatpush1.msra.mxu0 0.0
    %3001 = vmatprep.subr.mxu0 0.0
    %3002 = vmatpush1.msra.mxu0 0.0
    %3003 = vmatprep.subr.mxu0 0.0
    %3004 = vmatpush1.msra.mxu0 0.0
    %3005 = vmatprep.subr.mxu0 0.0
    %3006 = vmatpush1.msra.mxu0 0.0
    %3007 = vmatprep.subr.mxu0 0.0
    %3008 = vmatpush1.msra.mxu0 0.0
    %3009 = vmatprep.subr.mxu0 0.0
    %3010 = vmatpush1.msra.mxu0 0.0
    %3011 = vmatprep.subr.mxu0 0.0
    %3012 = vmatpush1.msra.mxu0 0.0
    %3013 = vmatprep.subr.mxu0 0.0
    %3014 = vmatpush1.msra.mxu0 0.0
    %3015 = vmatprep.subr.mxu0 0.0
    %3016 = vmatpush1.msra.mxu0 0.0
    %3017 = vmatprep.subr.mxu0 0.0
    %3018 = vmatpush1.msra.mxu0 0.0
    %3019 = vmatprep.subr.mxu0 0.0
    %3020 = vmatpush1.msra.mxu0 0.0
    %3021 = vmatprep.subr.mxu0 0.0
    %3022 = vmatpush1.msra.mxu0 0.0
    %3023 = vmatprep.subr.mxu0 0.0
    %3024 = vmatpush1.msra.mxu0 0.0
    %3025 = vmatprep.subr.mxu0 0.0
    %3026 = vmatpush1.msra.mxu0 0.0
    %3027 = vmatprep.subr.mxu0 0.0
    %3028 = vmatpush1.msra.mxu0 0.0
    %3029 = vmatprep.subr.mxu0 0.0
    %3030 = vmatpush1.msra.mxu0 0.0
    %3031 = vmatprep.subr.mxu0 0.0
    %3032 = vmatpush1.msra.mxu0 0.0
    %3033 = vmatprep.subr.mxu0 0.0
    %3034 = vmatpush1.msra.mxu0 0.0
    %3035 = vmatprep.subr.mxu0 0.0
    %3036 = vmatpush1.msra.mxu0 0.0
    %3037 = vmatprep.subr.mxu0 0.0
    %3038 = vmatpush1.msra.mxu0 0.0
    %3039 = vmatprep.subr.mxu0 0.0
    %3040 = vmatpush1.msra.mxu0 0.0
    %3041 = vmatprep.subr.mxu0 0.0
    %3042 = vmatpush1.msra.mxu0 0.0
    %3043 = vmatprep.subr.mxu0 0.0
    %3044 = vmatpush1.msra.mxu0 0.0
    %3045 = vmatprep.subr.mxu0 0.0
    %3046 = vmatpush1.msra.mxu0 0.0
    %3047 = vmatprep.subr.mxu0 0.0
    %3048 = vmatpush1.msra.mxu0 0.0
    %3049 = vmatprep.subr.mxu0 0.0
    %3050 = vmatpush1.msra.mxu0 0.0
    %3051 = vmatprep.subr.mxu0 0.0
    %3052 = vmatpush1.msra.mxu0 0.0
    %3053 = vmatprep.subr.mxu0 0.0
    %3054 = vmatpush1.msra.mxu0 0.0
    %3055 = vmatprep.mubr.f32.mxu0 0.0
    %v3056 = vand.u32 %v2754, 4294901760
    %v3057 = vsub.f32 %v2754, %v3056
    %3058 = vmatmul.mubr.f32.gmra.mrb[0].mxu0 %v3057
    %v3059 = vpop.f32.mrb[0].mxu0
    %v3060 = vadd.f32 %v2962, %v3059
    %v3061 = vpop.f32.mrb[0].mxu0
    %3062 = vmatprep.mubr.f32.mxu0 0.0
    %v3063 = vand.u32 %v2757, 4294901760
    %v3064 = vsub.f32 %v2757, %v3063
    %3065 = vmatmul.mubr.f32.gmra.mrb[0].mxu0 %v3064
    %v3066 = vpop.f32.mrb[0].mxu0
    %v3067 = vadd.f32 %v2968, %v3066
    %v3068 = vpop.f32.mrb[0].mxu0
    %3069 = vmatprep.mubr.f32.mxu0 0.0
    %v3070 = vand.u32 %v2760, 4294901760
    %v3071 = vsub.f32 %v2760, %v3070
    %3072 = vmatmul.mubr.f32.gmra.mrb[0].mxu0 %v3071
    %v3073 = vpop.f32.mrb[0].mxu0
    %v3074 = vadd.f32 %v2974, %v3073
    %v3075 = vpop.f32.mrb[0].mxu0
    %3076 = vmatprep.mubr.f32.mxu0 0.0
    %v3077 = vand.u32 %v2763, 4294901760
    %v3078 = vsub.f32 %v2763, %v3077
    %3079 = vmatmul.mubr.f32.gmra.mrb[0].mxu0 %v3078
    %v3080 = vpop.f32.mrb[0].mxu0
    %v3081 = vadd.f32 %v2980, %v3080
    %v3082 = vpop.f32.mrb[0].mxu0
    %3083 = vdwg.mxu0
    %3084 = vmatprep.subr.mxu0 0.0
    %v3085 = vand.u32 %v2749, 4294901760
    %3086 = vmatpush1.msra.mxu0 %v3085
    %3087 = vmatprep.subr.mxu0 0.0
    %v3088 = vand.u32 %v2750, 4294901760
    %3089 = vmatpush1.msra.mxu0 %v3088
    %3090 = vmatprep.subr.mxu0 0.0
    %v3091 = vand.u32 %v2751, 4294901760
    %3092 = vmatpush1.msra.mxu0 %v3091
    %3093 = vmatprep.subr.mxu0 0.0
    %v3094 = vand.u32 %v2752, 4294901760
    %3095 = vmatpush1.msra.mxu0 %v3094
    %3096 = vmatprep.subr.mxu0 0.0
    %3097 = vmatpush1.msra.mxu0 0.0
    %3098 = vmatprep.subr.mxu0 0.0
    %3099 = vmatpush1.msra.mxu0 0.0
    %3100 = vmatprep.subr.mxu0 0.0
    %3101 = vmatpush1.msra.mxu0 0.0
    %3102 = vmatprep.subr.mxu0 0.0
    %3103 = vmatpush1.msra.mxu0 0.0
    %3104 = vmatprep.subr.mxu0 0.0
    %3105 = vmatpush1.msra.mxu0 0.0
    %3106 = vmatprep.subr.mxu0 0.0
    %3107 = vmatpush1.msra.mxu0 0.0
    %3108 = vmatprep.subr.mxu0 0.0
    %3109 = vmatpush1.msra.mxu0 0.0
    %3110 = vmatprep.subr.mxu0 0.0
    %3111 = vmatpush1.msra.mxu0 0.0
    %3112 = vmatprep.subr.mxu0 0.0
    %3113 = vmatpush1.msra.mxu0 0.0
    %3114 = vmatprep.subr.mxu0 0.0
    %3115 = vmatpush1.msra.mxu0 0.0
    %3116 = vmatprep.subr.mxu0 0.0
    %3117 = vmatpush1.msra.mxu0 0.0
    %3118 = vmatprep.subr.mxu0 0.0
    %3119 = vmatpush1.msra.mxu0 0.0
    %3120 = vmatprep.subr.mxu0 0.0
    %3121 = vmatpush1.msra.mxu0 0.0
    %3122 = vmatprep.subr.mxu0 0.0
    %3123 = vmatpush1.msra.mxu0 0.0
    %3124 = vmatprep.subr.mxu0 0.0
    %3125 = vmatpush1.msra.mxu0 0.0
    %3126 = vmatprep.subr.mxu0 0.0
    %3127 = vmatpush1.msra.mxu0 0.0
    %3128 = vmatprep.subr.mxu0 0.0
    %3129 = vmatpush1.msra.mxu0 0.0
    %3130 = vmatprep.subr.mxu0 0.0
    %3131 = vmatpush1.msra.mxu0 0.0
    %3132 = vmatprep.subr.mxu0 0.0
    %3133 = vmatpush1.msra.mxu0 0.0
    %3134 = vmatprep.subr.mxu0 0.0
    %3135 = vmatpush1.msra.mxu0 0.0
    %3136 = vmatprep.subr.mxu0 0.0
    %3137 = vmatpush1.msra.mxu0 0.0
    %3138 = vmatprep.subr.mxu0 0.0
    %3139 = vmatpush1.msra.mxu0 0.0
    %3140 = vmatprep.subr.mxu0 0.0
    %3141 = vmatpush1.msra.mxu0 0.0
    %3142 = vmatprep.subr.mxu0 0.0
    %3143 = vmatpush1.msra.mxu0 0.0
    %3144 = vmatprep.subr.mxu0 0.0
    %3145 = vmatpush1.msra.mxu0 0.0
    %3146 = vmatprep.subr.mxu0 0.0
    %3147 = vmatpush1.msra.mxu0 0.0
    %3148 = vmatprep.subr.mxu0 0.0
    %3149 = vmatpush1.msra.mxu0 0.0
    %3150 = vmatprep.subr.mxu0 0.0
    %3151 = vmatpush1.msra.mxu0 0.0
    %3152 = vmatprep.mubr.f32.mxu0 0.0
    %v3153 = vand.u32 %v2754, 4294901760
    %v3154 = vsub.f32 %v2754, %v3153
    %v3155 = vand.u32 %v3154, 4294901760
    %3156 = vmatmul.mubr.f32.gmra.mrb[0].mxu0 %v3155
    %v3157 = vpop.f32.mrb[0].mxu0
    %v3158 = vadd.f32 %v3060, %v3157
    %v3159 = vpop.f32.mrb[0].mxu0
    %3160 = vmatprep.mubr.f32.mxu0 0.0
    %v3161 = vand.u32 %v2757, 4294901760
    %v3162 = vsub.f32 %v2757, %v3161
    %v3163 = vand.u32 %v3162, 4294901760
    %3164 = vmatmul.mubr.f32.gmra.mrb[0].mxu0 %v3163
    %v3165 = vpop.f32.mrb[0].mxu0
    %v3166 = vadd.f32 %v3067, %v3165
    %v3167 = vpop.f32.mrb[0].mxu0
    %3168 = vmatprep.mubr.f32.mxu0 0.0
    %v3169 = vand.u32 %v2760, 4294901760
    %v3170 = vsub.f32 %v2760, %v3169
    %v3171 = vand.u32 %v3170, 4294901760
    %3172 = vmatmul.mubr.f32.gmra.mrb[0].mxu0 %v3171
    %v3173 = vpop.f32.mrb[0].mxu0
    %v3174 = vadd.f32 %v3074, %v3173
    %v3175 = vpop.f32.mrb[0].mxu0
    %3176 = vmatprep.mubr.f32.mxu0 0.0
    %v3177 = vand.u32 %v2763, 4294901760
    %v3178 = vsub.f32 %v2763, %v3177
    %v3179 = vand.u32 %v3178, 4294901760
    %3180 = vmatmul.mubr.f32.gmra.mrb[0].mxu0 %v3179
    %v3181 = vpop.f32.mrb[0].mxu0
    %v3182 = vadd.f32 %v3081, %v3181
    %v3183 = vpop.f32.mrb[0].mxu0
    %3184 = vdwg.mxu0
    %3185 = vmatprep.subr.mxu0 0.0
    %v3186 = vand.u32 %v2749, 4294901760
    %v3187 = vsub.f32 %v2749, %v3186
    %v3188 = vand.u32 %v3187, 4294901760
    %3189 = vmatpush1.msra.mxu0 %v3188
    %3190 = vmatprep.subr.mxu0 0.0
    %v3191 = vand.u32 %v2750, 4294901760
    %v3192 = vsub.f32 %v2750, %v3191
    %v3193 = vand.u32 %v3192, 4294901760
    %3194 = vmatpush1.msra.mxu0 %v3193
    %3195 = vmatprep.subr.mxu0 0.0
    %v3196 = vand.u32 %v2751, 4294901760
    %v3197 = vsub.f32 %v2751, %v3196
    %v3198 = vand.u32 %v3197, 4294901760
    %3199 = vmatpush1.msra.mxu0 %v3198
    %3200 = vmatprep.subr.mxu0 0.0
    %v3201 = vand.u32 %v2752, 4294901760
    %v3202 = vsub.f32 %v2752, %v3201
    %v3203 = vand.u32 %v3202, 4294901760
    %3204 = vmatpush1.msra.mxu0 %v3203
    %3205 = vmatprep.subr.mxu0 0.0
    %3206 = vmatpush1.msra.mxu0 0.0
    %3207 = vmatprep.subr.mxu0 0.0
    %3208 = vmatpush1.msra.mxu0 0.0
    %3209 = vmatprep.subr.mxu0 0.0
    %3210 = vmatpush1.msra.mxu0 0.0
    %3211 = vmatprep.subr.mxu0 0.0
    %3212 = vmatpush1.msra.mxu0 0.0
    %3213 = vmatprep.subr.mxu0 0.0
    %3214 = vmatpush1.msra.mxu0 0.0
    %3215 = vmatprep.subr.mxu0 0.0
    %3216 = vmatpush1.msra.mxu0 0.0
    %3217 = vmatprep.subr.mxu0 0.0
    %3218 = vmatpush1.msra.mxu0 0.0
    %3219 = vmatprep.subr.mxu0 0.0
    %3220 = vmatpush1.msra.mxu0 0.0
    %3221 = vmatprep.subr.mxu0 0.0
    %3222 = vmatpush1.msra.mxu0 0.0
    %3223 = vmatprep.subr.mxu0 0.0
    %3224 = vmatpush1.msra.mxu0 0.0
    %3225 = vmatprep.subr.mxu0 0.0
    %3226 = vmatpush1.msra.mxu0 0.0
    %3227 = vmatprep.subr.mxu0 0.0
    %3228 = vmatpush1.msra.mxu0 0.0
    %3229 = vmatprep.subr.mxu0 0.0
    %3230 = vmatpush1.msra.mxu0 0.0
    %3231 = vmatprep.subr.mxu0 0.0
    %3232 = vmatpush1.msra.mxu0 0.0
    %3233 = vmatprep.subr.mxu0 0.0
    %3234 = vmatpush1.msra.mxu0 0.0
    %3235 = vmatprep.subr.mxu0 0.0
    %3236 = vmatpush1.msra.mxu0 0.0
    %3237 = vmatprep.subr.mxu0 0.0
    %3238 = vmatpush1.msra.mxu0 0.0
    %3239 = vmatprep.subr.mxu0 0.0
    %3240 = vmatpush1.msra.mxu0 0.0
    %3241 = vmatprep.subr.mxu0 0.0
    %3242 = vmatpush1.msra.mxu0 0.0
    %3243 = vmatprep.subr.mxu0 0.0
    %3244 = vmatpush1.msra.mxu0 0.0
    %3245 = vmatprep.subr.mxu0 0.0
    %3246 = vmatpush1.msra.mxu0 0.0
    %3247 = vmatprep.subr.mxu0 0.0
    %3248 = vmatpush1.msra.mxu0 0.0
    %3249 = vmatprep.subr.mxu0 0.0
    %3250 = vmatpush1.msra.mxu0 0.0
    %3251 = vmatprep.subr.mxu0 0.0
    %3252 = vmatpush1.msra.mxu0 0.0
    %3253 = vmatprep.subr.mxu0 0.0
    %3254 = vmatpush1.msra.mxu0 0.0
    %3255 = vmatprep.subr.mxu0 0.0
    %3256 = vmatpush1.msra.mxu0 0.0
    %3257 = vmatprep.subr.mxu0 0.0
    %3258 = vmatpush1.msra.mxu0 0.0
    %3259 = vmatprep.subr.mxu0 0.0
    %3260 = vmatpush1.msra.mxu0 0.0
    %3261 = vmatprep.mubr.f32.mxu0 0.0
    %v3262 = vand.u32 %v2754, 4294901760
    %3263 = vmatmul.mubr.f32.gmra.mrb[0].mxu0 %v3262
    %v3264 = vpop.f32.mrb[0].mxu0
    %v3265 = vadd.f32 %v3158, %v3264
    %v3266 = vpop.f32.mrb[0].mxu0
    %3267 = vmatprep.mubr.f32.mxu0 0.0
    %v3268 = vand.u32 %v2757, 4294901760
    %3269 = vmatmul.mubr.f32.gmra.mrb[0].mxu0 %v3268
    %v3270 = vpop.f32.mrb[0].mxu0
    %v3271 = vadd.f32 %v3166, %v3270
    %v3272 = vpop.f32.mrb[0].mxu0
    %3273 = vmatprep.mubr.f32.mxu0 0.0
    %v3274 = vand.u32 %v2760, 4294901760
    %3275 = vmatmul.mubr.f32.gmra.mrb[0].mxu0 %v3274
    %v3276 = vpop.f32.mrb[0].mxu0
    %v3277 = vadd.f32 %v3174, %v3276
    %v3278 = vpop.f32.mrb[0].mxu0
    %3279 = vmatprep.mubr.f32.mxu0 0.0
    %v3280 = vand.u32 %v2763, 4294901760
    %3281 = vmatmul.mubr.f32.gmra.mrb[0].mxu0 %v3280
    %v3282 = vpop.f32.mrb[0].mxu0
    %v3283 = vadd.f32 %v3182, %v3282
    %v3284 = vpop.f32.mrb[0].mxu0
    %3285 = vdwg.mxu0
    %3286 = vmatprep.subr.mxu0 0.0
    %v3287 = vand.u32 %v2749, 4294901760
    %3288 = vmatpush1.msra.mxu0 %v3287
    %3289 = vmatprep.subr.mxu0 0.0
    %v3290 = vand.u32 %v2750, 4294901760
    %3291 = vmatpush1.msra.mxu0 %v3290
    %3292 = vmatprep.subr.mxu0 0.0
    %v3293 = vand.u32 %v2751, 4294901760
    %3294 = vmatpush1.msra.mxu0 %v3293
    %3295 = vmatprep.subr.mxu0 0.0
    %v3296 = vand.u32 %v2752, 4294901760
    %3297 = vmatpush1.msra.mxu0 %v3296
    %3298 = vmatprep.subr.mxu0 0.0
    %3299 = vmatpush1.msra.mxu0 0.0
    %3300 = vmatprep.subr.mxu0 0.0
    %3301 = vmatpush1.msra.mxu0 0.0
    %3302 = vmatprep.subr.mxu0 0.0
    %3303 = vmatpush1.msra.mxu0 0.0
    %3304 = vmatprep.subr.mxu0 0.0
    %3305 = vmatpush1.msra.mxu0 0.0
    %3306 = vmatprep.subr.mxu0 0.0
    %3307 = vmatpush1.msra.mxu0 0.0
    %3308 = vmatprep.subr.mxu0 0.0
    %3309 = vmatpush1.msra.mxu0 0.0
    %3310 = vmatprep.subr.mxu0 0.0
    %3311 = vmatpush1.msra.mxu0 0.0
    %3312 = vmatprep.subr.mxu0 0.0
    %3313 = vmatpush1.msra.mxu0 0.0
    %3314 = vmatprep.subr.mxu0 0.0
    %3315 = vmatpush1.msra.mxu0 0.0
    %3316 = vmatprep.subr.mxu0 0.0
    %3317 = vmatpush1.msra.mxu0 0.0
    %3318 = vmatprep.subr.mxu0 0.0
    %3319 = vmatpush1.msra.mxu0 0.0
    %3320 = vmatprep.subr.mxu0 0.0
    %3321 = vmatpush1.msra.mxu0 0.0
    %3322 = vmatprep.subr.mxu0 0.0
    %3323 = vmatpush1.msra.mxu0 0.0
    %3324 = vmatprep.subr.mxu0 0.0
    %3325 = vmatpush1.msra.mxu0 0.0
    %3326 = vmatprep.subr.mxu0 0.0
    %3327 = vmatpush1.msra.mxu0 0.0
    %3328 = vmatprep.subr.mxu0 0.0
    %3329 = vmatpush1.msra.mxu0 0.0
    %3330 = vmatprep.subr.mxu0 0.0
    %3331 = vmatpush1.msra.mxu0 0.0
    %3332 = vmatprep.subr.mxu0 0.0
    %3333 = vmatpush1.msra.mxu0 0.0
    %3334 = vmatprep.subr.mxu0 0.0
    %3335 = vmatpush1.msra.mxu0 0.0
    %3336 = vmatprep.subr.mxu0 0.0
    %3337 = vmatpush1.msra.mxu0 0.0
    %3338 = vmatprep.subr.mxu0 0.0
    %3339 = vmatpush1.msra.mxu0 0.0
    %3340 = vmatprep.subr.mxu0 0.0
    %3341 = vmatpush1.msra.mxu0 0.0
    %3342 = vmatprep.subr.mxu0 0.0
    %3343 = vmatpush1.msra.mxu0 0.0
    %3344 = vmatprep.subr.mxu0 0.0
    %3345 = vmatpush1.msra.mxu0 0.0
    %3346 = vmatprep.subr.mxu0 0.0
    %3347 = vmatpush1.msra.mxu0 0.0
    %3348 = vmatprep.subr.mxu0 0.0
    %3349 = vmatpush1.msra.mxu0 0.0
    %3350 = vmatprep.subr.mxu0 0.0
    %3351 = vmatpush1.msra.mxu0 0.0
    %3352 = vmatprep.subr.mxu0 0.0
    %3353 = vmatpush1.msra.mxu0 0.0
    %3354 = vmatprep.mubr.f32.mxu0 0.0
    %v3355 = vand.u32 %v2754, 4294901760
    %3356 = vmatmul.mubr.f32.gmra.mrb[0].mxu0 %v3355
    %v3357 = vpop.f32.mrb[0].mxu0
    %v3358 = vadd.f32 %v3265, %v3357
    %v3359 = vpop.f32.mrb[0].mxu0
    %3360 = vmatprep.mubr.f32.mxu0 0.0
    %v3361 = vand.u32 %v2757, 4294901760
    %3362 = vmatmul.mubr.f32.gmra.mrb[0].mxu0 %v3361
    %v3363 = vpop.f32.mrb[0].mxu0
    %v3364 = vadd.f32 %v3271, %v3363
    %v3365 = vpop.f32.mrb[0].mxu0
    %3366 = vmatprep.mubr.f32.mxu0 0.0
    %v3367 = vand.u32 %v2760, 4294901760
    %3368 = vmatmul.mubr.f32.gmra.mrb[0].mxu0 %v3367
    %v3369 = vpop.f32.mrb[0].mxu0
    %v3370 = vadd.f32 %v3277, %v3369
    %v3371 = vpop.f32.mrb[0].mxu0
    %3372 = vmatprep.mubr.f32.mxu0 0.0
    %v3373 = vand.u32 %v2763, 4294901760
    %3374 = vmatmul.mubr.f32.gmra.mrb[0].mxu0 %v3373
    %v3375 = vpop.f32.mrb[0].mxu0
    %v3376 = vadd.f32 %v3283, %v3375
    %v3377 = vpop.f32.mrb[0].mxu0
    %3378 = vdwg.mxu0
    %3381 = vrot.lane.b32.xlu0 %v3370, 96
    %v3382 = vpop.permute.xlu0 %3381
    %3383 = vrot.lane.b32.xlu0 %v3376, 96
    %v3384 = vpop.permute.xlu0 %3383
    %3389 = vrot.lane.b32.xlu0 %v3358, 64
    %v3390 = vpop.permute.xlu0 %3389
    %3391 = vrot.lane.b32.xlu0 %v3364, 64
    %v3392 = vpop.permute.xlu0 %3391
    %s3395 = scalar_lea.vmem [#allocation7], 64
    %v3396 = vld [vmem:[%s3395] sm:$0xff]
    %v3397 = vld [vmem:[%s3395 + $0x8] sm:$0xff]
    %v3398 = vld [vmem:[%s3395 + $0x10] sm:$0xff]
    %v3399 = vld [vmem:[%s3395 + $0x18] sm:$0xff]
    %3400 = vmatprep.subr.mxu0 0.0
    %v3401 = vand.u32 %v3358, 4294901760
    %3402 = vmatpush1.msra.mxu0 %v3401
    %3403 = vmatprep.subr.mxu0 0.0
    %v3404 = vand.u32 %v3364, 4294901760
    %3405 = vmatpush1.msra.mxu0 %v3404
    %3406 = vmatprep.subr.mxu0 0.0
    %v3407 = vand.u32 %v3382, 4294901760
    %3408 = vmatpush1.msra.mxu0 %v3407
    %3409 = vmatprep.subr.mxu0 0.0
    %v3410 = vand.u32 %v3384, 4294901760
    %3411 = vmatpush1.msra.mxu0 %v3410
    %3412 = vmatprep.subr.mxu0 0.0
    %v3413 = vand.u32 %v3390, 4294901760
    %3414 = vmatpush1.msra.mxu0 %v3413
    %3415 = vmatprep.subr.mxu0 0.0
    %v3416 = vand.u32 %v3392, 4294901760
    %3417 = vmatpush1.msra.mxu0 %v3416
    %3418 = vmatprep.subr.mxu0 0.0
    %3419 = vmatpush1.msra.mxu0 0.0
    %3420 = vmatprep.subr.mxu0 0.0
    %3421 = vmatpush1.msra.mxu0 0.0
    %3422 = vmatprep.subr.mxu0 0.0
    %3423 = vmatpush1.msra.mxu0 0.0
    %3424 = vmatprep.subr.mxu0 0.0
    %3425 = vmatpush1.msra.mxu0 0.0
    %3426 = vmatprep.subr.mxu0 0.0
    %3427 = vmatpush1.msra.mxu0 0.0
    %3428 = vmatprep.subr.mxu0 0.0
    %3429 = vmatpush1.msra.mxu0 0.0
    %3430 = vmatprep.subr.mxu0 0.0
    %3431 = vmatpush1.msra.mxu0 0.0
    %3432 = vmatprep.subr.mxu0 0.0
    %3433 = vmatpush1.msra.mxu0 0.0
    %3434 = vmatprep.subr.mxu0 0.0
    %3435 = vmatpush1.msra.mxu0 0.0
    %3436 = vmatprep.subr.mxu0 0.0
    %3437 = vmatpush1.msra.mxu0 0.0
    %3438 = vmatprep.subr.mxu0 0.0
    %3439 = vmatpush1.msra.mxu0 0.0
    %3440 = vmatprep.subr.mxu0 0.0
    %3441 = vmatpush1.msra.mxu0 0.0
    %3442 = vmatprep.subr.mxu0 0.0
    %3443 = vmatpush1.msra.mxu0 0.0
    %3444 = vmatprep.subr.mxu0 0.0
    %3445 = vmatpush1.msra.mxu0 0.0
    %3446 = vmatprep.subr.mxu0 0.0
    %3447 = vmatpush1.msra.mxu0 0.0
    %3448 = vmatprep.subr.mxu0 0.0
    %3449 = vmatpush1.msra.mxu0 0.0
    %3450 = vmatprep.subr.mxu0 0.0
    %3451 = vmatpush1.msra.mxu0 0.0
    %3452 = vmatprep.subr.mxu0 0.0
    %3453 = vmatpush1.msra.mxu0 0.0
    %3454 = vmatprep.subr.mxu0 0.0
    %3455 = vmatpush1.msra.mxu0 0.0
    %3456 = vmatprep.subr.mxu0 0.0
    %3457 = vmatpush1.msra.mxu0 0.0
    %3458 = vmatprep.subr.mxu0 0.0
    %3459 = vmatpush1.msra.mxu0 0.0
    %3460 = vmatprep.subr.mxu0 0.0
    %3461 = vmatpush1.msra.mxu0 0.0
    %3462 = vmatprep.subr.mxu0 0.0
    %3463 = vmatpush1.msra.mxu0 0.0
    %3464 = vmatprep.subr.mxu0 0.0
    %3465 = vmatpush1.msra.mxu0 0.0
    %3466 = vmatprep.subr.mxu0 0.0
    %3467 = vmatpush1.msra.mxu0 0.0
    %3468 = vmatprep.subr.mxu0 0.0
    %3469 = vmatpush1.msra.mxu0 0.0
    %3470 = vmatprep.mubr.f32.mxu0 0.0
    %v3471 = vand.u32 %v733, 4294901760
    %v3472 = vsub.f32 %v733, %v3471
    %v3473 = vand.u32 %v3472, 4294901760
    %v3474 = vsub.f32 %v3472, %v3473
    %v3475 = vand.u32 %v3474, 4294901760
    %3476 = vmatmul.mubr.f32.gmra.mrb[0].mxu0 %v3475
    %v3477 = vpop.f32.mrb[0].mxu0
    %v3478 = vadd.f32 %v3396, %v3477
    %v3479 = vpop.f32.mrb[0].mxu0
    %3480 = vmatprep.mubr.f32.mxu0 0.0
    %v3481 = vand.u32 %v736, 4294901760
    %v3482 = vsub.f32 %v736, %v3481
    %v3483 = vand.u32 %v3482, 4294901760
    %v3484 = vsub.f32 %v3482, %v3483
    %v3485 = vand.u32 %v3484, 4294901760
    %3486 = vmatmul.mubr.f32.gmra.mrb[0].mxu0 %v3485
    %v3487 = vpop.f32.mrb[0].mxu0
    %v3488 = vadd.f32 %v3397, %v3487
    %v3489 = vpop.f32.mrb[0].mxu0
    %3490 = vmatprep.mubr.f32.mxu0 0.0
    %v3491 = vand.u32 %v739, 4294901760
    %v3492 = vsub.f32 %v739, %v3491
    %v3493 = vand.u32 %v3492, 4294901760
    %v3494 = vsub.f32 %v3492, %v3493
    %v3495 = vand.u32 %v3494, 4294901760
    %3496 = vmatmul.mubr.f32.gmra.mrb[0].mxu0 %v3495
    %v3497 = vpop.f32.mrb[0].mxu0
    %v3498 = vadd.f32 %v3398, %v3497
    %v3499 = vpop.f32.mrb[0].mxu0
    %3500 = vmatprep.mubr.f32.mxu0 0.0
    %v3501 = vand.u32 %v742, 4294901760
    %v3502 = vsub.f32 %v742, %v3501
    %v3503 = vand.u32 %v3502, 4294901760
    %v3504 = vsub.f32 %v3502, %v3503
    %v3505 = vand.u32 %v3504, 4294901760
    %3506 = vmatmul.mubr.f32.gmra.mrb[0].mxu0 %v3505
    %v3507 = vpop.f32.mrb[0].mxu0
    %v3508 = vadd.f32 %v3399, %v3507
    %v3509 = vpop.f32.mrb[0].mxu0
    %3510 = vdwg.mxu0
    %3511 = vmatprep.subr.mxu0 0.0
    %v3512 = vand.u32 %v3358, 4294901760
    %v3513 = vsub.f32 %v3358, %v3512
    %v3514 = vand.u32 %v3513, 4294901760
    %v3515 = vsub.f32 %v3513, %v3514
    %v3516 = vand.u32 %v3515, 4294901760
    %3517 = vmatpush1.msra.mxu0 %v3516
    %3518 = vmatprep.subr.mxu0 0.0
    %v3519 = vand.u32 %v3364, 4294901760
    %v3520 = vsub.f32 %v3364, %v3519
    %v3521 = vand.u32 %v3520, 4294901760
    %v3522 = vsub.f32 %v3520, %v3521
    %v3523 = vand.u32 %v3522, 4294901760
    %3524 = vmatpush1.msra.mxu0 %v3523
    %3525 = vmatprep.subr.mxu0 0.0
    %v3526 = vand.u32 %v3382, 4294901760
    %v3527 = vsub.f32 %v3382, %v3526
    %v3528 = vand.u32 %v3527, 4294901760
    %v3529 = vsub.f32 %v3527, %v3528
    %v3530 = vand.u32 %v3529, 4294901760
    %3531 = vmatpush1.msra.mxu0 %v3530
    %3532 = vmatprep.subr.mxu0 0.0
    %v3533 = vand.u32 %v3384, 4294901760
    %v3534 = vsub.f32 %v3384, %v3533
    %v3535 = vand.u32 %v3534, 4294901760
    %v3536 = vsub.f32 %v3534, %v3535
    %v3537 = vand.u32 %v3536, 4294901760
    %3538 = vmatpush1.msra.mxu0 %v3537
    %3539 = vmatprep.subr.mxu0 0.0
    %v3540 = vand.u32 %v3390, 4294901760
    %v3541 = vsub.f32 %v3390, %v3540
    %v3542 = vand.u32 %v3541, 4294901760
    %v3543 = vsub.f32 %v3541, %v3542
    %v3544 = vand.u32 %v3543, 4294901760
    %3545 = vmatpush1.msra.mxu0 %v3544
    %3546 = vmatprep.subr.mxu0 0.0
    %v3547 = vand.u32 %v3392, 4294901760
    %v3548 = vsub.f32 %v3392, %v3547
    %v3549 = vand.u32 %v3548, 4294901760
    %v3550 = vsub.f32 %v3548, %v3549
    %v3551 = vand.u32 %v3550, 4294901760
    %3552 = vmatpush1.msra.mxu0 %v3551
    %3553 = vmatprep.subr.mxu0 0.0
    %3554 = vmatpush1.msra.mxu0 0.0
    %3555 = vmatprep.subr.mxu0 0.0
    %3556 = vmatpush1.msra.mxu0 0.0
    %3557 = vmatprep.subr.mxu0 0.0
    %3558 = vmatpush1.msra.mxu0 0.0
    %3559 = vmatprep.subr.mxu0 0.0
    %3560 = vmatpush1.msra.mxu0 0.0
    %3561 = vmatprep.subr.mxu0 0.0
    %3562 = vmatpush1.msra.mxu0 0.0
    %3563 = vmatprep.subr.mxu0 0.0
    %3564 = vmatpush1.msra.mxu0 0.0
    %3565 = vmatprep.subr.mxu0 0.0
    %3566 = vmatpush1.msra.mxu0 0.0
    %3567 = vmatprep.subr.mxu0 0.0
    %3568 = vmatpush1.msra.mxu0 0.0
    %3569 = vmatprep.subr.mxu0 0.0
    %3570 = vmatpush1.msra.mxu0 0.0
    %3571 = vmatprep.subr.mxu0 0.0
    %3572 = vmatpush1.msra.mxu0 0.0
    %3573 = vmatprep.subr.mxu0 0.0
    %3574 = vmatpush1.msra.mxu0 0.0
    %3575 = vmatprep.subr.mxu0 0.0
    %3576 = vmatpush1.msra.mxu0 0.0
    %3577 = vmatprep.subr.mxu0 0.0
    %3578 = vmatpush1.msra.mxu0 0.0
    %3579 = vmatprep.subr.mxu0 0.0
    %3580 = vmatpush1.msra.mxu0 0.0
    %3581 = vmatprep.subr.mxu0 0.0
    %3582 = vmatpush1.msra.mxu0 0.0
    %3583 = vmatprep.subr.mxu0 0.0
    %3584 = vmatpush1.msra.mxu0 0.0
    %3585 = vmatprep.subr.mxu0 0.0
    %3586 = vmatpush1.msra.mxu0 0.0
    %3587 = vmatprep.subr.mxu0 0.0
    %3588 = vmatpush1.msra.mxu0 0.0
    %3589 = vmatprep.subr.mxu0 0.0
    %3590 = vmatpush1.msra.mxu0 0.0
    %3591 = vmatprep.subr.mxu0 0.0
    %3592 = vmatpush1.msra.mxu0 0.0
    %3593 = vmatprep.subr.mxu0 0.0
    %3594 = vmatpush1.msra.mxu0 0.0
    %3595 = vmatprep.subr.mxu0 0.0
    %3596 = vmatpush1.msra.mxu0 0.0
    %3597 = vmatprep.subr.mxu0 0.0
    %3598 = vmatpush1.msra.mxu0 0.0
    %3599 = vmatprep.subr.mxu0 0.0
    %3600 = vmatpush1.msra.mxu0 0.0
    %3601 = vmatprep.subr.mxu0 0.0
    %3602 = vmatpush1.msra.mxu0 0.0
    %3603 = vmatprep.subr.mxu0 0.0
    %3604 = vmatpush1.msra.mxu0 0.0
    %3605 = vmatprep.mubr.f32.mxu0 0.0
    %v3606 = vand.u32 %v733, 4294901760
    %3607 = vmatmul.mubr.f32.gmra.mrb[0].mxu0 %v3606
    %v3608 = vpop.f32.mrb[0].mxu0
    %v3609 = vadd.f32 %v3478, %v3608
    %v3610 = vpop.f32.mrb[0].mxu0
    %3611 = vmatprep.mubr.f32.mxu0 0.0
    %v3612 = vand.u32 %v736, 4294901760
    %3613 = vmatmul.mubr.f32.gmra.mrb[0].mxu0 %v3612
    %v3614 = vpop.f32.mrb[0].mxu0
    %v3615 = vadd.f32 %v3488, %v3614
    %v3616 = vpop.f32.mrb[0].mxu0
    %3617 = vmatprep.mubr.f32.mxu0 0.0
    %v3618 = vand.u32 %v739, 4294901760
    %3619 = vmatmul.mubr.f32.gmra.mrb[0].mxu0 %v3618
    %v3620 = vpop.f32.mrb[0].mxu0
    %v3621 = vadd.f32 %v3498, %v3620
    %v3622 = vpop.f32.mrb[0].mxu0
    %3623 = vmatprep.mubr.f32.mxu0 0.0
    %v3624 = vand.u32 %v742, 4294901760
    %3625 = vmatmul.mubr.f32.gmra.mrb[0].mxu0 %v3624
    %v3626 = vpop.f32.mrb[0].mxu0
    %v3627 = vadd.f32 %v3508, %v3626
    %v3628 = vpop.f32.mrb[0].mxu0
    %3629 = vdwg.mxu0
    %3630 = vmatprep.subr.mxu0 0.0
    %v3631 = vand.u32 %v3358, 4294901760
    %v3632 = vsub.f32 %v3358, %v3631
    %3633 = vmatpush1.msra.mxu0 %v3632
    %3634 = vmatprep.subr.mxu0 0.0
    %v3635 = vand.u32 %v3364, 4294901760
    %v3636 = vsub.f32 %v3364, %v3635
    %3637 = vmatpush1.msra.mxu0 %v3636
    %3638 = vmatprep.subr.mxu0 0.0
    %v3639 = vand.u32 %v3382, 4294901760
    %v3640 = vsub.f32 %v3382, %v3639
    %3641 = vmatpush1.msra.mxu0 %v3640
    %3642 = vmatprep.subr.mxu0 0.0
    %v3643 = vand.u32 %v3384, 4294901760
    %v3644 = vsub.f32 %v3384, %v3643
    %3645 = vmatpush1.msra.mxu0 %v3644
    %3646 = vmatprep.subr.mxu0 0.0
    %v3647 = vand.u32 %v3390, 4294901760
    %v3648 = vsub.f32 %v3390, %v3647
    %3649 = vmatpush1.msra.mxu0 %v3648
    %3650 = vmatprep.subr.mxu0 0.0
    %v3651 = vand.u32 %v3392, 4294901760
    %v3652 = vsub.f32 %v3392, %v3651
    %3653 = vmatpush1.msra.mxu0 %v3652
    %3654 = vmatprep.subr.mxu0 0.0
    %3655 = vmatpush1.msra.mxu0 0.0
    %3656 = vmatprep.subr.mxu0 0.0
    %3657 = vmatpush1.msra.mxu0 0.0
    %3658 = vmatprep.subr.mxu0 0.0
    %3659 = vmatpush1.msra.mxu0 0.0
    %3660 = vmatprep.subr.mxu0 0.0
    %3661 = vmatpush1.msra.mxu0 0.0
    %3662 = vmatprep.subr.mxu0 0.0
    %3663 = vmatpush1.msra.mxu0 0.0
    %3664 = vmatprep.subr.mxu0 0.0
    %3665 = vmatpush1.msra.mxu0 0.0
    %3666 = vmatprep.subr.mxu0 0.0
    %3667 = vmatpush1.msra.mxu0 0.0
    %3668 = vmatprep.subr.mxu0 0.0
    %3669 = vmatpush1.msra.mxu0 0.0
    %3670 = vmatprep.subr.mxu0 0.0
    %3671 = vmatpush1.msra.mxu0 0.0
    %3672 = vmatprep.subr.mxu0 0.0
    %3673 = vmatpush1.msra.mxu0 0.0
    %3674 = vmatprep.subr.mxu0 0.0
    %3675 = vmatpush1.msra.mxu0 0.0
    %3676 = vmatprep.subr.mxu0 0.0
    %3677 = vmatpush1.msra.mxu0 0.0
    %3678 = vmatprep.subr.mxu0 0.0
    %3679 = vmatpush1.msra.mxu0 0.0
    %3680 = vmatprep.subr.mxu0 0.0
    %3681 = vmatpush1.msra.mxu0 0.0
    %3682 = vmatprep.subr.mxu0 0.0
    %3683 = vmatpush1.msra.mxu0 0.0
    %3684 = vmatprep.subr.mxu0 0.0
    %3685 = vmatpush1.msra.mxu0 0.0
    %3686 = vmatprep.subr.mxu0 0.0
    %3687 = vmatpush1.msra.mxu0 0.0
    %3688 = vmatprep.subr.mxu0 0.0
    %3689 = vmatpush1.msra.mxu0 0.0
    %3690 = vmatprep.subr.mxu0 0.0
    %3691 = vmatpush1.msra.mxu0 0.0
    %3692 = vmatprep.subr.mxu0 0.0
    %3693 = vmatpush1.msra.mxu0 0.0
    %3694 = vmatprep.subr.mxu0 0.0
    %3695 = vmatpush1.msra.mxu0 0.0
    %3696 = vmatprep.subr.mxu0 0.0
    %3697 = vmatpush1.msra.mxu0 0.0
    %3698 = vmatprep.subr.mxu0 0.0
    %3699 = vmatpush1.msra.mxu0 0.0
    %3700 = vmatprep.subr.mxu0 0.0
    %3701 = vmatpush1.msra.mxu0 0.0
    %3702 = vmatprep.subr.mxu0 0.0
    %3703 = vmatpush1.msra.mxu0 0.0
    %3704 = vmatprep.subr.mxu0 0.0
    %3705 = vmatpush1.msra.mxu0 0.0
    %3706 = vmatprep.mubr.f32.mxu0 0.0
    %v3707 = vand.u32 %v733, 4294901760
    %v3708 = vsub.f32 %v733, %v3707
    %3709 = vmatmul.mubr.f32.gmra.mrb[0].mxu0 %v3708
    %v3710 = vpop.f32.mrb[0].mxu0
    %v3711 = vadd.f32 %v3609, %v3710
    %v3712 = vpop.f32.mrb[0].mxu0
    %3713 = vmatprep.mubr.f32.mxu0 0.0
    %v3714 = vand.u32 %v736, 4294901760
    %v3715 = vsub.f32 %v736, %v3714
    %3716 = vmatmul.mubr.f32.gmra.mrb[0].mxu0 %v3715
    %v3717 = vpop.f32.mrb[0].mxu0
    %v3718 = vadd.f32 %v3615, %v3717
    %v3719 = vpop.f32.mrb[0].mxu0
    %3720 = vmatprep.mubr.f32.mxu0 0.0
    %v3721 = vand.u32 %v739, 4294901760
    %v3722 = vsub.f32 %v739, %v3721
    %3723 = vmatmul.mubr.f32.gmra.mrb[0].mxu0 %v3722
    %v3724 = vpop.f32.mrb[0].mxu0
    %v3725 = vadd.f32 %v3621, %v3724
    %v3726 = vpop.f32.mrb[0].mxu0
    %3727 = vmatprep.mubr.f32.mxu0 0.0
    %v3728 = vand.u32 %v742, 4294901760
    %v3729 = vsub.f32 %v742, %v3728
    %3730 = vmatmul.mubr.f32.gmra.mrb[0].mxu0 %v3729
    %v3731 = vpop.f32.mrb[0].mxu0
    %v3732 = vadd.f32 %v3627, %v3731
    %v3733 = vpop.f32.mrb[0].mxu0
    %3734 = vdwg.mxu0
    %3735 = vmatprep.subr.mxu0 0.0
    %v3736 = vand.u32 %v3358, 4294901760
    %3737 = vmatpush1.msra.mxu0 %v3736
    %3738 = vmatprep.subr.mxu0 0.0
    %v3739 = vand.u32 %v3364, 4294901760
    %3740 = vmatpush1.msra.mxu0 %v3739
    %3741 = vmatprep.subr.mxu0 0.0
    %v3742 = vand.u32 %v3382, 4294901760
    %3743 = vmatpush1.msra.mxu0 %v3742
    %3744 = vmatprep.subr.mxu0 0.0
    %v3745 = vand.u32 %v3384, 4294901760
    %3746 = vmatpush1.msra.mxu0 %v3745
    %3747 = vmatprep.subr.mxu0 0.0
    %v3748 = vand.u32 %v3390, 4294901760
    %3749 = vmatpush1.msra.mxu0 %v3748
    %3750 = vmatprep.subr.mxu0 0.0
    %v3751 = vand.u32 %v3392, 4294901760
    %3752 = vmatpush1.msra.mxu0 %v3751
    %3753 = vmatprep.subr.mxu0 0.0
    %3754 = vmatpush1.msra.mxu0 0.0
    %3755 = vmatprep.subr.mxu0 0.0
    %3756 = vmatpush1.msra.mxu0 0.0
    %3757 = vmatprep.subr.mxu0 0.0
    %3758 = vmatpush1.msra.mxu0 0.0
    %3759 = vmatprep.subr.mxu0 0.0
    %3760 = vmatpush1.msra.mxu0 0.0
    %3761 = vmatprep.subr.mxu0 0.0
    %3762 = vmatpush1.msra.mxu0 0.0
    %3763 = vmatprep.subr.mxu0 0.0
    %3764 = vmatpush1.msra.mxu0 0.0
    %3765 = vmatprep.subr.mxu0 0.0
    %3766 = vmatpush1.msra.mxu0 0.0
    %3767 = vmatprep.subr.mxu0 0.0
    %3768 = vmatpush1.msra.mxu0 0.0
    %3769 = vmatprep.subr.mxu0 0.0
    %3770 = vmatpush1.msra.mxu0 0.0
    %3771 = vmatprep.subr.mxu0 0.0
    %3772 = vmatpush1.msra.mxu0 0.0
    %3773 = vmatprep.subr.mxu0 0.0
    %3774 = vmatpush1.msra.mxu0 0.0
    %3775 = vmatprep.subr.mxu0 0.0
    %3776 = vmatpush1.msra.mxu0 0.0
    %3777 = vmatprep.subr.mxu0 0.0
    %3778 = vmatpush1.msra.mxu0 0.0
    %3779 = vmatprep.subr.mxu0 0.0
    %3780 = vmatpush1.msra.mxu0 0.0
    %3781 = vmatprep.subr.mxu0 0.0
    %3782 = vmatpush1.msra.mxu0 0.0
    %3783 = vmatprep.subr.mxu0 0.0
    %3784 = vmatpush1.msra.mxu0 0.0
    %3785 = vmatprep.subr.mxu0 0.0
    %3786 = vmatpush1.msra.mxu0 0.0
    %3787 = vmatprep.subr.mxu0 0.0
    %3788 = vmatpush1.msra.mxu0 0.0
    %3789 = vmatprep.subr.mxu0 0.0
    %3790 = vmatpush1.msra.mxu0 0.0
    %3791 = vmatprep.subr.mxu0 0.0
    %3792 = vmatpush1.msra.mxu0 0.0
    %3793 = vmatprep.subr.mxu0 0.0
    %3794 = vmatpush1.msra.mxu0 0.0
    %3795 = vmatprep.subr.mxu0 0.0
    %3796 = vmatpush1.msra.mxu0 0.0
    %3797 = vmatprep.subr.mxu0 0.0
    %3798 = vmatpush1.msra.mxu0 0.0
    %3799 = vmatprep.subr.mxu0 0.0
    %3800 = vmatpush1.msra.mxu0 0.0
    %3801 = vmatprep.subr.mxu0 0.0
    %3802 = vmatpush1.msra.mxu0 0.0
    %3803 = vmatprep.subr.mxu0 0.0
    %3804 = vmatpush1.msra.mxu0 0.0
    %3805 = vmatprep.mubr.f32.mxu0 0.0
    %v3806 = vand.u32 %v733, 4294901760
    %v3807 = vsub.f32 %v733, %v3806
    %v3808 = vand.u32 %v3807, 4294901760
    %3809 = vmatmul.mubr.f32.gmra.mrb[0].mxu0 %v3808
    %v3810 = vpop.f32.mrb[0].mxu0
    %v3811 = vadd.f32 %v3711, %v3810
    %v3812 = vpop.f32.mrb[0].mxu0
    %3813 = vmatprep.mubr.f32.mxu0 0.0
    %v3814 = vand.u32 %v736, 4294901760
    %v3815 = vsub.f32 %v736, %v3814
    %v3816 = vand.u32 %v3815, 4294901760
    %3817 = vmatmul.mubr.f32.gmra.mrb[0].mxu0 %v3816
    %v3818 = vpop.f32.mrb[0].mxu0
    %v3819 = vadd.f32 %v3718, %v3818
    %v3820 = vpop.f32.mrb[0].mxu0
    %3821 = vmatprep.mubr.f32.mxu0 0.0
    %v3822 = vand.u32 %v739, 4294901760
    %v3823 = vsub.f32 %v739, %v3822
    %v3824 = vand.u32 %v3823, 4294901760
    %3825 = vmatmul.mubr.f32.gmra.mrb[0].mxu0 %v3824
    %v3826 = vpop.f32.mrb[0].mxu0
    %v3827 = vadd.f32 %v3725, %v3826
    %v3828 = vpop.f32.mrb[0].mxu0
    %3829 = vmatprep.mubr.f32.mxu0 0.0
    %v3830 = vand.u32 %v742, 4294901760
    %v3831 = vsub.f32 %v742, %v3830
    %v3832 = vand.u32 %v3831, 4294901760
    %3833 = vmatmul.mubr.f32.gmra.mrb[0].mxu0 %v3832
    %v3834 = vpop.f32.mrb[0].mxu0
    %v3835 = vadd.f32 %v3732, %v3834
    %v3836 = vpop.f32.mrb[0].mxu0
    %3837 = vdwg.mxu0
    %3838 = vmatprep.subr.mxu0 0.0
    %v3839 = vand.u32 %v3358, 4294901760
    %v3840 = vsub.f32 %v3358, %v3839
    %v3841 = vand.u32 %v3840, 4294901760
    %3842 = vmatpush1.msra.mxu0 %v3841
    %3843 = vmatprep.subr.mxu0 0.0
    %v3844 = vand.u32 %v3364, 4294901760
    %v3845 = vsub.f32 %v3364, %v3844
    %v3846 = vand.u32 %v3845, 4294901760
    %3847 = vmatpush1.msra.mxu0 %v3846
    %3848 = vmatprep.subr.mxu0 0.0
    %v3849 = vand.u32 %v3382, 4294901760
    %v3850 = vsub.f32 %v3382, %v3849
    %v3851 = vand.u32 %v3850, 4294901760
    %3852 = vmatpush1.msra.mxu0 %v3851
    %3853 = vmatprep.subr.mxu0 0.0
    %v3854 = vand.u32 %v3384, 4294901760
    %v3855 = vsub.f32 %v3384, %v3854
    %v3856 = vand.u32 %v3855, 4294901760
    %3857 = vmatpush1.msra.mxu0 %v3856
    %3858 = vmatprep.subr.mxu0 0.0
    %v3859 = vand.u32 %v3390, 4294901760
    %v3860 = vsub.f32 %v3390, %v3859
    %v3861 = vand.u32 %v3860, 4294901760
    %3862 = vmatpush1.msra.mxu0 %v3861
    %3863 = vmatprep.subr.mxu0 0.0
    %v3864 = vand.u32 %v3392, 4294901760
    %v3865 = vsub.f32 %v3392, %v3864
    %v3866 = vand.u32 %v3865, 4294901760
    %3867 = vmatpush1.msra.mxu0 %v3866
    %3868 = vmatprep.subr.mxu0 0.0
    %3869 = vmatpush1.msra.mxu0 0.0
    %3870 = vmatprep.subr.mxu0 0.0
    %3871 = vmatpush1.msra.mxu0 0.0
    %3872 = vmatprep.subr.mxu0 0.0
    %3873 = vmatpush1.msra.mxu0 0.0
    %3874 = vmatprep.subr.mxu0 0.0
    %3875 = vmatpush1.msra.mxu0 0.0
    %3876 = vmatprep.subr.mxu0 0.0
    %3877 = vmatpush1.msra.mxu0 0.0
    %3878 = vmatprep.subr.mxu0 0.0
    %3879 = vmatpush1.msra.mxu0 0.0
    %3880 = vmatprep.subr.mxu0 0.0
    %3881 = vmatpush1.msra.mxu0 0.0
    %3882 = vmatprep.subr.mxu0 0.0
    %3883 = vmatpush1.msra.mxu0 0.0
    %3884 = vmatprep.subr.mxu0 0.0
    %3885 = vmatpush1.msra.mxu0 0.0
    %3886 = vmatprep.subr.mxu0 0.0
    %3887 = vmatpush1.msra.mxu0 0.0
    %3888 = vmatprep.subr.mxu0 0.0
    %3889 = vmatpush1.msra.mxu0 0.0
    %3890 = vmatprep.subr.mxu0 0.0
    %3891 = vmatpush1.msra.mxu0 0.0
    %3892 = vmatprep.subr.mxu0 0.0
    %3893 = vmatpush1.msra.mxu0 0.0
    %3894 = vmatprep.subr.mxu0 0.0
    %3895 = vmatpush1.msra.mxu0 0.0
    %3896 = vmatprep.subr.mxu0 0.0
    %3897 = vmatpush1.msra.mxu0 0.0
    %3898 = vmatprep.subr.mxu0 0.0
    %3899 = vmatpush1.msra.mxu0 0.0
    %3900 = vmatprep.subr.mxu0 0.0
    %3901 = vmatpush1.msra.mxu0 0.0
    %3902 = vmatprep.subr.mxu0 0.0
    %3903 = vmatpush1.msra.mxu0 0.0
    %3904 = vmatprep.subr.mxu0 0.0
    %3905 = vmatpush1.msra.mxu0 0.0
    %3906 = vmatprep.subr.mxu0 0.0
    %3907 = vmatpush1.msra.mxu0 0.0
    %3908 = vmatprep.subr.mxu0 0.0
    %3909 = vmatpush1.msra.mxu0 0.0
    %3910 = vmatprep.subr.mxu0 0.0
    %3911 = vmatpush1.msra.mxu0 0.0
    %3912 = vmatprep.subr.mxu0 0.0
    %3913 = vmatpush1.msra.mxu0 0.0
    %3914 = vmatprep.subr.mxu0 0.0
    %3915 = vmatpush1.msra.mxu0 0.0
    %3916 = vmatprep.subr.mxu0 0.0
    %3917 = vmatpush1.msra.mxu0 0.0
    %3918 = vmatprep.subr.mxu0 0.0
    %3919 = vmatpush1.msra.mxu0 0.0
    %3920 = vmatprep.mubr.f32.mxu0 0.0
    %v3921 = vand.u32 %v733, 4294901760
    %3922 = vmatmul.mubr.f32.gmra.mrb[0].mxu0 %v3921
    %v3923 = vpop.f32.mrb[0].mxu0
    %v3924 = vadd.f32 %v3811, %v3923
    %v3925 = vpop.f32.mrb[0].mxu0
    %3926 = vmatprep.mubr.f32.mxu0 0.0
    %v3927 = vand.u32 %v736, 4294901760
    %3928 = vmatmul.mubr.f32.gmra.mrb[0].mxu0 %v3927
    %v3929 = vpop.f32.mrb[0].mxu0
    %v3930 = vadd.f32 %v3819, %v3929
    %v3931 = vpop.f32.mrb[0].mxu0
    %3932 = vmatprep.mubr.f32.mxu0 0.0
    %v3933 = vand.u32 %v739, 4294901760
    %3934 = vmatmul.mubr.f32.gmra.mrb[0].mxu0 %v3933
    %v3935 = vpop.f32.mrb[0].mxu0
    %v3936 = vadd.f32 %v3827, %v3935
    %v3937 = vpop.f32.mrb[0].mxu0
    %3938 = vmatprep.mubr.f32.mxu0 0.0
    %v3939 = vand.u32 %v742, 4294901760
    %3940 = vmatmul.mubr.f32.gmra.mrb[0].mxu0 %v3939
    %v3941 = vpop.f32.mrb[0].mxu0
    %v3942 = vadd.f32 %v3835, %v3941
    %v3943 = vpop.f32.mrb[0].mxu0
    %3944 = vdwg.mxu0
    %3945 = vmatprep.subr.mxu0 0.0
    %v3946 = vand.u32 %v3358, 4294901760
    %3947 = vmatpush1.msra.mxu0 %v3946
    %3948 = vmatprep.subr.mxu0 0.0
    %v3949 = vand.u32 %v3364, 4294901760
    %3950 = vmatpush1.msra.mxu0 %v3949
    %3951 = vmatprep.subr.mxu0 0.0
    %v3952 = vand.u32 %v3382, 4294901760
    %3953 = vmatpush1.msra.mxu0 %v3952
    %3954 = vmatprep.subr.mxu0 0.0
    %v3955 = vand.u32 %v3384, 4294901760
    %3956 = vmatpush1.msra.mxu0 %v3955
    %3957 = vmatprep.subr.mxu0 0.0
    %v3958 = vand.u32 %v3390, 4294901760
    %3959 = vmatpush1.msra.mxu0 %v3958
    %3960 = vmatprep.subr.mxu0 0.0
    %v3961 = vand.u32 %v3392, 4294901760
    %3962 = vmatpush1.msra.mxu0 %v3961
    %3963 = vmatprep.subr.mxu0 0.0
    %3964 = vmatpush1.msra.mxu0 0.0
    %3965 = vmatprep.subr.mxu0 0.0
    %3966 = vmatpush1.msra.mxu0 0.0
    %3967 = vmatprep.subr.mxu0 0.0
    %3968 = vmatpush1.msra.mxu0 0.0
    %3969 = vmatprep.subr.mxu0 0.0
    %3970 = vmatpush1.msra.mxu0 0.0
    %3971 = vmatprep.subr.mxu0 0.0
    %3972 = vmatpush1.msra.mxu0 0.0
    %3973 = vmatprep.subr.mxu0 0.0
    %3974 = vmatpush1.msra.mxu0 0.0
    %3975 = vmatprep.subr.mxu0 0.0
    %3976 = vmatpush1.msra.mxu0 0.0
    %3977 = vmatprep.subr.mxu0 0.0
    %3978 = vmatpush1.msra.mxu0 0.0
    %3979 = vmatprep.subr.mxu0 0.0
    %3980 = vmatpush1.msra.mxu0 0.0
    %3981 = vmatprep.subr.mxu0 0.0
    %3982 = vmatpush1.msra.mxu0 0.0
    %3983 = vmatprep.subr.mxu0 0.0
    %3984 = vmatpush1.msra.mxu0 0.0
    %3985 = vmatprep.subr.mxu0 0.0
    %3986 = vmatpush1.msra.mxu0 0.0
    %3987 = vmatprep.subr.mxu0 0.0
    %3988 = vmatpush1.msra.mxu0 0.0
    %3989 = vmatprep.subr.mxu0 0.0
    %3990 = vmatpush1.msra.mxu0 0.0
    %3991 = vmatprep.subr.mxu0 0.0
    %3992 = vmatpush1.msra.mxu0 0.0
    %3993 = vmatprep.subr.mxu0 0.0
    %3994 = vmatpush1.msra.mxu0 0.0
    %3995 = vmatprep.subr.mxu0 0.0
    %3996 = vmatpush1.msra.mxu0 0.0
    %3997 = vmatprep.subr.mxu0 0.0
    %3998 = vmatpush1.msra.mxu0 0.0
    %3999 = vmatprep.subr.mxu0 0.0
    %4000 = vmatpush1.msra.mxu0 0.0
    %4001 = vmatprep.subr.mxu0 0.0
    %4002 = vmatpush1.msra.mxu0 0.0
    %4003 = vmatprep.subr.mxu0 0.0
    %4004 = vmatpush1.msra.mxu0 0.0
    %4005 = vmatprep.subr.mxu0 0.0
    %4006 = vmatpush1.msra.mxu0 0.0
    %4007 = vmatprep.subr.mxu0 0.0
    %4008 = vmatpush1.msra.mxu0 0.0
    %4009 = vmatprep.subr.mxu0 0.0
    %4010 = vmatpush1.msra.mxu0 0.0
    %4011 = vmatprep.subr.mxu0 0.0
    %4012 = vmatpush1.msra.mxu0 0.0
    %4013 = vmatprep.subr.mxu0 0.0
    %4014 = vmatpush1.msra.mxu0 0.0
    %4015 = vmatprep.mubr.f32.mxu0 0.0
    %v4016 = vand.u32 %v733, 4294901760
    %4017 = vmatmul.mubr.f32.gmra.mrb[0].mxu0 %v4016
    %v4018 = vpop.f32.mrb[0].mxu0
    %v4019 = vadd.f32 %v3924, %v4018
    %v4020 = vpop.f32.mrb[0].mxu0
    %4021 = vmatprep.mubr.f32.mxu0 0.0
    %v4022 = vand.u32 %v736, 4294901760
    %4023 = vmatmul.mubr.f32.gmra.mrb[0].mxu0 %v4022
    %v4024 = vpop.f32.mrb[0].mxu0
    %v4025 = vadd.f32 %v3930, %v4024
    %v4026 = vpop.f32.mrb[0].mxu0
    %4027 = vmatprep.mubr.f32.mxu0 0.0
    %v4028 = vand.u32 %v739, 4294901760
    %4029 = vmatmul.mubr.f32.gmra.mrb[0].mxu0 %v4028
    %v4030 = vpop.f32.mrb[0].mxu0
    %v4031 = vadd.f32 %v3936, %v4030
    %v4032 = vpop.f32.mrb[0].mxu0
    %4033 = vmatprep.mubr.f32.mxu0 0.0
    %v4034 = vand.u32 %v742, 4294901760
    %4035 = vmatmul.mubr.f32.gmra.mrb[0].mxu0 %v4034
    %v4036 = vpop.f32.mrb[0].mxu0
    %v4037 = vadd.f32 %v3942, %v4036
    %v4038 = vpop.f32.mrb[0].mxu0
    %4039 = vdwg.mxu0
    %v4040 = vmax.f32 %v4019, 0.0
    %v4041 = vmax.f32 %v4025, 0.0
    %v4042 = vmax.f32 %v4031, 0.0
    %v4043 = vmax.f32 %v4037, 0.0
    %v4044 = vmul.f32 %v4040, %v4040
    %v4045 = vmul.f32 %v4041, %v4041
    %v4046 = vmul.f32 %v4042, %v4042
    %v4047 = vmul.f32 %v4043, %v4043
    %v4048 = vsel %vm84, %v4044, 0.0
    %4049 = vadd.xlane.f32.xlu0 %v4048
    %v4050 = vpop.xlane.xlu0 %4049
    %v4051 = vsel %vm84, %v4045, 0.0
    %4052 = vadd.xlane.f32.xlu0 %v4051
    %v4053 = vpop.xlane.xlu0 %4052
    %v4054 = vsel %vm84, %v4046, 0.0
    %4055 = vadd.xlane.f32.xlu0 %v4054
    %v4056 = vpop.xlane.xlu0 %4055
    %v4057 = vsel %vm84, %v4047, 0.0
    %4058 = vadd.xlane.f32.xlu0 %v4057
    %v4059 = vpop.xlane.xlu0 %4058
    %v4060 = vmax.f32 %v4050, 1e-24
    %v4061 = vmax.f32 %v4053, 1e-24
    %v4062 = vmax.f32 %v4056, 1e-24
    %v4063 = vmax.f32 %v4059, 1e-24
    %v4064 = vrsqrt.pop %v4060
    %v4065 = vrsqrt.pop %v4061
    %v4066 = vrsqrt.pop %v4062
    %v4067 = vrsqrt.pop %v4063
    %v4068 = vmul.f32 %v4040, %v4064
    %v4069 = vmul.f32 %v4041, %v4065
    %v4070 = vmul.f32 %v4042, %v4066
    %v4071 = vmul.f32 %v4043, %v4067
    %s4072 = scalar_lea.vmem [#allocation6], 96
    %v4073 = vld [vmem:[%s4072] sm:$0xff]
    %v4074 = vld [vmem:[%s4072 + $0x8] sm:$0xff]
    %v4075 = vld [vmem:[%s4072 + $0x10] sm:$0xff]
    %v4076 = vld [vmem:[%s4072 + $0x18] sm:$0xff]
    %v4078 = vsel %vm84, %v4068, 0
    %v4081 = vsel %vm84, %v4069, 0
    %v4084 = vsel %vm84, %v4070, 0
    %v4087 = vsel %vm84, %v4071, 0
    %4089 = vmatprep.subr.mxu0 0.0
    %v4090 = vand.u32 %v4073, 4294901760
    %4091 = vmatpush1.msra.mxu0 %v4090
    %4092 = vmatprep.subr.mxu0 0.0
    %v4093 = vand.u32 %v4074, 4294901760
    %4094 = vmatpush1.msra.mxu0 %v4093
    %4095 = vmatprep.subr.mxu0 0.0
    %v4096 = vand.u32 %v4075, 4294901760
    %4097 = vmatpush1.msra.mxu0 %v4096
    %4098 = vmatprep.subr.mxu0 0.0
    %v4099 = vand.u32 %v4076, 4294901760
    %4100 = vmatpush1.msra.mxu0 %v4099
    %4101 = vmatprep.subr.mxu0 0.0
    %4102 = vmatpush1.msra.mxu0 0.0
    %4103 = vmatprep.subr.mxu0 0.0
    %4104 = vmatpush1.msra.mxu0 0.0
    %4105 = vmatprep.subr.mxu0 0.0
    %4106 = vmatpush1.msra.mxu0 0.0
    %4107 = vmatprep.subr.mxu0 0.0
    %4108 = vmatpush1.msra.mxu0 0.0
    %4109 = vmatprep.subr.mxu0 0.0
    %4110 = vmatpush1.msra.mxu0 0.0
    %4111 = vmatprep.subr.mxu0 0.0
    %4112 = vmatpush1.msra.mxu0 0.0
    %4113 = vmatprep.subr.mxu0 0.0
    %4114 = vmatpush1.msra.mxu0 0.0
    %4115 = vmatprep.subr.mxu0 0.0
    %4116 = vmatpush1.msra.mxu0 0.0
    %4117 = vmatprep.subr.mxu0 0.0
    %4118 = vmatpush1.msra.mxu0 0.0
    %4119 = vmatprep.subr.mxu0 0.0
    %4120 = vmatpush1.msra.mxu0 0.0
    %4121 = vmatprep.subr.mxu0 0.0
    %4122 = vmatpush1.msra.mxu0 0.0
    %4123 = vmatprep.subr.mxu0 0.0
    %4124 = vmatpush1.msra.mxu0 0.0
    %4125 = vmatprep.subr.mxu0 0.0
    %4126 = vmatpush1.msra.mxu0 0.0
    %4127 = vmatprep.subr.mxu0 0.0
    %4128 = vmatpush1.msra.mxu0 0.0
    %4129 = vmatprep.subr.mxu0 0.0
    %4130 = vmatpush1.msra.mxu0 0.0
    %4131 = vmatprep.subr.mxu0 0.0
    %4132 = vmatpush1.msra.mxu0 0.0
    %4133 = vmatprep.subr.mxu0 0.0
    %4134 = vmatpush1.msra.mxu0 0.0
    %4135 = vmatprep.subr.mxu0 0.0
    %4136 = vmatpush1.msra.mxu0 0.0
    %4137 = vmatprep.subr.mxu0 0.0
    %4138 = vmatpush1.msra.mxu0 0.0
    %4139 = vmatprep.subr.mxu0 0.0
    %4140 = vmatpush1.msra.mxu0 0.0
    %4141 = vmatprep.subr.mxu0 0.0
    %4142 = vmatpush1.msra.mxu0 0.0
    %4143 = vmatprep.subr.mxu0 0.0
    %4144 = vmatpush1.msra.mxu0 0.0
    %4145 = vmatprep.subr.mxu0 0.0
    %4146 = vmatpush1.msra.mxu0 0.0
    %4147 = vmatprep.subr.mxu0 0.0
    %4148 = vmatpush1.msra.mxu0 0.0
    %4149 = vmatprep.subr.mxu0 0.0
    %4150 = vmatpush1.msra.mxu0 0.0
    %4151 = vmatprep.subr.mxu0 0.0
    %4152 = vmatpush1.msra.mxu0 0.0
    %4153 = vmatprep.subr.mxu0 0.0
    %4154 = vmatpush1.msra.mxu0 0.0
    %4155 = vmatprep.subr.mxu0 0.0
    %4156 = vmatpush1.msra.mxu0 0.0
    %4157 = vmatprep.mubr.f32.mxu0 0.0
    %v4158 = vand.u32 %v4078, 4294901760
    %v4159 = vsub.f32 %v4078, %v4158
    %v4160 = vand.u32 %v4159, 4294901760
    %v4161 = vsub.f32 %v4159, %v4160
    %v4162 = vand.u32 %v4161, 4294901760
    %4163 = vmatmul.mubr.f32.gmra.mrb[0].mxu0 %v4162
    %v4164 = vpop.f32.mrb[0].mxu0
    %v4165 = vadd.f32 0.0, %v4164
    %v4166 = vpop.f32.mrb[0].mxu0
    %4167 = vmatprep.mubr.f32.mxu0 0.0
    %v4168 = vand.u32 %v4081, 4294901760
    %v4169 = vsub.f32 %v4081, %v4168
    %v4170 = vand.u32 %v4169, 4294901760
    %v4171 = vsub.f32 %v4169, %v4170
    %v4172 = vand.u32 %v4171, 4294901760
    %4173 = vmatmul.mubr.f32.gmra.mrb[0].mxu0 %v4172
    %v4174 = vpop.f32.mrb[0].mxu0
    %v4175 = vadd.f32 0.0, %v4174
    %v4176 = vpop.f32.mrb[0].mxu0
    %4177 = vmatprep.mubr.f32.mxu0 0.0
    %v4178 = vand.u32 %v4084, 4294901760
    %v4179 = vsub.f32 %v4084, %v4178
    %v4180 = vand.u32 %v4179, 4294901760
    %v4181 = vsub.f32 %v4179, %v4180
    %v4182 = vand.u32 %v4181, 4294901760
    %4183 = vmatmul.mubr.f32.gmra.mrb[0].mxu0 %v4182
    %v4184 = vpop.f32.mrb[0].mxu0
    %v4185 = vadd.f32 0.0, %v4184
    %v4186 = vpop.f32.mrb[0].mxu0
    %4187 = vmatprep.mubr.f32.mxu0 0.0
    %v4188 = vand.u32 %v4087, 4294901760
    %v4189 = vsub.f32 %v4087, %v4188
    %v4190 = vand.u32 %v4189, 4294901760
    %v4191 = vsub.f32 %v4189, %v4190
    %v4192 = vand.u32 %v4191, 4294901760
    %4193 = vmatmul.mubr.f32.gmra.mrb[0].mxu0 %v4192
    %v4194 = vpop.f32.mrb[0].mxu0
    %v4195 = vadd.f32 0.0, %v4194
    %v4196 = vpop.f32.mrb[0].mxu0
    %4197 = vdwg.mxu0
    %4198 = vmatprep.subr.mxu0 0.0
    %v4199 = vand.u32 %v4073, 4294901760
    %v4200 = vsub.f32 %v4073, %v4199
    %v4201 = vand.u32 %v4200, 4294901760
    %v4202 = vsub.f32 %v4200, %v4201
    %v4203 = vand.u32 %v4202, 4294901760
    %4204 = vmatpush1.msra.mxu0 %v4203
    %4205 = vmatprep.subr.mxu0 0.0
    %v4206 = vand.u32 %v4074, 4294901760
    %v4207 = vsub.f32 %v4074, %v4206
    %v4208 = vand.u32 %v4207, 4294901760
    %v4209 = vsub.f32 %v4207, %v4208
    %v4210 = vand.u32 %v4209, 4294901760
    %4211 = vmatpush1.msra.mxu0 %v4210
    %4212 = vmatprep.subr.mxu0 0.0
    %v4213 = vand.u32 %v4075, 4294901760
    %v4214 = vsub.f32 %v4075, %v4213
    %v4215 = vand.u32 %v4214, 4294901760
    %v4216 = vsub.f32 %v4214, %v4215
    %v4217 = vand.u32 %v4216, 4294901760
    %4218 = vmatpush1.msra.mxu0 %v4217
    %4219 = vmatprep.subr.mxu0 0.0
    %v4220 = vand.u32 %v4076, 4294901760
    %v4221 = vsub.f32 %v4076, %v4220
    %v4222 = vand.u32 %v4221, 4294901760
    %v4223 = vsub.f32 %v4221, %v4222
    %v4224 = vand.u32 %v4223, 4294901760
    %4225 = vmatpush1.msra.mxu0 %v4224
    %4226 = vmatprep.subr.mxu0 0.0
    %4227 = vmatpush1.msra.mxu0 0.0
    %4228 = vmatprep.subr.mxu0 0.0
    %4229 = vmatpush1.msra.mxu0 0.0
    %4230 = vmatprep.subr.mxu0 0.0
    %4231 = vmatpush1.msra.mxu0 0.0
    %4232 = vmatprep.subr.mxu0 0.0
    %4233 = vmatpush1.msra.mxu0 0.0
    %4234 = vmatprep.subr.mxu0 0.0
    %4235 = vmatpush1.msra.mxu0 0.0
    %4236 = vmatprep.subr.mxu0 0.0
    %4237 = vmatpush1.msra.mxu0 0.0
    %4238 = vmatprep.subr.mxu0 0.0
    %4239 = vmatpush1.msra.mxu0 0.0
    %4240 = vmatprep.subr.mxu0 0.0
    %4241 = vmatpush1.msra.mxu0 0.0
    %4242 = vmatprep.subr.mxu0 0.0
    %4243 = vmatpush1.msra.mxu0 0.0
    %4244 = vmatprep.subr.mxu0 0.0
    %4245 = vmatpush1.msra.mxu0 0.0
    %4246 = vmatprep.subr.mxu0 0.0
    %4247 = vmatpush1.msra.mxu0 0.0
    %4248 = vmatprep.subr.mxu0 0.0
    %4249 = vmatpush1.msra.mxu0 0.0
    %4250 = vmatprep.subr.mxu0 0.0
    %4251 = vmatpush1.msra.mxu0 0.0
    %4252 = vmatprep.subr.mxu0 0.0
    %4253 = vmatpush1.msra.mxu0 0.0
    %4254 = vmatprep.subr.mxu0 0.0
    %4255 = vmatpush1.msra.mxu0 0.0
    %4256 = vmatprep.subr.mxu0 0.0
    %4257 = vmatpush1.msra.mxu0 0.0
    %4258 = vmatprep.subr.mxu0 0.0
    %4259 = vmatpush1.msra.mxu0 0.0
    %4260 = vmatprep.subr.mxu0 0.0
    %4261 = vmatpush1.msra.mxu0 0.0
    %4262 = vmatprep.subr.mxu0 0.0
    %4263 = vmatpush1.msra.mxu0 0.0
    %4264 = vmatprep.subr.mxu0 0.0
    %4265 = vmatpush1.msra.mxu0 0.0
    %4266 = vmatprep.subr.mxu0 0.0
    %4267 = vmatpush1.msra.mxu0 0.0
    %4268 = vmatprep.subr.mxu0 0.0
    %4269 = vmatpush1.msra.mxu0 0.0
    %4270 = vmatprep.subr.mxu0 0.0
    %4271 = vmatpush1.msra.mxu0 0.0
    %4272 = vmatprep.subr.mxu0 0.0
    %4273 = vmatpush1.msra.mxu0 0.0
    %4274 = vmatprep.subr.mxu0 0.0
    %4275 = vmatpush1.msra.mxu0 0.0
    %4276 = vmatprep.subr.mxu0 0.0
    %4277 = vmatpush1.msra.mxu0 0.0
    %4278 = vmatprep.subr.mxu0 0.0
    %4279 = vmatpush1.msra.mxu0 0.0
    %4280 = vmatprep.subr.mxu0 0.0
    %4281 = vmatpush1.msra.mxu0 0.0
    %4282 = vmatprep.mubr.f32.mxu0 0.0
    %v4283 = vand.u32 %v4078, 4294901760
    %4284 = vmatmul.mubr.f32.gmra.mrb[0].mxu0 %v4283
    %v4285 = vpop.f32.mrb[0].mxu0
    %v4286 = vadd.f32 %v4165, %v4285
    %v4287 = vpop.f32.mrb[0].mxu0
    %4288 = vmatprep.mubr.f32.mxu0 0.0
    %v4289 = vand.u32 %v4081, 4294901760
    %4290 = vmatmul.mubr.f32.gmra.mrb[0].mxu0 %v4289
    %v4291 = vpop.f32.mrb[0].mxu0
    %v4292 = vadd.f32 %v4175, %v4291
    %v4293 = vpop.f32.mrb[0].mxu0
    %4294 = vmatprep.mubr.f32.mxu0 0.0
    %v4295 = vand.u32 %v4084, 4294901760
    %4296 = vmatmul.mubr.f32.gmra.mrb[0].mxu0 %v4295
    %v4297 = vpop.f32.mrb[0].mxu0
    %v4298 = vadd.f32 %v4185, %v4297
    %v4299 = vpop.f32.mrb[0].mxu0
    %4300 = vmatprep.mubr.f32.mxu0 0.0
    %v4301 = vand.u32 %v4087, 4294901760
    %4302 = vmatmul.mubr.f32.gmra.mrb[0].mxu0 %v4301
    %v4303 = vpop.f32.mrb[0].mxu0
    %v4304 = vadd.f32 %v4195, %v4303
    %v4305 = vpop.f32.mrb[0].mxu0
    %4306 = vdwg.mxu0
    %4307 = vmatprep.subr.mxu0 0.0
    %v4308 = vand.u32 %v4073, 4294901760
    %v4309 = vsub.f32 %v4073, %v4308
    %4310 = vmatpush1.msra.mxu0 %v4309
    %4311 = vmatprep.subr.mxu0 0.0
    %v4312 = vand.u32 %v4074, 4294901760
    %v4313 = vsub.f32 %v4074, %v4312
    %4314 = vmatpush1.msra.mxu0 %v4313
    %4315 = vmatprep.subr.mxu0 0.0
    %v4316 = vand.u32 %v4075, 4294901760
    %v4317 = vsub.f32 %v4075, %v4316
    %4318 = vmatpush1.msra.mxu0 %v4317
    %4319 = vmatprep.subr.mxu0 0.0
    %v4320 = vand.u32 %v4076, 4294901760
    %v4321 = vsub.f32 %v4076, %v4320
    %4322 = vmatpush1.msra.mxu0 %v4321
    %4323 = vmatprep.subr.mxu0 0.0
    %4324 = vmatpush1.msra.mxu0 0.0
    %4325 = vmatprep.subr.mxu0 0.0
    %4326 = vmatpush1.msra.mxu0 0.0
    %4327 = vmatprep.subr.mxu0 0.0
    %4328 = vmatpush1.msra.mxu0 0.0
    %4329 = vmatprep.subr.mxu0 0.0
    %4330 = vmatpush1.msra.mxu0 0.0
    %4331 = vmatprep.subr.mxu0 0.0
    %4332 = vmatpush1.msra.mxu0 0.0
    %4333 = vmatprep.subr.mxu0 0.0
    %4334 = vmatpush1.msra.mxu0 0.0
    %4335 = vmatprep.subr.mxu0 0.0
    %4336 = vmatpush1.msra.mxu0 0.0
    %4337 = vmatprep.subr.mxu0 0.0
    %4338 = vmatpush1.msra.mxu0 0.0
    %4339 = vmatprep.subr.mxu0 0.0
    %4340 = vmatpush1.msra.mxu0 0.0
    %4341 = vmatprep.subr.mxu0 0.0
    %4342 = vmatpush1.msra.mxu0 0.0
    %4343 = vmatprep.subr.mxu0 0.0
    %4344 = vmatpush1.msra.mxu0 0.0
    %4345 = vmatprep.subr.mxu0 0.0
    %4346 = vmatpush1.msra.mxu0 0.0
    %4347 = vmatprep.subr.mxu0 0.0
    %4348 = vmatpush1.msra.mxu0 0.0
    %4349 = vmatprep.subr.mxu0 0.0
    %4350 = vmatpush1.msra.mxu0 0.0
    %4351 = vmatprep.subr.mxu0 0.0
    %4352 = vmatpush1.msra.mxu0 0.0
    %4353 = vmatprep.subr.mxu0 0.0
    %4354 = vmatpush1.msra.mxu0 0.0
    %4355 = vmatprep.subr.mxu0 0.0
    %4356 = vmatpush1.msra.mxu0 0.0
    %4357 = vmatprep.subr.mxu0 0.0
    %4358 = vmatpush1.msra.mxu0 0.0
    %4359 = vmatprep.subr.mxu0 0.0
    %4360 = vmatpush1.msra.mxu0 0.0
    %4361 = vmatprep.subr.mxu0 0.0
    %4362 = vmatpush1.msra.mxu0 0.0
    %4363 = vmatprep.subr.mxu0 0.0
    %4364 = vmatpush1.msra.mxu0 0.0
    %4365 = vmatprep.subr.mxu0 0.0
    %4366 = vmatpush1.msra.mxu0 0.0
    %4367 = vmatprep.subr.mxu0 0.0
    %4368 = vmatpush1.msra.mxu0 0.0
    %4369 = vmatprep.subr.mxu0 0.0
    %4370 = vmatpush1.msra.mxu0 0.0
    %4371 = vmatprep.subr.mxu0 0.0
    %4372 = vmatpush1.msra.mxu0 0.0
    %4373 = vmatprep.subr.mxu0 0.0
    %4374 = vmatpush1.msra.mxu0 0.0
    %4375 = vmatprep.subr.mxu0 0.0
    %4376 = vmatpush1.msra.mxu0 0.0
    %4377 = vmatprep.subr.mxu0 0.0
    %4378 = vmatpush1.msra.mxu0 0.0
    %4379 = vmatprep.mubr.f32.mxu0 0.0
    %v4380 = vand.u32 %v4078, 4294901760
    %v4381 = vsub.f32 %v4078, %v4380
    %4382 = vmatmul.mubr.f32.gmra.mrb[0].mxu0 %v4381
    %v4383 = vpop.f32.mrb[0].mxu0
    %v4384 = vadd.f32 %v4286, %v4383
    %v4385 = vpop.f32.mrb[0].mxu0
    %4386 = vmatprep.mubr.f32.mxu0 0.0
    %v4387 = vand.u32 %v4081, 4294901760
    %v4388 = vsub.f32 %v4081, %v4387
    %4389 = vmatmul.mubr.f32.gmra.mrb[0].mxu0 %v4388
    %v4390 = vpop.f32.mrb[0].mxu0
    %v4391 = vadd.f32 %v4292, %v4390
    %v4392 = vpop.f32.mrb[0].mxu0
    %4393 = vmatprep.mubr.f32.mxu0 0.0
    %v4394 = vand.u32 %v4084, 4294901760
    %v4395 = vsub.f32 %v4084, %v4394
    %4396 = vmatmul.mubr.f32.gmra.mrb[0].mxu0 %v4395
    %v4397 = vpop.f32.mrb[0].mxu0
    %v4398 = vadd.f32 %v4298, %v4397
    %v4399 = vpop.f32.mrb[0].mxu0
    %4400 = vmatprep.mubr.f32.mxu0 0.0
    %v4401 = vand.u32 %v4087, 4294901760
    %v4402 = vsub.f32 %v4087, %v4401
    %4403 = vmatmul.mubr.f32.gmra.mrb[0].mxu0 %v4402
    %v4404 = vpop.f32.mrb[0].mxu0
    %v4405 = vadd.f32 %v4304, %v4404
    %v4406 = vpop.f32.mrb[0].mxu0
    %4407 = vdwg.mxu0
    %4408 = vmatprep.subr.mxu0 0.0
    %v4409 = vand.u32 %v4073, 4294901760
    %4410 = vmatpush1.msra.mxu0 %v4409
    %4411 = vmatprep.subr.mxu0 0.0
    %v4412 = vand.u32 %v4074, 4294901760
    %4413 = vmatpush1.msra.mxu0 %v4412
    %4414 = vmatprep.subr.mxu0 0.0
    %v4415 = vand.u32 %v4075, 4294901760
    %4416 = vmatpush1.msra.mxu0 %v4415
    %4417 = vmatprep.subr.mxu0 0.0
    %v4418 = vand.u32 %v4076, 4294901760
    %4419 = vmatpush1.msra.mxu0 %v4418
    %4420 = vmatprep.subr.mxu0 0.0
    %4421 = vmatpush1.msra.mxu0 0.0
    %4422 = vmatprep.subr.mxu0 0.0
    %4423 = vmatpush1.msra.mxu0 0.0
    %4424 = vmatprep.subr.mxu0 0.0
    %4425 = vmatpush1.msra.mxu0 0.0
    %4426 = vmatprep.subr.mxu0 0.0
    %4427 = vmatpush1.msra.mxu0 0.0
    %4428 = vmatprep.subr.mxu0 0.0
    %4429 = vmatpush1.msra.mxu0 0.0
    %4430 = vmatprep.subr.mxu0 0.0
    %4431 = vmatpush1.msra.mxu0 0.0
    %4432 = vmatprep.subr.mxu0 0.0
    %4433 = vmatpush1.msra.mxu0 0.0
    %4434 = vmatprep.subr.mxu0 0.0
    %4435 = vmatpush1.msra.mxu0 0.0
    %4436 = vmatprep.subr.mxu0 0.0
    %4437 = vmatpush1.msra.mxu0 0.0
    %4438 = vmatprep.subr.mxu0 0.0
    %4439 = vmatpush1.msra.mxu0 0.0
    %4440 = vmatprep.subr.mxu0 0.0
    %4441 = vmatpush1.msra.mxu0 0.0
    %4442 = vmatprep.subr.mxu0 0.0
    %4443 = vmatpush1.msra.mxu0 0.0
    %4444 = vmatprep.subr.mxu0 0.0
    %4445 = vmatpush1.msra.mxu0 0.0
    %4446 = vmatprep.subr.mxu0 0.0
    %4447 = vmatpush1.msra.mxu0 0.0
    %4448 = vmatprep.subr.mxu0 0.0
    %4449 = vmatpush1.msra.mxu0 0.0
    %4450 = vmatprep.subr.mxu0 0.0
    %4451 = vmatpush1.msra.mxu0 0.0
    %4452 = vmatprep.subr.mxu0 0.0
    %4453 = vmatpush1.msra.mxu0 0.0
    %4454 = vmatprep.subr.mxu0 0.0
    %4455 = vmatpush1.msra.mxu0 0.0
    %4456 = vmatprep.subr.mxu0 0.0
    %4457 = vmatpush1.msra.mxu0 0.0
    %4458 = vmatprep.subr.mxu0 0.0
    %4459 = vmatpush1.msra.mxu0 0.0
    %4460 = vmatprep.subr.mxu0 0.0
    %4461 = vmatpush1.msra.mxu0 0.0
    %4462 = vmatprep.subr.mxu0 0.0
    %4463 = vmatpush1.msra.mxu0 0.0
    %4464 = vmatprep.subr.mxu0 0.0
    %4465 = vmatpush1.msra.mxu0 0.0
    %4466 = vmatprep.subr.mxu0 0.0
    %4467 = vmatpush1.msra.mxu0 0.0
    %4468 = vmatprep.subr.mxu0 0.0
    %4469 = vmatpush1.msra.mxu0 0.0
    %4470 = vmatprep.subr.mxu0 0.0
    %4471 = vmatpush1.msra.mxu0 0.0
    %4472 = vmatprep.subr.mxu0 0.0
    %4473 = vmatpush1.msra.mxu0 0.0
    %4474 = vmatprep.subr.mxu0 0.0
    %4475 = vmatpush1.msra.mxu0 0.0
    %4476 = vmatprep.mubr.f32.mxu0 0.0
    %v4477 = vand.u32 %v4078, 4294901760
    %v4478 = vsub.f32 %v4078, %v4477
    %v4479 = vand.u32 %v4478, 4294901760
    %4480 = vmatmul.mubr.f32.gmra.mrb[0].mxu0 %v4479
    %v4481 = vpop.f32.mrb[0].mxu0
    %v4482 = vadd.f32 %v4384, %v4481
    %v4483 = vpop.f32.mrb[0].mxu0
    %4484 = vmatprep.mubr.f32.mxu0 0.0
    %v4485 = vand.u32 %v4081, 4294901760
    %v4486 = vsub.f32 %v4081, %v4485
    %v4487 = vand.u32 %v4486, 4294901760
    %4488 = vmatmul.mubr.f32.gmra.mrb[0].mxu0 %v4487
    %v4489 = vpop.f32.mrb[0].mxu0
    %v4490 = vadd.f32 %v4391, %v4489
    %v4491 = vpop.f32.mrb[0].mxu0
    %4492 = vmatprep.mubr.f32.mxu0 0.0
    %v4493 = vand.u32 %v4084, 4294901760
    %v4494 = vsub.f32 %v4084, %v4493
    %v4495 = vand.u32 %v4494, 4294901760
    %4496 = vmatmul.mubr.f32.gmra.mrb[0].mxu0 %v4495
    %v4497 = vpop.f32.mrb[0].mxu0
    %v4498 = vadd.f32 %v4398, %v4497
    %v4499 = vpop.f32.mrb[0].mxu0
    %4500 = vmatprep.mubr.f32.mxu0 0.0
    %v4501 = vand.u32 %v4087, 4294901760
    %v4502 = vsub.f32 %v4087, %v4501
    %v4503 = vand.u32 %v4502, 4294901760
    %4504 = vmatmul.mubr.f32.gmra.mrb[0].mxu0 %v4503
    %v4505 = vpop.f32.mrb[0].mxu0
    %v4506 = vadd.f32 %v4405, %v4505
    %v4507 = vpop.f32.mrb[0].mxu0
    %4508 = vdwg.mxu0
    %4509 = vmatprep.subr.mxu0 0.0
    %v4510 = vand.u32 %v4073, 4294901760
    %v4511 = vsub.f32 %v4073, %v4510
    %v4512 = vand.u32 %v4511, 4294901760
    %4513 = vmatpush1.msra.mxu0 %v4512
    %4514 = vmatprep.subr.mxu0 0.0
    %v4515 = vand.u32 %v4074, 4294901760
    %v4516 = vsub.f32 %v4074, %v4515
    %v4517 = vand.u32 %v4516, 4294901760
    %4518 = vmatpush1.msra.mxu0 %v4517
    %4519 = vmatprep.subr.mxu0 0.0
    %v4520 = vand.u32 %v4075, 4294901760
    %v4521 = vsub.f32 %v4075, %v4520
    %v4522 = vand.u32 %v4521, 4294901760
    %4523 = vmatpush1.msra.mxu0 %v4522
    %4524 = vmatprep.subr.mxu0 0.0
    %v4525 = vand.u32 %v4076, 4294901760
    %v4526 = vsub.f32 %v4076, %v4525
    %v4527 = vand.u32 %v4526, 4294901760
    %4528 = vmatpush1.msra.mxu0 %v4527
    %4529 = vmatprep.subr.mxu0 0.0
    %4530 = vmatpush1.msra.mxu0 0.0
    %4531 = vmatprep.subr.mxu0 0.0
    %4532 = vmatpush1.msra.mxu0 0.0
    %4533 = vmatprep.subr.mxu0 0.0
    %4534 = vmatpush1.msra.mxu0 0.0
    %4535 = vmatprep.subr.mxu0 0.0
    %4536 = vmatpush1.msra.mxu0 0.0
    %4537 = vmatprep.subr.mxu0 0.0
    %4538 = vmatpush1.msra.mxu0 0.0
    %4539 = vmatprep.subr.mxu0 0.0
    %4540 = vmatpush1.msra.mxu0 0.0
    %4541 = vmatprep.subr.mxu0 0.0
    %4542 = vmatpush1.msra.mxu0 0.0
    %4543 = vmatprep.subr.mxu0 0.0
    %4544 = vmatpush1.msra.mxu0 0.0
    %4545 = vmatprep.subr.mxu0 0.0
    %4546 = vmatpush1.msra.mxu0 0.0
    %4547 = vmatprep.subr.mxu0 0.0
    %4548 = vmatpush1.msra.mxu0 0.0
    %4549 = vmatprep.subr.mxu0 0.0
    %4550 = vmatpush1.msra.mxu0 0.0
    %4551 = vmatprep.subr.mxu0 0.0
    %4552 = vmatpush1.msra.mxu0 0.0
    %4553 = vmatprep.subr.mxu0 0.0
    %4554 = vmatpush1.msra.mxu0 0.0
    %4555 = vmatprep.subr.mxu0 0.0
    %4556 = vmatpush1.msra.mxu0 0.0
    %4557 = vmatprep.subr.mxu0 0.0
    %4558 = vmatpush1.msra.mxu0 0.0
    %4559 = vmatprep.subr.mxu0 0.0
    %4560 = vmatpush1.msra.mxu0 0.0
    %4561 = vmatprep.subr.mxu0 0.0
    %4562 = vmatpush1.msra.mxu0 0.0
    %4563 = vmatprep.subr.mxu0 0.0
    %4564 = vmatpush1.msra.mxu0 0.0
    %4565 = vmatprep.subr.mxu0 0.0
    %4566 = vmatpush1.msra.mxu0 0.0
    %4567 = vmatprep.subr.mxu0 0.0
    %4568 = vmatpush1.msra.mxu0 0.0
    %4569 = vmatprep.subr.mxu0 0.0
    %4570 = vmatpush1.msra.mxu0 0.0
    %4571 = vmatprep.subr.mxu0 0.0
    %4572 = vmatpush1.msra.mxu0 0.0
    %4573 = vmatprep.subr.mxu0 0.0
    %4574 = vmatpush1.msra.mxu0 0.0
    %4575 = vmatprep.subr.mxu0 0.0
    %4576 = vmatpush1.msra.mxu0 0.0
    %4577 = vmatprep.subr.mxu0 0.0
    %4578 = vmatpush1.msra.mxu0 0.0
    %4579 = vmatprep.subr.mxu0 0.0
    %4580 = vmatpush1.msra.mxu0 0.0
    %4581 = vmatprep.subr.mxu0 0.0
    %4582 = vmatpush1.msra.mxu0 0.0
    %4583 = vmatprep.subr.mxu0 0.0
    %4584 = vmatpush1.msra.mxu0 0.0
    %4585 = vmatprep.mubr.f32.mxu0 0.0
    %v4586 = vand.u32 %v4078, 4294901760
    %4587 = vmatmul.mubr.f32.gmra.mrb[0].mxu0 %v4586
    %v4588 = vpop.f32.mrb[0].mxu0
    %v4589 = vadd.f32 %v4482, %v4588
    %v4590 = vpop.f32.mrb[0].mxu0
    %4591 = vmatprep.mubr.f32.mxu0 0.0
    %v4592 = vand.u32 %v4081, 4294901760
    %4593 = vmatmul.mubr.f32.gmra.mrb[0].mxu0 %v4592
    %v4594 = vpop.f32.mrb[0].mxu0
    %v4595 = vadd.f32 %v4490, %v4594
    %v4596 = vpop.f32.mrb[0].mxu0
    %4597 = vmatprep.mubr.f32.mxu0 0.0
    %v4598 = vand.u32 %v4084, 4294901760
    %4599 = vmatmul.mubr.f32.gmra.mrb[0].mxu0 %v4598
    %v4600 = vpop.f32.mrb[0].mxu0
    %v4601 = vadd.f32 %v4498, %v4600
    %v4602 = vpop.f32.mrb[0].mxu0
    %4603 = vmatprep.mubr.f32.mxu0 0.0
    %v4604 = vand.u32 %v4087, 4294901760
    %4605 = vmatmul.mubr.f32.gmra.mrb[0].mxu0 %v4604
    %v4606 = vpop.f32.mrb[0].mxu0
    %v4607 = vadd.f32 %v4506, %v4606
    %v4608 = vpop.f32.mrb[0].mxu0
    %4609 = vdwg.mxu0
    %4610 = vmatprep.subr.mxu0 0.0
    %v4611 = vand.u32 %v4073, 4294901760
    %4612 = vmatpush1.msra.mxu0 %v4611
    %4613 = vmatprep.subr.mxu0 0.0
    %v4614 = vand.u32 %v4074, 4294901760
    %4615 = vmatpush1.msra.mxu0 %v4614
    %4616 = vmatprep.subr.mxu0 0.0
    %v4617 = vand.u32 %v4075, 4294901760
    %4618 = vmatpush1.msra.mxu0 %v4617
    %4619 = vmatprep.subr.mxu0 0.0
    %v4620 = vand.u32 %v4076, 4294901760
    %4621 = vmatpush1.msra.mxu0 %v4620
    %4622 = vmatprep.subr.mxu0 0.0
    %4623 = vmatpush1.msra.mxu0 0.0
    %4624 = vmatprep.subr.mxu0 0.0
    %4625 = vmatpush1.msra.mxu0 0.0
    %4626 = vmatprep.subr.mxu0 0.0
    %4627 = vmatpush1.msra.mxu0 0.0
    %4628 = vmatprep.subr.mxu0 0.0
    %4629 = vmatpush1.msra.mxu0 0.0
    %4630 = vmatprep.subr.mxu0 0.0
    %4631 = vmatpush1.msra.mxu0 0.0
    %4632 = vmatprep.subr.mxu0 0.0
    %4633 = vmatpush1.msra.mxu0 0.0
    %4634 = vmatprep.subr.mxu0 0.0
    %4635 = vmatpush1.msra.mxu0 0.0
    %4636 = vmatprep.subr.mxu0 0.0
    %4637 = vmatpush1.msra.mxu0 0.0
    %4638 = vmatprep.subr.mxu0 0.0
    %4639 = vmatpush1.msra.mxu0 0.0
    %4640 = vmatprep.subr.mxu0 0.0
    %4641 = vmatpush1.msra.mxu0 0.0
    %4642 = vmatprep.subr.mxu0 0.0
    %4643 = vmatpush1.msra.mxu0 0.0
    %4644 = vmatprep.subr.mxu0 0.0
    %4645 = vmatpush1.msra.mxu0 0.0
    %4646 = vmatprep.subr.mxu0 0.0
    %4647 = vmatpush1.msra.mxu0 0.0
    %4648 = vmatprep.subr.mxu0 0.0
    %4649 = vmatpush1.msra.mxu0 0.0
    %4650 = vmatprep.subr.mxu0 0.0
    %4651 = vmatpush1.msra.mxu0 0.0
    %4652 = vmatprep.subr.mxu0 0.0
    %4653 = vmatpush1.msra.mxu0 0.0
    %4654 = vmatprep.subr.mxu0 0.0
    %4655 = vmatpush1.msra.mxu0 0.0
    %4656 = vmatprep.subr.mxu0 0.0
    %4657 = vmatpush1.msra.mxu0 0.0
    %4658 = vmatprep.subr.mxu0 0.0
    %4659 = vmatpush1.msra.mxu0 0.0
    %4660 = vmatprep.subr.mxu0 0.0
    %4661 = vmatpush1.msra.mxu0 0.0
    %4662 = vmatprep.subr.mxu0 0.0
    %4663 = vmatpush1.msra.mxu0 0.0
    %4664 = vmatprep.subr.mxu0 0.0
    %4665 = vmatpush1.msra.mxu0 0.0
    %4666 = vmatprep.subr.mxu0 0.0
    %4667 = vmatpush1.msra.mxu0 0.0
    %4668 = vmatprep.subr.mxu0 0.0
    %4669 = vmatpush1.msra.mxu0 0.0
    %4670 = vmatprep.subr.mxu0 0.0
    %4671 = vmatpush1.msra.mxu0 0.0
    %4672 = vmatprep.subr.mxu0 0.0
    %4673 = vmatpush1.msra.mxu0 0.0
    %4674 = vmatprep.subr.mxu0 0.0
    %4675 = vmatpush1.msra.mxu0 0.0
    %4676 = vmatprep.subr.mxu0 0.0
    %4677 = vmatpush1.msra.mxu0 0.0
    %4678 = vmatprep.mubr.f32.mxu0 0.0
    %v4679 = vand.u32 %v4078, 4294901760
    %4680 = vmatmul.mubr.f32.gmra.mrb[0].mxu0 %v4679
    %v4681 = vpop.f32.mrb[0].mxu0
    %v4682 = vadd.f32 %v4589, %v4681
    %v4683 = vpop.f32.mrb[0].mxu0
    %4684 = vmatprep.mubr.f32.mxu0 0.0
    %v4685 = vand.u32 %v4081, 4294901760
    %4686 = vmatmul.mubr.f32.gmra.mrb[0].mxu0 %v4685
    %v4687 = vpop.f32.mrb[0].mxu0
    %v4688 = vadd.f32 %v4595, %v4687
    %v4689 = vpop.f32.mrb[0].mxu0
    %4690 = vmatprep.mubr.f32.mxu0 0.0
    %v4691 = vand.u32 %v4084, 4294901760
    %4692 = vmatmul.mubr.f32.gmra.mrb[0].mxu0 %v4691
    %v4693 = vpop.f32.mrb[0].mxu0
    %v4694 = vadd.f32 %v4601, %v4693
    %v4695 = vpop.f32.mrb[0].mxu0
    %4696 = vmatprep.mubr.f32.mxu0 0.0
    %v4697 = vand.u32 %v4087, 4294901760
    %4698 = vmatmul.mubr.f32.gmra.mrb[0].mxu0 %v4697
    %v4699 = vpop.f32.mrb[0].mxu0
    %v4700 = vadd.f32 %v4607, %v4699
    %v4701 = vpop.f32.mrb[0].mxu0
    %4702 = vdwg.mxu0
    %4705 = vrot.lane.b32.xlu0 %v4694, 96
    %v4706 = vpop.permute.xlu0 %4705
    %4707 = vrot.lane.b32.xlu0 %v4700, 96
    %v4708 = vpop.permute.xlu0 %4707
    %4713 = vrot.lane.b32.xlu0 %v4682, 64
    %v4714 = vpop.permute.xlu0 %4713
    %4715 = vrot.lane.b32.xlu0 %v4688, 64
    %v4716 = vpop.permute.xlu0 %4715
    %s4719 = scalar_lea.vmem [#allocation7], 96
    %v4720 = vld [vmem:[%s4719] sm:$0xff]
    %v4721 = vld [vmem:[%s4719 + $0x8] sm:$0xff]
    %v4722 = vld [vmem:[%s4719 + $0x10] sm:$0xff]
    %v4723 = vld [vmem:[%s4719 + $0x18] sm:$0xff]
    %4724 = vmatprep.subr.mxu0 0.0
    %v4725 = vand.u32 %v4682, 4294901760
    %4726 = vmatpush1.msra.mxu0 %v4725
    %4727 = vmatprep.subr.mxu0 0.0
    %v4728 = vand.u32 %v4688, 4294901760
    %4729 = vmatpush1.msra.mxu0 %v4728
    %4730 = vmatprep.subr.mxu0 0.0
    %v4731 = vand.u32 %v4706, 4294901760
    %4732 = vmatpush1.msra.mxu0 %v4731
    %4733 = vmatprep.subr.mxu0 0.0
    %v4734 = vand.u32 %v4708, 4294901760
    %4735 = vmatpush1.msra.mxu0 %v4734
    %4736 = vmatprep.subr.mxu0 0.0
    %v4737 = vand.u32 %v4714, 4294901760
    %4738 = vmatpush1.msra.mxu0 %v4737
    %4739 = vmatprep.subr.mxu0 0.0
    %v4740 = vand.u32 %v4716, 4294901760
    %4741 = vmatpush1.msra.mxu0 %v4740
    %4742 = vmatprep.subr.mxu0 0.0
    %4743 = vmatpush1.msra.mxu0 0.0
    %4744 = vmatprep.subr.mxu0 0.0
    %4745 = vmatpush1.msra.mxu0 0.0
    %4746 = vmatprep.subr.mxu0 0.0
    %4747 = vmatpush1.msra.mxu0 0.0
    %4748 = vmatprep.subr.mxu0 0.0
    %4749 = vmatpush1.msra.mxu0 0.0
    %4750 = vmatprep.subr.mxu0 0.0
    %4751 = vmatpush1.msra.mxu0 0.0
    %4752 = vmatprep.subr.mxu0 0.0
    %4753 = vmatpush1.msra.mxu0 0.0
    %4754 = vmatprep.subr.mxu0 0.0
    %4755 = vmatpush1.msra.mxu0 0.0
    %4756 = vmatprep.subr.mxu0 0.0
    %4757 = vmatpush1.msra.mxu0 0.0
    %4758 = vmatprep.subr.mxu0 0.0
    %4759 = vmatpush1.msra.mxu0 0.0
    %4760 = vmatprep.subr.mxu0 0.0
    %4761 = vmatpush1.msra.mxu0 0.0
    %4762 = vmatprep.subr.mxu0 0.0
    %4763 = vmatpush1.msra.mxu0 0.0
    %4764 = vmatprep.subr.mxu0 0.0
    %4765 = vmatpush1.msra.mxu0 0.0
    %4766 = vmatprep.subr.mxu0 0.0
    %4767 = vmatpush1.msra.mxu0 0.0
    %4768 = vmatprep.subr.mxu0 0.0
    %4769 = vmatpush1.msra.mxu0 0.0
    %4770 = vmatprep.subr.mxu0 0.0
    %4771 = vmatpush1.msra.mxu0 0.0
    %4772 = vmatprep.subr.mxu0 0.0
    %4773 = vmatpush1.msra.mxu0 0.0
    %4774 = vmatprep.subr.mxu0 0.0
    %4775 = vmatpush1.msra.mxu0 0.0
    %4776 = vmatprep.subr.mxu0 0.0
    %4777 = vmatpush1.msra.mxu0 0.0
    %4778 = vmatprep.subr.mxu0 0.0
    %4779 = vmatpush1.msra.mxu0 0.0
    %4780 = vmatprep.subr.mxu0 0.0
    %4781 = vmatpush1.msra.mxu0 0.0
    %4782 = vmatprep.subr.mxu0 0.0
    %4783 = vmatpush1.msra.mxu0 0.0
    %4784 = vmatprep.subr.mxu0 0.0
    %4785 = vmatpush1.msra.mxu0 0.0
    %4786 = vmatprep.subr.mxu0 0.0
    %4787 = vmatpush1.msra.mxu0 0.0
    %4788 = vmatprep.subr.mxu0 0.0
    %4789 = vmatpush1.msra.mxu0 0.0
    %4790 = vmatprep.subr.mxu0 0.0
    %4791 = vmatpush1.msra.mxu0 0.0
    %4792 = vmatprep.subr.mxu0 0.0
    %4793 = vmatpush1.msra.mxu0 0.0
    %4794 = vmatprep.mubr.f32.mxu0 0.0
    %v4795 = vand.u32 %v733, 4294901760
    %v4796 = vsub.f32 %v733, %v4795
    %v4797 = vand.u32 %v4796, 4294901760
    %v4798 = vsub.f32 %v4796, %v4797
    %v4799 = vand.u32 %v4798, 4294901760
    %4800 = vmatmul.mubr.f32.gmra.mrb[0].mxu0 %v4799
    %v4801 = vpop.f32.mrb[0].mxu0
    %v4802 = vadd.f32 %v4720, %v4801
    %v4803 = vpop.f32.mrb[0].mxu0
    %4804 = vmatprep.mubr.f32.mxu0 0.0
    %v4805 = vand.u32 %v736, 4294901760
    %v4806 = vsub.f32 %v736, %v4805
    %v4807 = vand.u32 %v4806, 4294901760
    %v4808 = vsub.f32 %v4806, %v4807
    %v4809 = vand.u32 %v4808, 4294901760
    %4810 = vmatmul.mubr.f32.gmra.mrb[0].mxu0 %v4809
    %v4811 = vpop.f32.mrb[0].mxu0
    %v4812 = vadd.f32 %v4721, %v4811
    %v4813 = vpop.f32.mrb[0].mxu0
    %4814 = vmatprep.mubr.f32.mxu0 0.0
    %v4815 = vand.u32 %v739, 4294901760
    %v4816 = vsub.f32 %v739, %v4815
    %v4817 = vand.u32 %v4816, 4294901760
    %v4818 = vsub.f32 %v4816, %v4817
    %v4819 = vand.u32 %v4818, 4294901760
    %4820 = vmatmul.mubr.f32.gmra.mrb[0].mxu0 %v4819
    %v4821 = vpop.f32.mrb[0].mxu0
    %v4822 = vadd.f32 %v4722, %v4821
    %v4823 = vpop.f32.mrb[0].mxu0
    %4824 = vmatprep.mubr.f32.mxu0 0.0
    %v4825 = vand.u32 %v742, 4294901760
    %v4826 = vsub.f32 %v742, %v4825
    %v4827 = vand.u32 %v4826, 4294901760
    %v4828 = vsub.f32 %v4826, %v4827
    %v4829 = vand.u32 %v4828, 4294901760
    %4830 = vmatmul.mubr.f32.gmra.mrb[0].mxu0 %v4829
    %v4831 = vpop.f32.mrb[0].mxu0
    %v4832 = vadd.f32 %v4723, %v4831
    %v4833 = vpop.f32.mrb[0].mxu0
    %4834 = vdwg.mxu0
    %4835 = vmatprep.subr.mxu0 0.0
    %v4836 = vand.u32 %v4682, 4294901760
    %v4837 = vsub.f32 %v4682, %v4836
    %v4838 = vand.u32 %v4837, 4294901760
    %v4839 = vsub.f32 %v4837, %v4838
    %v4840 = vand.u32 %v4839, 4294901760
    %4841 = vmatpush1.msra.mxu0 %v4840
    %4842 = vmatprep.subr.mxu0 0.0
    %v4843 = vand.u32 %v4688, 4294901760
    %v4844 = vsub.f32 %v4688, %v4843
    %v4845 = vand.u32 %v4844, 4294901760
    %v4846 = vsub.f32 %v4844, %v4845
    %v4847 = vand.u32 %v4846, 4294901760
    %4848 = vmatpush1.msra.mxu0 %v4847
    %4849 = vmatprep.subr.mxu0 0.0
    %v4850 = vand.u32 %v4706, 4294901760
    %v4851 = vsub.f32 %v4706, %v4850
    %v4852 = vand.u32 %v4851, 4294901760
    %v4853 = vsub.f32 %v4851, %v4852
    %v4854 = vand.u32 %v4853, 4294901760
    %4855 = vmatpush1.msra.mxu0 %v4854
    %4856 = vmatprep.subr.mxu0 0.0
    %v4857 = vand.u32 %v4708, 4294901760
    %v4858 = vsub.f32 %v4708, %v4857
    %v4859 = vand.u32 %v4858, 4294901760
    %v4860 = vsub.f32 %v4858, %v4859
    %v4861 = vand.u32 %v4860, 4294901760
    %4862 = vmatpush1.msra.mxu0 %v4861
    %4863 = vmatprep.subr.mxu0 0.0
    %v4864 = vand.u32 %v4714, 4294901760
    %v4865 = vsub.f32 %v4714, %v4864
    %v4866 = vand.u32 %v4865, 4294901760
    %v4867 = vsub.f32 %v4865, %v4866
    %v4868 = vand.u32 %v4867, 4294901760
    %4869 = vmatpush1.msra.mxu0 %v4868
    %4870 = vmatprep.subr.mxu0 0.0
    %v4871 = vand.u32 %v4716, 4294901760
    %v4872 = vsub.f32 %v4716, %v4871
    %v4873 = vand.u32 %v4872, 4294901760
    %v4874 = vsub.f32 %v4872, %v4873
    %v4875 = vand.u32 %v4874, 4294901760
    %4876 = vmatpush1.msra.mxu0 %v4875
    %4877 = vmatprep.subr.mxu0 0.0
    %4878 = vmatpush1.msra.mxu0 0.0
    %4879 = vmatprep.subr.mxu0 0.0
    %4880 = vmatpush1.msra.mxu0 0.0
    %4881 = vmatprep.subr.mxu0 0.0
    %4882 = vmatpush1.msra.mxu0 0.0
    %4883 = vmatprep.subr.mxu0 0.0
    %4884 = vmatpush1.msra.mxu0 0.0
    %4885 = vmatprep.subr.mxu0 0.0
    %4886 = vmatpush1.msra.mxu0 0.0
    %4887 = vmatprep.subr.mxu0 0.0
    %4888 = vmatpush1.msra.mxu0 0.0
    %4889 = vmatprep.subr.mxu0 0.0
    %4890 = vmatpush1.msra.mxu0 0.0
    %4891 = vmatprep.subr.mxu0 0.0
    %4892 = vmatpush1.msra.mxu0 0.0
    %4893 = vmatprep.subr.mxu0 0.0
    %4894 = vmatpush1.msra.mxu0 0.0
    %4895 = vmatprep.subr.mxu0 0.0
    %4896 = vmatpush1.msra.mxu0 0.0
    %4897 = vmatprep.subr.mxu0 0.0
    %4898 = vmatpush1.msra.mxu0 0.0
    %4899 = vmatprep.subr.mxu0 0.0
    %4900 = vmatpush1.msra.mxu0 0.0
    %4901 = vmatprep.subr.mxu0 0.0
    %4902 = vmatpush1.msra.mxu0 0.0
    %4903 = vmatprep.subr.mxu0 0.0
    %4904 = vmatpush1.msra.mxu0 0.0
    %4905 = vmatprep.subr.mxu0 0.0
    %4906 = vmatpush1.msra.mxu0 0.0
    %4907 = vmatprep.subr.mxu0 0.0
    %4908 = vmatpush1.msra.mxu0 0.0
    %4909 = vmatprep.subr.mxu0 0.0
    %4910 = vmatpush1.msra.mxu0 0.0
    %4911 = vmatprep.subr.mxu0 0.0
    %4912 = vmatpush1.msra.mxu0 0.0
    %4913 = vmatprep.subr.mxu0 0.0
    %4914 = vmatpush1.msra.mxu0 0.0
    %4915 = vmatprep.subr.mxu0 0.0
    %4916 = vmatpush1.msra.mxu0 0.0
    %4917 = vmatprep.subr.mxu0 0.0
    %4918 = vmatpush1.msra.mxu0 0.0
    %4919 = vmatprep.subr.mxu0 0.0
    %4920 = vmatpush1.msra.mxu0 0.0
    %4921 = vmatprep.subr.mxu0 0.0
    %4922 = vmatpush1.msra.mxu0 0.0
    %4923 = vmatprep.subr.mxu0 0.0
    %4924 = vmatpush1.msra.mxu0 0.0
    %4925 = vmatprep.subr.mxu0 0.0
    %4926 = vmatpush1.msra.mxu0 0.0
    %4927 = vmatprep.subr.mxu0 0.0
    %4928 = vmatpush1.msra.mxu0 0.0
    %4929 = vmatprep.mubr.f32.mxu0 0.0
    %v4930 = vand.u32 %v733, 4294901760
    %4931 = vmatmul.mubr.f32.gmra.mrb[0].mxu0 %v4930
    %v4932 = vpop.f32.mrb[0].mxu0
    %v4933 = vadd.f32 %v4802, %v4932
    %v4934 = vpop.f32.mrb[0].mxu0
    %4935 = vmatprep.mubr.f32.mxu0 0.0
    %v4936 = vand.u32 %v736, 4294901760
    %4937 = vmatmul.mubr.f32.gmra.mrb[0].mxu0 %v4936
    %v4938 = vpop.f32.mrb[0].mxu0
    %v4939 = vadd.f32 %v4812, %v4938
    %v4940 = vpop.f32.mrb[0].mxu0
    %4941 = vmatprep.mubr.f32.mxu0 0.0
    %v4942 = vand.u32 %v739, 4294901760
    %4943 = vmatmul.mubr.f32.gmra.mrb[0].mxu0 %v4942
    %v4944 = vpop.f32.mrb[0].mxu0
    %v4945 = vadd.f32 %v4822, %v4944
    %v4946 = vpop.f32.mrb[0].mxu0
    %4947 = vmatprep.mubr.f32.mxu0 0.0
    %v4948 = vand.u32 %v742, 4294901760
    %4949 = vmatmul.mubr.f32.gmra.mrb[0].mxu0 %v4948
    %v4950 = vpop.f32.mrb[0].mxu0
    %v4951 = vadd.f32 %v4832, %v4950
    %v4952 = vpop.f32.mrb[0].mxu0
    %4953 = vdwg.mxu0
    %4954 = vmatprep.subr.mxu0 0.0
    %v4955 = vand.u32 %v4682, 4294901760
    %v4956 = vsub.f32 %v4682, %v4955
    %4957 = vmatpush1.msra.mxu0 %v4956
    %4958 = vmatprep.subr.mxu0 0.0
    %v4959 = vand.u32 %v4688, 4294901760
    %v4960 = vsub.f32 %v4688, %v4959
    %4961 = vmatpush1.msra.mxu0 %v4960
    %4962 = vmatprep.subr.mxu0 0.0
    %v4963 = vand.u32 %v4706, 4294901760
    %v4964 = vsub.f32 %v4706, %v4963
    %4965 = vmatpush1.msra.mxu0 %v4964
    %4966 = vmatprep.subr.mxu0 0.0
    %v4967 = vand.u32 %v4708, 4294901760
    %v4968 = vsub.f32 %v4708, %v4967
    %4969 = vmatpush1.msra.mxu0 %v4968
    %4970 = vmatprep.subr.mxu0 0.0
    %v4971 = vand.u32 %v4714, 4294901760
    %v4972 = vsub.f32 %v4714, %v4971
    %4973 = vmatpush1.msra.mxu0 %v4972
    %4974 = vmatprep.subr.mxu0 0.0
    %v4975 = vand.u32 %v4716, 4294901760
    %v4976 = vsub.f32 %v4716, %v4975
    %4977 = vmatpush1.msra.mxu0 %v4976
    %4978 = vmatprep.subr.mxu0 0.0
    %4979 = vmatpush1.msra.mxu0 0.0
    %4980 = vmatprep.subr.mxu0 0.0
    %4981 = vmatpush1.msra.mxu0 0.0
    %4982 = vmatprep.subr.mxu0 0.0
    %4983 = vmatpush1.msra.mxu0 0.0
    %4984 = vmatprep.subr.mxu0 0.0
    %4985 = vmatpush1.msra.mxu0 0.0
    %4986 = vmatprep.subr.mxu0 0.0
    %4987 = vmatpush1.msra.mxu0 0.0
    %4988 = vmatprep.subr.mxu0 0.0
    %4989 = vmatpush1.msra.mxu0 0.0
    %4990 = vmatprep.subr.mxu0 0.0
    %4991 = vmatpush1.msra.mxu0 0.0
    %4992 = vmatprep.subr.mxu0 0.0
    %4993 = vmatpush1.msra.mxu0 0.0
    %4994 = vmatprep.subr.mxu0 0.0
    %4995 = vmatpush1.msra.mxu0 0.0
    %4996 = vmatprep.subr.mxu0 0.0
    %4997 = vmatpush1.msra.mxu0 0.0
    %4998 = vmatprep.subr.mxu0 0.0
    %4999 = vmatpush1.msra.mxu0 0.0
    %5000 = vmatprep.subr.mxu0 0.0
    %5001 = vmatpush1.msra.mxu0 0.0
    %5002 = vmatprep.subr.mxu0 0.0
    %5003 = vmatpush1.msra.mxu0 0.0
    %5004 = vmatprep.subr.mxu0 0.0
    %5005 = vmatpush1.msra.mxu0 0.0
    %5006 = vmatprep.subr.mxu0 0.0
    %5007 = vmatpush1.msra.mxu0 0.0
    %5008 = vmatprep.subr.mxu0 0.0
    %5009 = vmatpush1.msra.mxu0 0.0
    %5010 = vmatprep.subr.mxu0 0.0
    %5011 = vmatpush1.msra.mxu0 0.0
    %5012 = vmatprep.subr.mxu0 0.0
    %5013 = vmatpush1.msra.mxu0 0.0
    %5014 = vmatprep.subr.mxu0 0.0
    %5015 = vmatpush1.msra.mxu0 0.0
    %5016 = vmatprep.subr.mxu0 0.0
    %5017 = vmatpush1.msra.mxu0 0.0
    %5018 = vmatprep.subr.mxu0 0.0
    %5019 = vmatpush1.msra.mxu0 0.0
    %5020 = vmatprep.subr.mxu0 0.0
    %5021 = vmatpush1.msra.mxu0 0.0
    %5022 = vmatprep.subr.mxu0 0.0
    %5023 = vmatpush1.msra.mxu0 0.0
    %5024 = vmatprep.subr.mxu0 0.0
    %5025 = vmatpush1.msra.mxu0 0.0
    %5026 = vmatprep.subr.mxu0 0.0
    %5027 = vmatpush1.msra.mxu0 0.0
    %5028 = vmatprep.subr.mxu0 0.0
    %5029 = vmatpush1.msra.mxu0 0.0
    %5030 = vmatprep.mubr.f32.mxu0 0.0
    %v5031 = vand.u32 %v733, 4294901760
    %v5032 = vsub.f32 %v733, %v5031
    %5033 = vmatmul.mubr.f32.gmra.mrb[0].mxu0 %v5032
    %v5034 = vpop.f32.mrb[0].mxu0
    %v5035 = vadd.f32 %v4933, %v5034
    %v5036 = vpop.f32.mrb[0].mxu0
    %5037 = vmatprep.mubr.f32.mxu0 0.0
    %v5038 = vand.u32 %v736, 4294901760
    %v5039 = vsub.f32 %v736, %v5038
    %5040 = vmatmul.mubr.f32.gmra.mrb[0].mxu0 %v5039
    %v5041 = vpop.f32.mrb[0].mxu0
    %v5042 = vadd.f32 %v4939, %v5041
    %v5043 = vpop.f32.mrb[0].mxu0
    %5044 = vmatprep.mubr.f32.mxu0 0.0
    %v5045 = vand.u32 %v739, 4294901760
    %v5046 = vsub.f32 %v739, %v5045
    %5047 = vmatmul.mubr.f32.gmra.mrb[0].mxu0 %v5046
    %v5048 = vpop.f32.mrb[0].mxu0
    %v5049 = vadd.f32 %v4945, %v5048
    %v5050 = vpop.f32.mrb[0].mxu0
    %5051 = vmatprep.mubr.f32.mxu0 0.0
    %v5052 = vand.u32 %v742, 4294901760
    %v5053 = vsub.f32 %v742, %v5052
    %5054 = vmatmul.mubr.f32.gmra.mrb[0].mxu0 %v5053
    %v5055 = vpop.f32.mrb[0].mxu0
    %v5056 = vadd.f32 %v4951, %v5055
    %v5057 = vpop.f32.mrb[0].mxu0
    %5058 = vdwg.mxu0
    %5059 = vmatprep.subr.mxu0 0.0
    %v5060 = vand.u32 %v4682, 4294901760
    %5061 = vmatpush1.msra.mxu0 %v5060
    %5062 = vmatprep.subr.mxu0 0.0
    %v5063 = vand.u32 %v4688, 4294901760
    %5064 = vmatpush1.msra.mxu0 %v5063
    %5065 = vmatprep.subr.mxu0 0.0
    %v5066 = vand.u32 %v4706, 4294901760
    %5067 = vmatpush1.msra.mxu0 %v5066
    %5068 = vmatprep.subr.mxu0 0.0
    %v5069 = vand.u32 %v4708, 4294901760
    %5070 = vmatpush1.msra.mxu0 %v5069
    %5071 = vmatprep.subr.mxu0 0.0
    %v5072 = vand.u32 %v4714, 4294901760
    %5073 = vmatpush1.msra.mxu0 %v5072
    %5074 = vmatprep.subr.mxu0 0.0
    %v5075 = vand.u32 %v4716, 4294901760
    %5076 = vmatpush1.msra.mxu0 %v5075
    %5077 = vmatprep.subr.mxu0 0.0
    %5078 = vmatpush1.msra.mxu0 0.0
    %5079 = vmatprep.subr.mxu0 0.0
    %5080 = vmatpush1.msra.mxu0 0.0
    %5081 = vmatprep.subr.mxu0 0.0
    %5082 = vmatpush1.msra.mxu0 0.0
    %5083 = vmatprep.subr.mxu0 0.0
    %5084 = vmatpush1.msra.mxu0 0.0
    %5085 = vmatprep.subr.mxu0 0.0
    %5086 = vmatpush1.msra.mxu0 0.0
    %5087 = vmatprep.subr.mxu0 0.0
    %5088 = vmatpush1.msra.mxu0 0.0
    %5089 = vmatprep.subr.mxu0 0.0
    %5090 = vmatpush1.msra.mxu0 0.0
    %5091 = vmatprep.subr.mxu0 0.0
    %5092 = vmatpush1.msra.mxu0 0.0
    %5093 = vmatprep.subr.mxu0 0.0
    %5094 = vmatpush1.msra.mxu0 0.0
    %5095 = vmatprep.subr.mxu0 0.0
    %5096 = vmatpush1.msra.mxu0 0.0
    %5097 = vmatprep.subr.mxu0 0.0
    %5098 = vmatpush1.msra.mxu0 0.0
    %5099 = vmatprep.subr.mxu0 0.0
    %5100 = vmatpush1.msra.mxu0 0.0
    %5101 = vmatprep.subr.mxu0 0.0
    %5102 = vmatpush1.msra.mxu0 0.0
    %5103 = vmatprep.subr.mxu0 0.0
    %5104 = vmatpush1.msra.mxu0 0.0
    %5105 = vmatprep.subr.mxu0 0.0
    %5106 = vmatpush1.msra.mxu0 0.0
    %5107 = vmatprep.subr.mxu0 0.0
    %5108 = vmatpush1.msra.mxu0 0.0
    %5109 = vmatprep.subr.mxu0 0.0
    %5110 = vmatpush1.msra.mxu0 0.0
    %5111 = vmatprep.subr.mxu0 0.0
    %5112 = vmatpush1.msra.mxu0 0.0
    %5113 = vmatprep.subr.mxu0 0.0
    %5114 = vmatpush1.msra.mxu0 0.0
    %5115 = vmatprep.subr.mxu0 0.0
    %5116 = vmatpush1.msra.mxu0 0.0
    %5117 = vmatprep.subr.mxu0 0.0
    %5118 = vmatpush1.msra.mxu0 0.0
    %5119 = vmatprep.subr.mxu0 0.0
    %5120 = vmatpush1.msra.mxu0 0.0
    %5121 = vmatprep.subr.mxu0 0.0
    %5122 = vmatpush1.msra.mxu0 0.0
    %5123 = vmatprep.subr.mxu0 0.0
    %5124 = vmatpush1.msra.mxu0 0.0
    %5125 = vmatprep.subr.mxu0 0.0
    %5126 = vmatpush1.msra.mxu0 0.0
    %5127 = vmatprep.subr.mxu0 0.0
    %5128 = vmatpush1.msra.mxu0 0.0
    %5129 = vmatprep.mubr.f32.mxu0 0.0
    %v5130 = vand.u32 %v733, 4294901760
    %v5131 = vsub.f32 %v733, %v5130
    %v5132 = vand.u32 %v5131, 4294901760
    %5133 = vmatmul.mubr.f32.gmra.mrb[0].mxu0 %v5132
    %v5134 = vpop.f32.mrb[0].mxu0
    %v5135 = vadd.f32 %v5035, %v5134
    %v5136 = vpop.f32.mrb[0].mxu0
    %5137 = vmatprep.mubr.f32.mxu0 0.0
    %v5138 = vand.u32 %v736, 4294901760
    %v5139 = vsub.f32 %v736, %v5138
    %v5140 = vand.u32 %v5139, 4294901760
    %5141 = vmatmul.mubr.f32.gmra.mrb[0].mxu0 %v5140
    %v5142 = vpop.f32.mrb[0].mxu0
    %v5143 = vadd.f32 %v5042, %v5142
    %v5144 = vpop.f32.mrb[0].mxu0
    %5145 = vmatprep.mubr.f32.mxu0 0.0
    %v5146 = vand.u32 %v739, 4294901760
    %v5147 = vsub.f32 %v739, %v5146
    %v5148 = vand.u32 %v5147, 4294901760
    %5149 = vmatmul.mubr.f32.gmra.mrb[0].mxu0 %v5148
    %v5150 = vpop.f32.mrb[0].mxu0
    %v5151 = vadd.f32 %v5049, %v5150
    %v5152 = vpop.f32.mrb[0].mxu0
    %5153 = vmatprep.mubr.f32.mxu0 0.0
    %v5154 = vand.u32 %v742, 4294901760
    %v5155 = vsub.f32 %v742, %v5154
    %v5156 = vand.u32 %v5155, 4294901760
    %5157 = vmatmul.mubr.f32.gmra.mrb[0].mxu0 %v5156
    %v5158 = vpop.f32.mrb[0].mxu0
    %v5159 = vadd.f32 %v5056, %v5158
    %v5160 = vpop.f32.mrb[0].mxu0
    %5161 = vdwg.mxu0
    %5162 = vmatprep.subr.mxu0 0.0
    %v5163 = vand.u32 %v4682, 4294901760
    %v5164 = vsub.f32 %v4682, %v5163
    %v5165 = vand.u32 %v5164, 4294901760
    %5166 = vmatpush1.msra.mxu0 %v5165
    %5167 = vmatprep.subr.mxu0 0.0
    %v5168 = vand.u32 %v4688, 4294901760
    %v5169 = vsub.f32 %v4688, %v5168
    %v5170 = vand.u32 %v5169, 4294901760
    %5171 = vmatpush1.msra.mxu0 %v5170
    %5172 = vmatprep.subr.mxu0 0.0
    %v5173 = vand.u32 %v4706, 4294901760
    %v5174 = vsub.f32 %v4706, %v5173
    %v5175 = vand.u32 %v5174, 4294901760
    %5176 = vmatpush1.msra.mxu0 %v5175
    %5177 = vmatprep.subr.mxu0 0.0
    %v5178 = vand.u32 %v4708, 4294901760
    %v5179 = vsub.f32 %v4708, %v5178
    %v5180 = vand.u32 %v5179, 4294901760
    %5181 = vmatpush1.msra.mxu0 %v5180
    %5182 = vmatprep.subr.mxu0 0.0
    %v5183 = vand.u32 %v4714, 4294901760
    %v5184 = vsub.f32 %v4714, %v5183
    %v5185 = vand.u32 %v5184, 4294901760
    %5186 = vmatpush1.msra.mxu0 %v5185
    %5187 = vmatprep.subr.mxu0 0.0
    %v5188 = vand.u32 %v4716, 4294901760
    %v5189 = vsub.f32 %v4716, %v5188
    %v5190 = vand.u32 %v5189, 4294901760
    %5191 = vmatpush1.msra.mxu0 %v5190
    %5192 = vmatprep.subr.mxu0 0.0
    %5193 = vmatpush1.msra.mxu0 0.0
    %5194 = vmatprep.subr.mxu0 0.0
    %5195 = vmatpush1.msra.mxu0 0.0
    %5196 = vmatprep.subr.mxu0 0.0
    %5197 = vmatpush1.msra.mxu0 0.0
    %5198 = vmatprep.subr.mxu0 0.0
    %5199 = vmatpush1.msra.mxu0 0.0
    %5200 = vmatprep.subr.mxu0 0.0
    %5201 = vmatpush1.msra.mxu0 0.0
    %5202 = vmatprep.subr.mxu0 0.0
    %5203 = vmatpush1.msra.mxu0 0.0
    %5204 = vmatprep.subr.mxu0 0.0
    %5205 = vmatpush1.msra.mxu0 0.0
    %5206 = vmatprep.subr.mxu0 0.0
    %5207 = vmatpush1.msra.mxu0 0.0
    %5208 = vmatprep.subr.mxu0 0.0
    %5209 = vmatpush1.msra.mxu0 0.0
    %5210 = vmatprep.subr.mxu0 0.0
    %5211 = vmatpush1.msra.mxu0 0.0
    %5212 = vmatprep.subr.mxu0 0.0
    %5213 = vmatpush1.msra.mxu0 0.0
    %5214 = vmatprep.subr.mxu0 0.0
    %5215 = vmatpush1.msra.mxu0 0.0
    %5216 = vmatprep.subr.mxu0 0.0
    %5217 = vmatpush1.msra.mxu0 0.0
    %5218 = vmatprep.subr.mxu0 0.0
    %5219 = vmatpush1.msra.mxu0 0.0
    %5220 = vmatprep.subr.mxu0 0.0
    %5221 = vmatpush1.msra.mxu0 0.0
    %5222 = vmatprep.subr.mxu0 0.0
    %5223 = vmatpush1.msra.mxu0 0.0
    %5224 = vmatprep.subr.mxu0 0.0
    %5225 = vmatpush1.msra.mxu0 0.0
    %5226 = vmatprep.subr.mxu0 0.0
    %5227 = vmatpush1.msra.mxu0 0.0
    %5228 = vmatprep.subr.mxu0 0.0
    %5229 = vmatpush1.msra.mxu0 0.0
    %5230 = vmatprep.subr.mxu0 0.0
    %5231 = vmatpush1.msra.mxu0 0.0
    %5232 = vmatprep.subr.mxu0 0.0
    %5233 = vmatpush1.msra.mxu0 0.0
    %5234 = vmatprep.subr.mxu0 0.0
    %5235 = vmatpush1.msra.mxu0 0.0
    %5236 = vmatprep.subr.mxu0 0.0
    %5237 = vmatpush1.msra.mxu0 0.0
    %5238 = vmatprep.subr.mxu0 0.0
    %5239 = vmatpush1.msra.mxu0 0.0
    %5240 = vmatprep.subr.mxu0 0.0
    %5241 = vmatpush1.msra.mxu0 0.0
    %5242 = vmatprep.subr.mxu0 0.0
    %5243 = vmatpush1.msra.mxu0 0.0
    %5244 = vmatprep.mubr.f32.mxu0 0.0
    %v5245 = vand.u32 %v733, 4294901760
    %5246 = vmatmul.mubr.f32.gmra.mrb[0].mxu0 %v5245
    %v5247 = vpop.f32.mrb[0].mxu0
    %v5248 = vadd.f32 %v5135, %v5247
    %v5249 = vpop.f32.mrb[0].mxu0
    %5250 = vmatprep.mubr.f32.mxu0 0.0
    %v5251 = vand.u32 %v736, 4294901760
    %5252 = vmatmul.mubr.f32.gmra.mrb[0].mxu0 %v5251
    %v5253 = vpop.f32.mrb[0].mxu0
    %v5254 = vadd.f32 %v5143, %v5253
    %v5255 = vpop.f32.mrb[0].mxu0
    %5256 = vmatprep.mubr.f32.mxu0 0.0
    %v5257 = vand.u32 %v739, 4294901760
    %5258 = vmatmul.mubr.f32.gmra.mrb[0].mxu0 %v5257
    %v5259 = vpop.f32.mrb[0].mxu0
    %v5260 = vadd.f32 %v5151, %v5259
    %v5261 = vpop.f32.mrb[0].mxu0
    %5262 = vmatprep.mubr.f32.mxu0 0.0
    %v5263 = vand.u32 %v742, 4294901760
    %5264 = vmatmul.mubr.f32.gmra.mrb[0].mxu0 %v5263
    %v5265 = vpop.f32.mrb[0].mxu0
    %v5266 = vadd.f32 %v5159, %v5265
    %v5267 = vpop.f32.mrb[0].mxu0
    %5268 = vdwg.mxu0
    %5269 = vmatprep.subr.mxu0 0.0
    %v5270 = vand.u32 %v4682, 4294901760
    %5271 = vmatpush1.msra.mxu0 %v5270
    %5272 = vmatprep.subr.mxu0 0.0
    %v5273 = vand.u32 %v4688, 4294901760
    %5274 = vmatpush1.msra.mxu0 %v5273
    %5275 = vmatprep.subr.mxu0 0.0
    %v5276 = vand.u32 %v4706, 4294901760
    %5277 = vmatpush1.msra.mxu0 %v5276
    %5278 = vmatprep.subr.mxu0 0.0
    %v5279 = vand.u32 %v4708, 4294901760
    %5280 = vmatpush1.msra.mxu0 %v5279
    %5281 = vmatprep.subr.mxu0 0.0
    %v5282 = vand.u32 %v4714, 4294901760
    %5283 = vmatpush1.msra.mxu0 %v5282
    %5284 = vmatprep.subr.mxu0 0.0
    %v5285 = vand.u32 %v4716, 4294901760
    %5286 = vmatpush1.msra.mxu0 %v5285
    %5287 = vmatprep.subr.mxu0 0.0
    %5288 = vmatpush1.msra.mxu0 0.0
    %5289 = vmatprep.subr.mxu0 0.0
    %5290 = vmatpush1.msra.mxu0 0.0
    %5291 = vmatprep.subr.mxu0 0.0
    %5292 = vmatpush1.msra.mxu0 0.0
    %5293 = vmatprep.subr.mxu0 0.0
    %5294 = vmatpush1.msra.mxu0 0.0
    %5295 = vmatprep.subr.mxu0 0.0
    %5296 = vmatpush1.msra.mxu0 0.0
    %5297 = vmatprep.subr.mxu0 0.0
    %5298 = vmatpush1.msra.mxu0 0.0
    %5299 = vmatprep.subr.mxu0 0.0
    %5300 = vmatpush1.msra.mxu0 0.0
    %5301 = vmatprep.subr.mxu0 0.0
    %5302 = vmatpush1.msra.mxu0 0.0
    %5303 = vmatprep.subr.mxu0 0.0
    %5304 = vmatpush1.msra.mxu0 0.0
    %5305 = vmatprep.subr.mxu0 0.0
    %5306 = vmatpush1.msra.mxu0 0.0
    %5307 = vmatprep.subr.mxu0 0.0
    %5308 = vmatpush1.msra.mxu0 0.0
    %5309 = vmatprep.subr.mxu0 0.0
    %5310 = vmatpush1.msra.mxu0 0.0
    %5311 = vmatprep.subr.mxu0 0.0
    %5312 = vmatpush1.msra.mxu0 0.0
    %5313 = vmatprep.subr.mxu0 0.0
    %5314 = vmatpush1.msra.mxu0 0.0
    %5315 = vmatprep.subr.mxu0 0.0
    %5316 = vmatpush1.msra.mxu0 0.0
    %5317 = vmatprep.subr.mxu0 0.0
    %5318 = vmatpush1.msra.mxu0 0.0
    %5319 = vmatprep.subr.mxu0 0.0
    %5320 = vmatpush1.msra.mxu0 0.0
    %5321 = vmatprep.subr.mxu0 0.0
    %5322 = vmatpush1.msra.mxu0 0.0
    %5323 = vmatprep.subr.mxu0 0.0
    %5324 = vmatpush1.msra.mxu0 0.0
    %5325 = vmatprep.subr.mxu0 0.0
    %5326 = vmatpush1.msra.mxu0 0.0
    %5327 = vmatprep.subr.mxu0 0.0
    %5328 = vmatpush1.msra.mxu0 0.0
    %5329 = vmatprep.subr.mxu0 0.0
    %5330 = vmatpush1.msra.mxu0 0.0
    %5331 = vmatprep.subr.mxu0 0.0
    %5332 = vmatpush1.msra.mxu0 0.0
    %5333 = vmatprep.subr.mxu0 0.0
    %5334 = vmatpush1.msra.mxu0 0.0
    %5335 = vmatprep.subr.mxu0 0.0
    %5336 = vmatpush1.msra.mxu0 0.0
    %5337 = vmatprep.subr.mxu0 0.0
    %5338 = vmatpush1.msra.mxu0 0.0
    %5339 = vmatprep.mubr.f32.mxu0 0.0
    %v5340 = vand.u32 %v733, 4294901760
    %5341 = vmatmul.mubr.f32.gmra.mrb[0].mxu0 %v5340
    %v5342 = vpop.f32.mrb[0].mxu0
    %v5343 = vadd.f32 %v5248, %v5342
    %v5344 = vpop.f32.mrb[0].mxu0
    %5345 = vmatprep.mubr.f32.mxu0 0.0
    %v5346 = vand.u32 %v736, 4294901760
    %5347 = vmatmul.mubr.f32.gmra.mrb[0].mxu0 %v5346
    %v5348 = vpop.f32.mrb[0].mxu0
    %v5349 = vadd.f32 %v5254, %v5348
    %v5350 = vpop.f32.mrb[0].mxu0
    %5351 = vmatprep.mubr.f32.mxu0 0.0
    %v5352 = vand.u32 %v739, 4294901760
    %5353 = vmatmul.mubr.f32.gmra.mrb[0].mxu0 %v5352
    %v5354 = vpop.f32.mrb[0].mxu0
    %v5355 = vadd.f32 %v5260, %v5354
    %v5356 = vpop.f32.mrb[0].mxu0
    %5357 = vmatprep.mubr.f32.mxu0 0.0
    %v5358 = vand.u32 %v742, 4294901760
    %5359 = vmatmul.mubr.f32.gmra.mrb[0].mxu0 %v5358
    %v5360 = vpop.f32.mrb[0].mxu0
    %v5361 = vadd.f32 %v5266, %v5360
    %v5362 = vpop.f32.mrb[0].mxu0
    %5363 = vdwg.mxu0
    %v5364 = vmax.f32 %v5343, 0.0
    %v5365 = vmax.f32 %v5349, 0.0
    %v5366 = vmax.f32 %v5355, 0.0
    %v5367 = vmax.f32 %v5361, 0.0
    %v5368 = vmul.f32 %v5364, %v5364
    %v5369 = vmul.f32 %v5365, %v5365
    %v5370 = vmul.f32 %v5366, %v5366
    %v5371 = vmul.f32 %v5367, %v5367
    %v5372 = vsel %vm84, %v5368, 0.0
    %5373 = vadd.xlane.f32.xlu0 %v5372
    %v5374 = vpop.xlane.xlu0 %5373
    %v5375 = vsel %vm84, %v5369, 0.0
    %5376 = vadd.xlane.f32.xlu0 %v5375
    %v5377 = vpop.xlane.xlu0 %5376
    %v5378 = vsel %vm84, %v5370, 0.0
    %5379 = vadd.xlane.f32.xlu0 %v5378
    %v5380 = vpop.xlane.xlu0 %5379
    %v5381 = vsel %vm84, %v5371, 0.0
    %5382 = vadd.xlane.f32.xlu0 %v5381
    %v5383 = vpop.xlane.xlu0 %5382
    %v5384 = vmax.f32 %v5374, 1e-24
    %v5385 = vmax.f32 %v5377, 1e-24
    %v5386 = vmax.f32 %v5380, 1e-24
    %v5387 = vmax.f32 %v5383, 1e-24
    %v5388 = vrsqrt.pop %v5384
    %v5389 = vrsqrt.pop %v5385
    %v5390 = vrsqrt.pop %v5386
    %v5391 = vrsqrt.pop %v5387
    %v5392 = vmul.f32 %v5364, %v5388
    %v5393 = vmul.f32 %v5365, %v5389
    %v5394 = vmul.f32 %v5366, %v5390
    %v5395 = vmul.f32 %v5367, %v5391
    %v5396 = vadd.f32 %v5392, %v2744
    %v5397 = vadd.f32 %v5393, %v2745
    %v5398 = vadd.f32 %v5394, %v2746
    %v5399 = vadd.f32 %v5395, %v2747
    %v5400 = vmax.f32 %v5396, 0.0
    %v5401 = vmax.f32 %v5397, 0.0
    %v5402 = vmax.f32 %v5398, 0.0
    %v5403 = vmax.f32 %v5399, 0.0
    %v5404 = vmul.f32 %v5400, %v5400
    %v5405 = vmul.f32 %v5401, %v5401
    %v5406 = vmul.f32 %v5402, %v5402
    %v5407 = vmul.f32 %v5403, %v5403
    %v5408 = vsel %vm84, %v5404, 0.0
    %5409 = vadd.xlane.f32.xlu0 %v5408
    %v5410 = vpop.xlane.xlu0 %5409
    %v5411 = vsel %vm84, %v5405, 0.0
    %5412 = vadd.xlane.f32.xlu0 %v5411
    %v5413 = vpop.xlane.xlu0 %5412
    %v5414 = vsel %vm84, %v5406, 0.0
    %5415 = vadd.xlane.f32.xlu0 %v5414
    %v5416 = vpop.xlane.xlu0 %5415
    %v5417 = vsel %vm84, %v5407, 0.0
    %5418 = vadd.xlane.f32.xlu0 %v5417
    %v5419 = vpop.xlane.xlu0 %5418
    %v5420 = vmax.f32 %v5410, 1e-24
    %v5421 = vmax.f32 %v5413, 1e-24
    %v5422 = vmax.f32 %v5416, 1e-24
    %v5423 = vmax.f32 %v5419, 1e-24
    %v5424 = vrsqrt.pop %v5420
    %v5425 = vrsqrt.pop %v5421
    %v5426 = vrsqrt.pop %v5422
    %v5427 = vrsqrt.pop %v5423
    %v5428 = vmul.f32 %v5400, %v5424
    %v5429 = vmul.f32 %v5401, %v5425
    %v5430 = vmul.f32 %v5402, %v5426
    %v5431 = vmul.f32 %v5403, %v5427
    %5432 = vst.msk [vmem:[%s4] sm:$0xff] %vm84, %v5428
    %5433 = vst.msk [vmem:[%s4 + $0x8] sm:$0xff] %vm84, %v5429
    %5434 = vst.msk [vmem:[%s4 + $0x10] sm:$0xff] %vm84, %v5430
    %5435 = vst.msk [vmem:[%s4 + $0x18] sm:$0xff] %vm84, %v5431
    // Predicated region
    $region34: #{hgnn_skip_stage.1} parent=1 // pred_check
      _
    $region35: #{hgnn_skip_stage.1} parent=1 // pred_check_branch
      %5437 = sbr.rel (0) target = $region37
    $region36: #{hgnn_skip_stage.1} parent=1 // pred_region
      _
    $region37: #{hgnn_skip_stage.1} parent=1 // pred_fallthru
      _
    // Predicated region
    $region38: #{hgnn_skip_stage.1} parent=1 // pred_check
      _
    $region39: #{hgnn_skip_stage.1} parent=1 // pred_check_branch
      %5439 = sbr.rel (0) target = $region41
    $region40: #{hgnn_skip_stage.1} parent=1 // pred_region
      _
    $region41: #{hgnn_skip_stage.1} parent=1 // pred_fallthru
      _
    %5440 = vsyncpa [#allocation3], 1
    %5441 = vsyncpa [#allocation5], 1
    %5442 = vsyncpa [#allocation8], 1

</llo_original>
